<compile_context>
chip_gen: v5e
topology: v5e:2x2
jax: 0.10.0
libtpu: 0.0.40
codegen_flags: <defaults>
</compile_context>

<pallas_src>
import functools

import jax
import jax.numpy as jnp
import numpy as np
from jax.experimental import pallas as pl
from jax.experimental.pallas import tpu as pltpu

EPS = 1e-5
_LANES = 128
_TARGET_MATMUL_ROWS = 512   # rows of the (TH*W, 9*Cp) im2col matmul per tile


def _round_up(v, m):
    return (v + m - 1) // m * m


def _pick_row_tile(h, w):
    """Largest divisor of h whose tile has <= _TARGET_MATMUL_ROWS output rows."""
    best = 1
    for th in range(1, h + 1):
        if h % th == 0 and th * w <= _TARGET_MATMUL_ROWS:
            best = th
    return best


# --------------------------------------------------------------------------
# Kernels
# --------------------------------------------------------------------------
def _fetch_row_tile(xpad_hbm, xbuf, sem, *, th):
    """DMA rows [r*th, r*th + th + 2) of image n (halo included) into VMEM."""
    n = pl.program_id(0)
    r = pl.program_id(1)
    copy = pltpu.make_async_copy(
        xpad_hbm.at[pl.ds(n, 1), pl.ds(r * th, th + 2)], xbuf, sem)
    copy.start()
    copy.wait()


def _im2col(xbuf, *, th, w):
    """(th*w, 9*Cp) patch built from 9 ref-sliced shifted windows (bf16)."""
    taps = [xbuf[0, dy:dy + th, dx:dx + w, :]
            for dy in range(3) for dx in range(3)]
    patch = jnp.concatenate(taps, axis=-1)            # (th, w, 9*Cp)
    return patch.reshape(th * w, patch.shape[-1])


def _stats_kernel(xpad_hbm, w3_ref, w1_ref, stats_ref, xbuf, sem,
                  *, th, w, cpad):
    """Per-tile per-channel [sum, sumsq] of conv3(x), conv1(x), x."""
    _fetch_row_tile(xpad_hbm, xbuf, sem, th=th)

    patch = _im2col(xbuf, th=th, w=w)                                  # bf16
    y3 = jnp.dot(patch, w3_ref[...], preferred_element_type=jnp.float32)
    xc = xbuf[0, 1:1 + th, 1:1 + w, :].reshape(th * w, cpad)           # bf16
    y1 = jnp.dot(xc, w1_ref[...], preferred_element_type=jnp.float32)
    x32 = xc.astype(jnp.float32)

    def sums(a):
        return (jnp.sum(a, axis=0, keepdims=True),
                jnp.sum(a * a, axis=0, keepdims=True))

    s3, q3 = sums(y3)
    s1, q1 = sums(y1)
    s0, q0 = sums(x32)
    pad = jnp.zeros((2, cpad), jnp.float32)
    stats_ref[0, 0] = jnp.concatenate([s3, q3, s1, q1, s0, q0, pad], axis=0)


def _apply_kernel(xpad_hbm, weff_ref, bias_ref, o_ref, xbuf, sem,
                  *, th, w, cpad):
    """Fused (re-parameterized) 3x3 conv + per-channel bias + ReLU."""
    _fetch_row_tile(xpad_hbm, xbuf, sem, th=th)

    patch = _im2col(xbuf, th=th, w=w)                                  # bf16
    y = jnp.dot(patch, weff_ref[...], preferred_element_type=jnp.float32)
    y = jnp.maximum(y + bias_ref[...], 0.0)
    o_ref[0] = y.reshape(th, w, cpad).astype(o_ref.dtype)


# --------------------------------------------------------------------------
# Wrapper
# --------------------------------------------------------------------------
@jax.jit
def repvgg_block(x_nchw, w3_oihw, w1_oihw, gammas, betas):
    """x: (N,C,H,W); w3: (C,C,3,3); w1: (C,C,1,1); gammas/betas: (3,C) rows
    [bn_3, bn_1, bn_0].  Returns (N,C,H,W), same dtype as x."""
    N, C, H, W = x_nchw.shape
    Cp = _round_up(max(C, _LANES), _LANES)      # lane-dense channel padding
    Wp = _round_up(W + 2, 8)                    # halo'd width, sublane aligned
    TH = _pick_row_tile(H, W)
    R = H // TH
    grid = (N, R)

    # ---- layout: NCHW -> NHWC, spatial halo + channel pad, bf16 in HBM ----
    x_nhwc = jnp.transpose(x_nchw, (0, 2, 3, 1))
    xpad = jnp.pad(x_nhwc, ((0, 0), (1, 1), (1, Wp - (W + 1)), (0, Cp - C)))
    xpad = xpad.astype(jnp.bfloat16)

    # ---- weights: OIHW -> (kh, kw, Cin, Cout), channel padded ----
    w3f = jnp.pad(jnp.transpose(w3_oihw, (2, 3, 1, 0)).astype(jnp.float32),
                  ((0, 0), (0, 0), (0, Cp - C), (0, Cp - C)))
    w1f = jnp.pad(jnp.transpose(w1_oihw[:, :, 0, 0], (1, 0)).astype(jnp.float32),
                  ((0, Cp - C), (0, Cp - C)))
    gam = jnp.pad(gammas.astype(jnp.float32), ((0, 0), (0, Cp - C)))
    bet = jnp.pad(betas.astype(jnp.float32), ((0, 0), (0, Cp - C)))
    w3_9 = w3f.reshape(9 * Cp, Cp).astype(jnp.bfloat16)   # im2col-stacked taps

    hbm = pl.BlockSpec(memory_space=pl.ANY)
    scratch = [pltpu.VMEM((1, TH + 2, Wp, Cp), jnp.bfloat16),
               pltpu.SemaphoreType.DMA(())]
    cparams = pltpu.CompilerParams(
        dimension_semantics=("parallel", "parallel"),
        vmem_limit_bytes=48 * 1024 * 1024)      # headroom under v7x's 64 MiB

    # ---- phase 1: global BN batch statistics (per-channel sum / sumsq) ----
    stats = pl.pallas_call(
        functools.partial(_stats_kernel, th=TH, w=W, cpad=Cp),
        out_shape=jax.ShapeDtypeStruct((N, R, 8, Cp), jnp.float32),
        grid=grid,
        in_specs=[hbm,
                  pl.BlockSpec((9 * Cp, Cp), lambda n, r: (0, 0)),
                  pl.BlockSpec((Cp, Cp), lambda n, r: (0, 0))],
        out_specs=pl.BlockSpec((1, 1, 8, Cp), lambda n, r: (n, r, 0, 0)),
        scratch_shapes=scratch,
        compiler_params=cparams,
        cost_estimate=pl.CostEstimate(
            flops=2 * N * H * W * Cp * (9 * Cp + Cp),
            transcendentals=0,
            bytes_accessed=xpad.size * 2 + (w3_9.size + w1f.size) * 2),
    )(xpad, w3_9, w1f.astype(jnp.bfloat16))

    # ---- fold the three BatchNorms into one per-channel affine (f32) ----
    cnt = jnp.float32(N * H * W)
    tot = jnp.sum(stats, axis=(0, 1))                      # (8, Cp)
    m3, m1, m0 = tot[0] / cnt, tot[2] / cnt, tot[4] / cnt
    v3 = jnp.maximum(tot[1] / cnt - m3 * m3, 0.0)          # biased variance
    v1 = jnp.maximum(tot[3] / cnt - m1 * m1, 0.0)
    v0 = jnp.maximum(tot[5] / cnt - m0 * m0, 0.0)
    s3 = gam[0] * jax.lax.rsqrt(v3 + EPS)
    s1 = gam[1] * jax.lax.rsqrt(v1 + EPS)
    s0 = gam[2] * jax.lax.rsqrt(v0 + EPS)
    bias = (bet[0] - s3 * m3) + (bet[1] - s1 * m1) + (bet[2] - s0 * m0)

    # RepVGG-style reparam of the scaled branches into one 3x3 kernel (exact):
    #   s3*conv3(x) + s1*conv1(x) + s0*x == conv3x3(x; W_eff)
    w_eff = w3f * s3[None, None, None, :]
    center = w1f * s1[None, :] + jnp.eye(Cp, dtype=jnp.float32) * s0[None, :]
    w_eff = w_eff.at[1, 1].add(center)
    w_eff9 = w_eff.reshape(9 * Cp, Cp).astype(jnp.bfloat16)
    bias2d = bias.reshape(1, Cp)

    # ---- phase 2: fused conv3x3 + per-channel bias + ReLU ----
    out_nhwc = pl.pallas_call(
        functools.partial(_apply_kernel, th=TH, w=W, cpad=Cp),
        out_shape=jax.ShapeDtypeStruct((N, H, W, Cp), jnp.float32),
        grid=grid,
        in_specs=[hbm,
                  pl.BlockSpec((9 * Cp, Cp), lambda n, r: (0, 0)),
                  pl.BlockSpec((1, Cp), lambda n, r: (0, 0))],
        out_specs=pl.BlockSpec((1, TH, W, Cp), lambda n, r: (n, r, 0, 0)),
        scratch_shapes=scratch,
        compiler_params=cparams,
        cost_estimate=pl.CostEstimate(
            flops=2 * N * H * W * 9 * Cp * Cp,
            transcendentals=0,
            bytes_accessed=xpad.size * 2 + N * H * W * Cp * 4 + w_eff9.size * 2),
    )(xpad, w_eff9, bias2d)

    return jnp.transpose(out_nhwc[..., :C], (0, 3, 1, 2)).astype(x_nchw.dtype)


# --------------------------------------------------------------------------
# Pure-JAX reference mirroring the PyTorch forward (NCHW, full f32 precision)
# --------------------------------------------------------------------------
def reference(x, w3, w1, gammas, betas):
    dn = ("NCHW", "OIHW", "NCHW")
    y3 = jax.lax.conv_general_dilated(x, w3, (1, 1), ((1, 1), (1, 1)),
                                      dimension_numbers=dn,
                                      precision=jax.lax.Precision.HIGHEST)
    y1 = jax.lax.conv_general_dilated(x, w1, (1, 1), ((0, 0), (0, 0)),
                                      dimension_numbers=dn,
                                      precision=jax.lax.Precision.HIGHEST)

    def bn(y, g, b):
        mean = jnp.mean(y, axis=(0, 2, 3), keepdims=True)
        var = jnp.mean((y - mean) ** 2, axis=(0, 2, 3), keepdims=True)
        return (y - mean) * (g.reshape(1, -1, 1, 1) *
                             jax.lax.rsqrt(var + EPS)) + b.reshape(1, -1, 1, 1)

    out = (bn(y3, gammas[0], betas[0]) + bn(y1, gammas[1], betas[1]) +
           bn(x, gammas[2], betas[2]))
    return jnp.maximum(out, 0.0)


if __name__ == "__main__":
    key = jax.random.PRNGKey(0)
    k_x, k_w3, k_w1, k_g, k_b, k_x2 = jax.random.split(key, 6)

    N, C, H, W = 2, 4, 16, 16
    x = jax.random.normal(k_x, (N, C, H, W), dtype=jnp.float32)
    w3 = jax.random.normal(k_w3, (C, C, 3, 3), dtype=jnp.float32) * 0.2
    w1 = jax.random.normal(k_w1, (C, C, 1, 1), dtype=jnp.float32) * 0.2
    # BN affine params for [bn_3, bn_1, bn_0]
    gammas = jax.random.uniform(k_g, (3, C), dtype=jnp.float32,
                                minval=0.5, maxval=1.5)
    betas = jax.random.normal(k_b, (3, C), dtype=jnp.float32) * 0.1

    out = jax.block_until_ready(repvgg_block(x, w3, w1, gammas, betas))
    ref = jax.block_until_ready(reference(x, w3, w1, gammas, betas))
    assert out.shape == (N, C, H, W)
    # bf16 MXU operands with f32 accumulation -> a few 1e-3 of absolute error
    # on O(1) BN-normalized outputs; 3e-2 is a comfortable bound.
    np.testing.assert_allclose(np.asarray(out), np.asarray(ref),
                               rtol=3e-2, atol=3e-2)

    # Second shape exercises a multi-row-tile grid (R > 1, halo DMA with r > 0).
    x2 = jax.random.normal(k_x2, (2, C, 48, 16), dtype=jnp.float32)
    out2 = jax.block_until_ready(repvgg_block(x2, w3, w1, gammas, betas))
    ref2 = jax.block_until_ready(reference(x2, w3, w1, gammas, betas))
    np.testing.assert_allclose(np.asarray(out2), np.asarray(ref2),
                               rtol=3e-2, atol=3e-2)

    print("KERNEL_OK")
</pallas_src>

<mosaic_0001>
module attributes {stable_mosaic.version = 11 : i64} {
  func.func @_apply_kernel(%arg0: i32, %arg1: i32, %arg2: memref<2x18x24x128xbf16, #tpu.memory_space<any>>, %arg3: memref<1152x128xbf16, #tpu.memory_space<vmem>>, %arg4: memref<1x128xf32, #tpu.memory_space<vmem>>, %arg5: memref<1x16x16x128xf32, #tpu.memory_space<vmem>>, %arg6: memref<1x18x24x128xbf16, #tpu.memory_space<vmem>>, %arg7: memref<!tpu.dma_semaphore, #tpu.memory_space<semaphore_mem>>) attributes {dimension_semantics = [#tpu.dimension_semantics<parallel>, #tpu.dimension_semantics<parallel>], iteration_bounds = array<i64: 2, 1>, scalar_prefetch = 0 : i64, scratch_operands = 2 : i64, tpu.core_type = #tpu.core_type<tc>, window_params = [{}, {pipeline_mode = #tpu.pipeline_mode<synchronous>, transform_indices = @transform_1, window_bounds = array<i64: 1152, 128>}, {pipeline_mode = #tpu.pipeline_mode<synchronous>, transform_indices = @transform_2, window_bounds = array<i64: 1, 128>}, {transform_indices = @transform_3, window_bounds = array<i64: 1, 16, 16, 128>}]} {
    %c16_i32 = arith.constant 16 : i32
    %0 = arith.muli %arg1, %c16_i32 : i32
    %c0_i32 = arith.constant 0 : i32
    %c0_i32_0 = arith.constant 0 : i32
    %1 = tpu.memref_slice %arg2[%arg0, %0, %c0_i32, %c0_i32_0] : memref<2x18x24x128xbf16, #tpu.memory_space<any>> -> memref<1x18x24x128xbf16, #tpu.memory_space<any>>
    tpu.enqueue_dma source(%1 : memref<1x18x24x128xbf16, #tpu.memory_space<any>>) target(%arg6 : memref<1x18x24x128xbf16, #tpu.memory_space<vmem>>) target_semaphore(%arg7 : memref<!tpu.dma_semaphore, #tpu.memory_space<semaphore_mem>>)
    %c0_i32_1 = arith.constant 0 : i32
    %c0_i32_2 = arith.constant 0 : i32
    %2 = tpu.memref_slice %arg2[%arg0, %0, %c0_i32_1, %c0_i32_2] : memref<2x18x24x128xbf16, #tpu.memory_space<any>> -> memref<1x18x24x128xbf16, #tpu.memory_space<any>>
    tpu.wait_dma2 semaphore(%arg7 : memref<!tpu.dma_semaphore, #tpu.memory_space<semaphore_mem>>) src(%2 : memref<1x18x24x128xbf16, #tpu.memory_space<any>>) dst(%arg6 : memref<1x18x24x128xbf16, #tpu.memory_space<vmem>>)
    %c0 = arith.constant 0 : index
    %c0_3 = arith.constant 0 : index
    %c0_4 = arith.constant 0 : index
    %c0_5 = arith.constant 0 : index
    %3 = vector.load %arg6[%c0, %c0_3, %c0_4, %c0_5] : memref<1x18x24x128xbf16, #tpu.memory_space<vmem>>, vector<1x16x16x128xbf16>
    %4 = vector.shape_cast %3 : vector<1x16x16x128xbf16> to vector<16x16x128xbf16>
    %c0_6 = arith.constant 0 : index
    %c0_7 = arith.constant 0 : index
    %c1 = arith.constant 1 : index
    %c0_8 = arith.constant 0 : index
    %5 = vector.load %arg6[%c0_6, %c0_7, %c1, %c0_8] : memref<1x18x24x128xbf16, #tpu.memory_space<vmem>>, vector<1x16x16x128xbf16>
    %6 = vector.shape_cast %5 : vector<1x16x16x128xbf16> to vector<16x16x128xbf16>
    %c0_9 = arith.constant 0 : index
    %c0_10 = arith.constant 0 : index
    %c2 = arith.constant 2 : index
    %c0_11 = arith.constant 0 : index
    %7 = vector.load %arg6[%c0_9, %c0_10, %c2, %c0_11] : memref<1x18x24x128xbf16, #tpu.memory_space<vmem>>, vector<1x16x16x128xbf16>
    %8 = vector.shape_cast %7 : vector<1x16x16x128xbf16> to vector<16x16x128xbf16>
    %c0_12 = arith.constant 0 : index
    %c1_13 = arith.constant 1 : index
    %c0_14 = arith.constant 0 : index
    %c0_15 = arith.constant 0 : index
    %9 = vector.load %arg6[%c0_12, %c1_13, %c0_14, %c0_15] : memref<1x18x24x128xbf16, #tpu.memory_space<vmem>>, vector<1x16x16x128xbf16>
    %10 = vector.shape_cast %9 : vector<1x16x16x128xbf16> to vector<16x16x128xbf16>
    %c0_16 = arith.constant 0 : index
    %c1_17 = arith.constant 1 : index
    %c1_18 = arith.constant 1 : index
    %c0_19 = arith.constant 0 : index
    %11 = vector.load %arg6[%c0_16, %c1_17, %c1_18, %c0_19] : memref<1x18x24x128xbf16, #tpu.memory_space<vmem>>, vector<1x16x16x128xbf16>
    %12 = vector.shape_cast %11 : vector<1x16x16x128xbf16> to vector<16x16x128xbf16>
    %c0_20 = arith.constant 0 : index
    %c1_21 = arith.constant 1 : index
    %c2_22 = arith.constant 2 : index
    %c0_23 = arith.constant 0 : index
    %13 = vector.load %arg6[%c0_20, %c1_21, %c2_22, %c0_23] : memref<1x18x24x128xbf16, #tpu.memory_space<vmem>>, vector<1x16x16x128xbf16>
    %14 = vector.shape_cast %13 : vector<1x16x16x128xbf16> to vector<16x16x128xbf16>
    %c0_24 = arith.constant 0 : index
    %c2_25 = arith.constant 2 : index
    %c0_26 = arith.constant 0 : index
    %c0_27 = arith.constant 0 : index
    %15 = vector.load %arg6[%c0_24, %c2_25, %c0_26, %c0_27] : memref<1x18x24x128xbf16, #tpu.memory_space<vmem>>, vector<1x16x16x128xbf16>
    %16 = vector.shape_cast %15 : vector<1x16x16x128xbf16> to vector<16x16x128xbf16>
    %c0_28 = arith.constant 0 : index
    %c2_29 = arith.constant 2 : index
    %c1_30 = arith.constant 1 : index
    %c0_31 = arith.constant 0 : index
    %17 = vector.load %arg6[%c0_28, %c2_29, %c1_30, %c0_31] : memref<1x18x24x128xbf16, #tpu.memory_space<vmem>>, vector<1x16x16x128xbf16>
    %18 = vector.shape_cast %17 : vector<1x16x16x128xbf16> to vector<16x16x128xbf16>
    %c0_32 = arith.constant 0 : index
    %c2_33 = arith.constant 2 : index
    %c2_34 = arith.constant 2 : index
    %c0_35 = arith.constant 0 : index
    %19 = vector.load %arg6[%c0_32, %c2_33, %c2_34, %c0_35] : memref<1x18x24x128xbf16, #tpu.memory_space<vmem>>, vector<1x16x16x128xbf16>
    %20 = vector.shape_cast %19 : vector<1x16x16x128xbf16> to vector<16x16x128xbf16>
    %21 = tpu.concatenate %4, %6, %8, %10, %12, %14, %16, %18, %20 in 2 : vector<16x16x128xbf16>, vector<16x16x128xbf16>, vector<16x16x128xbf16>, vector<16x16x128xbf16>, vector<16x16x128xbf16>, vector<16x16x128xbf16>, vector<16x16x128xbf16>, vector<16x16x128xbf16>, vector<16x16x128xbf16> -> vector<16x16x1152xbf16>
    %22 = vector.shape_cast %21 : vector<16x16x1152xbf16> to vector<256x1152xbf16>
    %c0_36 = arith.constant 0 : index
    %c0_37 = arith.constant 0 : index
    %23 = vector.load %arg3[%c0_36, %c0_37] : memref<1152x128xbf16, #tpu.memory_space<vmem>>, vector<1152x128xbf16>
    %cst = arith.constant dense<0.000000e+00> : vector<256x128xf32>
    %24 = tpu.matmul %22, %23, %cst {dimension_numbers = #tpu.dot_dimension_numbers<[1], [0], [0], [1], [0, 0, 1, 1], [], []>} : vector<256x1152xbf16>, vector<1152x128xbf16>, vector<256x128xf32> -> vector<256x128xf32>
    %c0_38 = arith.constant 0 : index
    %c0_39 = arith.constant 0 : index
    %25 = vector.load %arg4[%c0_38, %c0_39] : memref<1x128xf32, #tpu.memory_space<vmem>>, vector<1x128xf32>
    %26 = vector.broadcast %25 : vector<1x128xf32> to vector<256x128xf32>
    %27 = arith.addf %24, %26 : vector<256x128xf32>
    %cst_40 = arith.constant 0.000000e+00 : f32
    %28 = vector.broadcast %cst_40 : f32 to vector<256x128xf32>
    %29 = arith.maximumf %27, %28 : vector<256x128xf32>
    %30 = vector.shape_cast %29 : vector<256x128xf32> to vector<16x16x128xf32>
    %c0_41 = arith.constant 0 : index
    %c0_42 = arith.constant 0 : index
    %c0_43 = arith.constant 0 : index
    %c0_44 = arith.constant 0 : index
    %31 = vector.load %arg5[%c0_41, %c0_42, %c0_43, %c0_44] : memref<1x16x16x128xf32, #tpu.memory_space<vmem>>, vector<1x16x16x128xf32>
    %32 = vector.shape_cast %31 : vector<1x16x16x128xf32> to vector<16x16x128xf32>
    %33 = vector.shape_cast %30 : vector<16x16x128xf32> to vector<1x16x16x128xf32>
    tpu.vector_store %arg5[%c0_41, %c0_42, %c0_43, %c0_44], %33 {strides = array<i32>} : memref<1x16x16x128xf32, #tpu.memory_space<vmem>>, vector<1x16x16x128xf32>,
    return
  }
  func.func @transform_1(%arg0: i32, %arg1: i32) -> (i32, i32) {
    %c0_i32 = arith.constant 0 : i32
    %c0_i32_0 = arith.constant 0 : i32
    %c0_i32_1 = arith.constant 0 : i32
    return %c0_i32, %c0_i32_0 : i32, i32
  }
  func.func @transform_2(%arg0: i32, %arg1: i32) -> (i32, i32) {
    %c0_i32 = arith.constant 0 : i32
    %c0_i32_0 = arith.constant 0 : i32
    %c0_i32_1 = arith.constant 0 : i32
    return %c0_i32, %c0_i32_0 : i32, i32
  }
  func.func @transform_3(%arg0: i32, %arg1: i32) -> (i32, i32, i32, i32) {
    %c0_i32 = arith.constant 0 : i32
    %c0_i32_0 = arith.constant 0 : i32
    %c0_i32_1 = arith.constant 0 : i32
    return %arg0, %arg1, %c0_i32, %c0_i32_0 : i32, i32, i32, i32
  }
}

module attributes {stable_mosaic.version = 11 : i64} {
  func.func @_stats_kernel(%arg0: i32, %arg1: i32, %arg2: memref<2x18x24x128xbf16, #tpu.memory_space<any>>, %arg3: memref<1152x128xbf16, #tpu.memory_space<vmem>>, %arg4: memref<128x128xbf16, #tpu.memory_space<vmem>>, %arg5: memref<1x1x8x128xf32, #tpu.memory_space<vmem>>, %arg6: memref<1x18x24x128xbf16, #tpu.memory_space<vmem>>, %arg7: memref<!tpu.dma_semaphore, #tpu.memory_space<semaphore_mem>>) attributes {dimension_semantics = [#tpu.dimension_semantics<parallel>, #tpu.dimension_semantics<parallel>], iteration_bounds = array<i64: 2, 1>, scalar_prefetch = 0 : i64, scratch_operands = 2 : i64, tpu.core_type = #tpu.core_type<tc>, window_params = [{}, {pipeline_mode = #tpu.pipeline_mode<synchronous>, transform_indices = @transform_1, window_bounds = array<i64: 1152, 128>}, {pipeline_mode = #tpu.pipeline_mode<synchronous>, transform_indices = @transform_2, window_bounds = array<i64: 128, 128>}, {transform_indices = @transform_3, window_bounds = array<i64: 1, 1, 8, 128>}]} {
    %c16_i32 = arith.constant 16 : i32
    %0 = arith.muli %arg1, %c16_i32 : i32
    %c0_i32 = arith.constant 0 : i32
    %c0_i32_0 = arith.constant 0 : i32
    %1 = tpu.memref_slice %arg2[%arg0, %0, %c0_i32, %c0_i32_0] : memref<2x18x24x128xbf16, #tpu.memory_space<any>> -> memref<1x18x24x128xbf16, #tpu.memory_space<any>>
    tpu.enqueue_dma source(%1 : memref<1x18x24x128xbf16, #tpu.memory_space<any>>) target(%arg6 : memref<1x18x24x128xbf16, #tpu.memory_space<vmem>>) target_semaphore(%arg7 : memref<!tpu.dma_semaphore, #tpu.memory_space<semaphore_mem>>)
    %c0_i32_1 = arith.constant 0 : i32
    %c0_i32_2 = arith.constant 0 : i32
    %2 = tpu.memref_slice %arg2[%arg0, %0, %c0_i32_1, %c0_i32_2] : memref<2x18x24x128xbf16, #tpu.memory_space<any>> -> memref<1x18x24x128xbf16, #tpu.memory_space<any>>
    tpu.wait_dma2 semaphore(%arg7 : memref<!tpu.dma_semaphore, #tpu.memory_space<semaphore_mem>>) src(%2 : memref<1x18x24x128xbf16, #tpu.memory_space<any>>) dst(%arg6 : memref<1x18x24x128xbf16, #tpu.memory_space<vmem>>)
    %c0 = arith.constant 0 : index
    %c0_3 = arith.constant 0 : index
    %c0_4 = arith.constant 0 : index
    %c0_5 = arith.constant 0 : index
    %3 = vector.load %arg6[%c0, %c0_3, %c0_4, %c0_5] : memref<1x18x24x128xbf16, #tpu.memory_space<vmem>>, vector<1x16x16x128xbf16>
    %4 = vector.shape_cast %3 : vector<1x16x16x128xbf16> to vector<16x16x128xbf16>
    %c0_6 = arith.constant 0 : index
    %c0_7 = arith.constant 0 : index
    %c1 = arith.constant 1 : index
    %c0_8 = arith.constant 0 : index
    %5 = vector.load %arg6[%c0_6, %c0_7, %c1, %c0_8] : memref<1x18x24x128xbf16, #tpu.memory_space<vmem>>, vector<1x16x16x128xbf16>
    %6 = vector.shape_cast %5 : vector<1x16x16x128xbf16> to vector<16x16x128xbf16>
    %c0_9 = arith.constant 0 : index
    %c0_10 = arith.constant 0 : index
    %c2 = arith.constant 2 : index
    %c0_11 = arith.constant 0 : index
    %7 = vector.load %arg6[%c0_9, %c0_10, %c2, %c0_11] : memref<1x18x24x128xbf16, #tpu.memory_space<vmem>>, vector<1x16x16x128xbf16>
    %8 = vector.shape_cast %7 : vector<1x16x16x128xbf16> to vector<16x16x128xbf16>
    %c0_12 = arith.constant 0 : index
    %c1_13 = arith.constant 1 : index
    %c0_14 = arith.constant 0 : index
    %c0_15 = arith.constant 0 : index
    %9 = vector.load %arg6[%c0_12, %c1_13, %c0_14, %c0_15] : memref<1x18x24x128xbf16, #tpu.memory_space<vmem>>, vector<1x16x16x128xbf16>
    %10 = vector.shape_cast %9 : vector<1x16x16x128xbf16> to vector<16x16x128xbf16>
    %c0_16 = arith.constant 0 : index
    %c1_17 = arith.constant 1 : index
    %c1_18 = arith.constant 1 : index
    %c0_19 = arith.constant 0 : index
    %11 = vector.load %arg6[%c0_16, %c1_17, %c1_18, %c0_19] : memref<1x18x24x128xbf16, #tpu.memory_space<vmem>>, vector<1x16x16x128xbf16>
    %12 = vector.shape_cast %11 : vector<1x16x16x128xbf16> to vector<16x16x128xbf16>
    %c0_20 = arith.constant 0 : index
    %c1_21 = arith.constant 1 : index
    %c2_22 = arith.constant 2 : index
    %c0_23 = arith.constant 0 : index
    %13 = vector.load %arg6[%c0_20, %c1_21, %c2_22, %c0_23] : memref<1x18x24x128xbf16, #tpu.memory_space<vmem>>, vector<1x16x16x128xbf16>
    %14 = vector.shape_cast %13 : vector<1x16x16x128xbf16> to vector<16x16x128xbf16>
    %c0_24 = arith.constant 0 : index
    %c2_25 = arith.constant 2 : index
    %c0_26 = arith.constant 0 : index
    %c0_27 = arith.constant 0 : index
    %15 = vector.load %arg6[%c0_24, %c2_25, %c0_26, %c0_27] : memref<1x18x24x128xbf16, #tpu.memory_space<vmem>>, vector<1x16x16x128xbf16>
    %16 = vector.shape_cast %15 : vector<1x16x16x128xbf16> to vector<16x16x128xbf16>
    %c0_28 = arith.constant 0 : index
    %c2_29 = arith.constant 2 : index
    %c1_30 = arith.constant 1 : index
    %c0_31 = arith.constant 0 : index
    %17 = vector.load %arg6[%c0_28, %c2_29, %c1_30, %c0_31] : memref<1x18x24x128xbf16, #tpu.memory_space<vmem>>, vector<1x16x16x128xbf16>
    %18 = vector.shape_cast %17 : vector<1x16x16x128xbf16> to vector<16x16x128xbf16>
    %c0_32 = arith.constant 0 : index
    %c2_33 = arith.constant 2 : index
    %c2_34 = arith.constant 2 : index
    %c0_35 = arith.constant 0 : index
    %19 = vector.load %arg6[%c0_32, %c2_33, %c2_34, %c0_35] : memref<1x18x24x128xbf16, #tpu.memory_space<vmem>>, vector<1x16x16x128xbf16>
    %20 = vector.shape_cast %19 : vector<1x16x16x128xbf16> to vector<16x16x128xbf16>
    %21 = tpu.concatenate %4, %6, %8, %10, %12, %14, %16, %18, %20 in 2 : vector<16x16x128xbf16>, vector<16x16x128xbf16>, vector<16x16x128xbf16>, vector<16x16x128xbf16>, vector<16x16x128xbf16>, vector<16x16x128xbf16>, vector<16x16x128xbf16>, vector<16x16x128xbf16>, vector<16x16x128xbf16> -> vector<16x16x1152xbf16>
    %22 = vector.shape_cast %21 : vector<16x16x1152xbf16> to vector<256x1152xbf16>
    %c0_36 = arith.constant 0 : index
    %c0_37 = arith.constant 0 : index
    %23 = vector.load %arg3[%c0_36, %c0_37] : memref<1152x128xbf16, #tpu.memory_space<vmem>>, vector<1152x128xbf16>
    %cst = arith.constant dense<0.000000e+00> : vector<256x128xf32>
    %24 = tpu.matmul %22, %23, %cst {dimension_numbers = #tpu.dot_dimension_numbers<[1], [0], [0], [1], [0, 0, 1, 1], [], []>} : vector<256x1152xbf16>, vector<1152x128xbf16>, vector<256x128xf32> -> vector<256x128xf32>
    %c0_38 = arith.constant 0 : index
    %c1_39 = arith.constant 1 : index
    %c1_40 = arith.constant 1 : index
    %c0_41 = arith.constant 0 : index
    %25 = vector.load %arg6[%c0_38, %c1_39, %c1_40, %c0_41] : memref<1x18x24x128xbf16, #tpu.memory_space<vmem>>, vector<1x16x16x128xbf16>
    %26 = vector.shape_cast %25 : vector<1x16x16x128xbf16> to vector<16x16x128xbf16>
    %27 = vector.shape_cast %26 : vector<16x16x128xbf16> to vector<256x128xbf16>
    %c0_42 = arith.constant 0 : index
    %c0_43 = arith.constant 0 : index
    %28 = vector.load %arg4[%c0_42, %c0_43] : memref<128x128xbf16, #tpu.memory_space<vmem>>, vector<128x128xbf16>
    %cst_44 = arith.constant dense<0.000000e+00> : vector<256x128xf32>
    %29 = tpu.matmul %27, %28, %cst_44 {dimension_numbers = #tpu.dot_dimension_numbers<[1], [0], [0], [1], [0, 0, 1, 1], [], []>} : vector<256x128xbf16>, vector<128x128xbf16>, vector<256x128xf32> -> vector<256x128xf32>
    %30 = arith.extf %27 : vector<256x128xbf16> to vector<256x128xf32>
    %cst_45 = arith.constant dense<0.000000e+00> : vector<128xf32>
    %31 = vector.multi_reduction <add>, %24, %cst_45 [0] : vector<256x128xf32> to vector<128xf32>
    %32 = vector.shape_cast %31 : vector<128xf32> to vector<1x128xf32>
    %33 = arith.mulf %24, %24 : vector<256x128xf32>
    %cst_46 = arith.constant dense<0.000000e+00> : vector<128xf32>
    %34 = vector.multi_reduction <add>, %33, %cst_46 [0] : vector<256x128xf32> to vector<128xf32>
    %35 = vector.shape_cast %34 : vector<128xf32> to vector<1x128xf32>
    %cst_47 = arith.constant dense<0.000000e+00> : vector<128xf32>
    %36 = vector.multi_reduction <add>, %29, %cst_47 [0] : vector<256x128xf32> to vector<128xf32>
    %37 = vector.shape_cast %36 : vector<128xf32> to vector<1x128xf32>
    %38 = arith.mulf %29, %29 : vector<256x128xf32>
    %cst_48 = arith.constant dense<0.000000e+00> : vector<128xf32>
    %39 = vector.multi_reduction <add>, %38, %cst_48 [0] : vector<256x128xf32> to vector<128xf32>
    %40 = vector.shape_cast %39 : vector<128xf32> to vector<1x128xf32>
    %cst_49 = arith.constant dense<0.000000e+00> : vector<128xf32>
    %41 = vector.multi_reduction <add>, %30, %cst_49 [0] : vector<256x128xf32> to vector<128xf32>
    %42 = vector.shape_cast %41 : vector<128xf32> to vector<1x128xf32>
    %43 = arith.mulf %30, %30 : vector<256x128xf32>
    %cst_50 = arith.constant dense<0.000000e+00> : vector<128xf32>
    %44 = vector.multi_reduction <add>, %43, %cst_50 [0] : vector<256x128xf32> to vector<128xf32>
    %45 = vector.shape_cast %44 : vector<128xf32> to vector<1x128xf32>
    %cst_51 = arith.constant 0.000000e+00 : f32
    %46 = vector.broadcast %cst_51 : f32 to vector<2x128xf32>
    %47 = tpu.concatenate %32, %35, %37, %40, %42, %45, %46 in 0 : vector<1x128xf32>, vector<1x128xf32>, vector<1x128xf32>, vector<1x128xf32>, vector<1x128xf32>, vector<1x128xf32>, vector<2x128xf32> -> vector<8x128xf32>
    %c0_52 = arith.constant 0 : index
    %c0_53 = arith.constant 0 : index
    %c0_54 = arith.constant 0 : index
    %c0_55 = arith.constant 0 : index
    %48 = vector.load %arg5[%c0_52, %c0_53, %c0_54, %c0_55] : memref<1x1x8x128xf32, #tpu.memory_space<vmem>>, vector<1x1x8x128xf32>
    %49 = vector.shape_cast %48 : vector<1x1x8x128xf32> to vector<8x128xf32>
    %50 = vector.shape_cast %47 : vector<8x128xf32> to vector<1x1x8x128xf32>
    tpu.vector_store %arg5[%c0_52, %c0_53, %c0_54, %c0_55], %50 {strides = array<i32>} : memref<1x1x8x128xf32, #tpu.memory_space<vmem>>, vector<1x1x8x128xf32>,
    return
  }
  func.func @transform_1(%arg0: i32, %arg1: i32) -> (i32, i32) {
    %c0_i32 = arith.constant 0 : i32
    %c0_i32_0 = arith.constant 0 : i32
    %c0_i32_1 = arith.constant 0 : i32
    return %c0_i32, %c0_i32_0 : i32, i32
  }
  func.func @transform_2(%arg0: i32, %arg1: i32) -> (i32, i32) {
    %c0_i32 = arith.constant 0 : i32
    %c0_i32_0 = arith.constant 0 : i32
    %c0_i32_1 = arith.constant 0 : i32
    return %c0_i32, %c0_i32_0 : i32, i32
  }
  func.func @transform_3(%arg0: i32, %arg1: i32) -> (i32, i32, i32, i32) {
    %c0_i32 = arith.constant 0 : i32
    %c0_i32_0 = arith.constant 0 : i32
    %c0_i32_1 = arith.constant 0 : i32
    return %arg0, %arg1, %c0_i32, %c0_i32_0 : i32, i32, i32, i32
  }
}

</mosaic_0001>

<llo_original>
// kernel: repvgg_block.2
$region0: #{repvgg_block.2}
  #allocation0 [shape = 'u32[]', space=smem, size = 0x4, offset = 0x4, fixed_abs, tag = 'smem constant byte address 0x4 - core index']
  #allocation1 [shape = 'u32[72,128]{1,0:T(1,128)}', space=vmem, size = 0x9000, scoped, tag = 'internal scratch']
  #allocation2 [shape = 'bf16[1,18,24,128]{3,2,1,0:T(8,128)(2,1)}', space=vmem, size = 0x1b000, scoped, tag = 'scratch operand']
  #allocation3 [shape = 's32[1]{0}', space=sflag, size = 0x4, scoped, tag = 'scratch operand']
  #allocation4 [shape = 's32[]', space=sflag, size = 0x4, offset = 0, fixed_abs, tag = 'sflag constant byte address 0x0 - dummy sync flag']
  %s0 = inlined_call_operand.vmem [shape: bf16[2,18,24,128], index: 0, kind: input, shape index: {}]
  %s1 = inlined_call_operand.vmem [shape: bf16[1152,128], index: 1, kind: input, shape index: {}]
  %s2 = inlined_call_operand.vmem [shape: bf16[128,128], index: 2, kind: input, shape index: {}]
  %s3 = inlined_call_operand.vmem [shape: f32[2,1,8,128], index: 3, kind: output, shape index: {}]
  %s4 = sld [smem:[#allocation0]]
  $region60: #{repvgg_block.2} parent=0
    _
  %s6 = ssub.s32 1, %s4
  %s7 = scalar_select 0, %s6, %s4
  loop: start=0, step=1, limit=4
  $region2: #{repvgg_block.2} parent=0 // loop_pre_header
    _
  $region3: #{repvgg_block.2} parent=0 // loop_header
    %s9 = sphi 0, %s13
    %p10 = scmp.ge.s32.totalorder %s9, 4
    %s16 = sphi 0, %s28
    %s17 = sphi 0, %s24
    %s18 = sphi 0, %s16
    %s19 = sphi 0, %s17
    %s20 = sphi 0, %s18
    %s21 = sphi 0, %s19
    %s29 = sphi 0, %s29
    %s31 = sphi 0, %s29
    %s32 = sphi 0, %s31
    %s46 = sphi 0, %s32
    %s50 = sphi 0, %s50
    %s52 = sphi 0, %s50
    %s53 = sphi 0, %s52
    %s67 = sphi 0, %s53
    %s75 = sphi 0, %s77
    %s78 = sphi 0, %s75
    %s79 = sphi 0, %s78
    %s95 = sphi 0, %s79
  $region4: #{repvgg_block.2} parent=0 // loop_header_branch
    %12 = sbr.rel (%p10) target = $region8
  $region5: #{repvgg_block.2} parent=0 // loop_body
    %s14 = ssub.s32 %s9, 1
    %s15 = ssub.s32 %s9, 2
    %s22 = sadd.s32 1, %s17
    %p23 = scmp.ge.s32.totalorder %s22, 1
    %s24 = scalar_select %p23, 0, %s22
    %s25 = sadd.s32 1, %s16
    %s26 = scalar_select %p23, %s25, %s16
    %p27 = scmp.ge.s32.totalorder %s26, 2
    %s28 = scalar_select %p27, 0, %s26
    %s30 = sadd.s32 %s29, 1
    %p33 = scmp.eq.s32.totalorder %s9, 1
    %p34 = scmp.ne.s32.totalorder %s29, %s31
    %p35 = scmp.eq.s32.totalorder %s9, 0
    %p36 = por %p34, %p35
    %p37 = scmp.ne.s32.totalorder %s29, %s31
    %p38 = scmp.eq.s32.totalorder %s14, 1
    %p39 = por %p37, %p38
    %p40 = scmp.ne.s32.totalorder %s31, %s32
    %p41 = scmp.eq.s32.totalorder %s14, 0
    %p42 = por %p40, %p41
    %p43 = scmp.ne.s32.totalorder %s31, %s32
    %p44 = scmp.eq.s32.totalorder %s15, 1
    %p45 = por %p43, %p44
    %p47 = scmp.ne.s32.totalorder %s32, %s46
    %p48 = scmp.eq.s32.totalorder %s15, 0
    %p49 = por %p47, %p48
    %s51 = sadd.s32 %s50, 1
    %p54 = scmp.eq.s32.totalorder %s9, 1
    %p55 = scmp.ne.s32.totalorder %s50, %s52
    %p56 = scmp.eq.s32.totalorder %s9, 0
    %p57 = por %p55, %p56
    %p58 = scmp.ne.s32.totalorder %s50, %s52
    %p59 = scmp.eq.s32.totalorder %s14, 1
    %p60 = por %p58, %p59
    %p61 = scmp.ne.s32.totalorder %s52, %s53
    %p62 = scmp.eq.s32.totalorder %s14, 0
    %p63 = por %p61, %p62
    %p64 = scmp.ne.s32.totalorder %s52, %s53
    %p65 = scmp.eq.s32.totalorder %s15, 1
    %p66 = por %p64, %p65
    %p68 = scmp.ne.s32.totalorder %s53, %s67
    %p69 = scmp.eq.s32.totalorder %s15, 0
    %p70 = por %p68, %p69
    %s71 = ssub.s32 %s16, %s28
    %s72 = ssub.s32 %s17, %s24
    %s73 = sor.u32 %s71, %s72
    %p74 = scmp.eq.s32.totalorder %s73, 0
    %s76 = sadd.s32 %s75, 1
    %s77 = scalar_select %p74, %s75, %s76
    %p80 = pneg %p74
    %p81 = scmp.eq.s32.totalorder %s9, 1
    %p82 = por %p80, %p81
    %p83 = scmp.ne.s32.totalorder %s75, %s78
    %p84 = scmp.eq.s32.totalorder %s9, 0
    %p85 = por %p83, %p84
    %p86 = scmp.ne.s32.totalorder %s75, %s78
    %p87 = scmp.eq.s32.totalorder %s14, 1
    %p88 = por %p86, %p87
    %p89 = scmp.ne.s32.totalorder %s78, %s79
    %p90 = scmp.eq.s32.totalorder %s14, 0
    %p91 = por %p89, %p90
    %p92 = scmp.ne.s32.totalorder %s78, %s79
    %p93 = scmp.eq.s32.totalorder %s15, 1
    %p94 = por %p92, %p93
    %p96 = scmp.ne.s32.totalorder %s79, %s95
    %p97 = scmp.eq.s32.totalorder %s15, 0
    %p98 = por %p96, %p97
    %p99 = scmp.le.s32.totalorder 1, %s9
    %p100 = scmp.lt.s32.totalorder %s9, 3
    %p101 = pnand %p99, %p100
    %p102 = pneg %p101
    // Predicated region
    $region9: #{repvgg_block.2} parent=5 // pred_check
      _
    $region10: #{repvgg_block.2} parent=5 // pred_check_branch
      %104 = sbr.rel (%p101) target = $region12
    $region11: #{repvgg_block.2} parent=5 // pred_region
      %s105 = ssub.s32 %s9, 1
      // Predicated region
      $region13: #{repvgg_block.2} parent=11 // pred_check
        %p106 = pneg %p42
      $region14: #{repvgg_block.2} parent=11 // pred_check_branch
        %108 = sbr.rel (%p106) target = $region16
      $region15: #{repvgg_block.2} parent=11 // pred_region
        _
      $region16: #{repvgg_block.2} parent=11 // pred_fallthru
        _
      // Predicated region
      $region17: #{repvgg_block.2} parent=11 // pred_check
        %p109 = pneg %p63
      $region18: #{repvgg_block.2} parent=11 // pred_check_branch
        %111 = sbr.rel (%p109) target = $region20
      $region19: #{repvgg_block.2} parent=11 // pred_region
        _
      $region20: #{repvgg_block.2} parent=11 // pred_fallthru
        _
    $region12: #{repvgg_block.2} parent=5 // pred_fallthru
      _
    %p112 = scmp.lt.s32.totalorder %s9, 2
    // Predicated region
    $region21: #{repvgg_block.2} parent=5 // pred_check
      %p113 = pneg %p112
    $region22: #{repvgg_block.2} parent=5 // pred_check_branch
      %115 = sbr.rel (%p113) target = $region24
    $region23: #{repvgg_block.2} parent=5 // pred_region
      _
    $region24: #{repvgg_block.2} parent=5 // pred_fallthru
      _
    %p116 = scmp.le.s32.totalorder 1, %s9
    %p117 = scmp.lt.s32.totalorder %s9, 3
    %p118 = pnand %p116, %p117
    %p119 = pneg %p118
    // Predicated region
    $region25: #{repvgg_block.2} parent=5 // pred_check
      _
    $region26: #{repvgg_block.2} parent=5 // pred_check_branch
      %121 = sbr.rel (%p118) target = $region28
    $region27: #{repvgg_block.2} parent=5 // pred_region
      %s122 = ssub.s32 %s9, 1
      %p123 = pneg %p42
      %p124 = pneg %p39
      %p125 = pneg %p63
      %p126 = pneg %p60
      %p127 = pneg %p91
      %p128 = pneg %p88
      %p129 = scmp.lt.s32.totalorder %s18, 1
      %s130 = scalar_select %p129, %s18, 1
      %p131 = scmp.lt.s32.totalorder %s19, 0
      %s132 = scalar_select %p131, %s19, 0
      %s133 = sadd.s32 %s132, %s130
      %s134 = smul.addr %s133, 8
      %s135 = scalar_lea.vmem %s3, %s134
      %p136 = scmp.lt.s32.totalorder %s18, 1
      %s137 = scalar_select %p136, %s18, 1
      %p138 = scmp.lt.s32.totalorder %s19, 0
      %s139 = scalar_select %p138, %s19, 0
      %s140 = sadd.s32 %s139, %s137
      %s141 = smul.addr %s140, 8
      %s142 = scalar_lea.vmem %s3, %s141
      %s143 = smul.u32 %s19, 16
      %s144 = smul.u32 %s143, 3
      %s145 = smul.u32 %s18, 54
      %s146 = sadd.s32 %s144, %s145
      %s147 = smul.addr %s146, 4
      %s148 = scalar_lea.vmem %s0, %s147
      // Predicated region
      $region29: #{repvgg_block.2} parent=27 // pred_check
        _
      $region30: #{repvgg_block.2} parent=27 // pred_check_branch
        %150 = sbr.rel (0) target = $region32
      $region31: #{repvgg_block.2} parent=27 // pred_region
        loop: start=0, step=1, limit=1
        $region33: #{repvgg_block.2} parent=31 // loop_pre_header
          _
        $region34: #{repvgg_block.2} parent=31 // loop_header
          %s152 = sphi 0, %s156
          %p153 = scmp.ge.s32.totalorder %s152, 1
          %s157 = sphi %s148, %s148
          %s158 = sphi [#allocation2], [#allocation2]
        $region35: #{repvgg_block.2} parent=31 // loop_header_branch
          %155 = sbr.rel (%p153) target = $region39
        $region36: #{repvgg_block.2} parent=31 // loop_body
          %v159 = vld [vmem:[%s157] sm:$0xff]
          %160 = vst [vmem:[%s158] sm:$0xff] %v159
          %v161 = vld [vmem:[%s157 + $0x8] sm:$0xff]
          %162 = vst [vmem:[%s158 + $0x8] sm:$0xff] %v161
          %v163 = vld [vmem:[%s157 + $0x10] sm:$0xff]
          %164 = vst [vmem:[%s158 + $0x10] sm:$0xff] %v163
          %v165 = vld [vmem:[%s157 + $0x18] sm:$0xff]
          %166 = vst [vmem:[%s158 + $0x18] sm:$0xff] %v165
          %v167 = vld [vmem:[%s157 + $0x20] sm:$0xff]
          %168 = vst [vmem:[%s158 + $0x20] sm:$0xff] %v167
          %v169 = vld [vmem:[%s157 + $0x28] sm:$0xff]
          %170 = vst [vmem:[%s158 + $0x28] sm:$0xff] %v169
          %v171 = vld [vmem:[%s157 + $0x30] sm:$0xff]
          %172 = vst [vmem:[%s158 + $0x30] sm:$0xff] %v171
          %v173 = vld [vmem:[%s157 + $0x38] sm:$0xff]
          %174 = vst [vmem:[%s158 + $0x38] sm:$0xff] %v173
          %v175 = vld [vmem:[%s157 + $0x40] sm:$0xff]
          %176 = vst [vmem:[%s158 + $0x40] sm:$0xff] %v175
          %v177 = vld [vmem:[%s157 + $0x48] sm:$0xff]
          %178 = vst [vmem:[%s158 + $0x48] sm:$0xff] %v177
          %v179 = vld [vmem:[%s157 + $0x50] sm:$0xff]
          %180 = vst [vmem:[%s158 + $0x50] sm:$0xff] %v179
          %v181 = vld [vmem:[%s157 + $0x58] sm:$0xff]
          %182 = vst [vmem:[%s158 + $0x58] sm:$0xff] %v181
          %v183 = vld [vmem:[%s157 + $0x60] sm:$0xff]
          %184 = vst [vmem:[%s158 + $0x60] sm:$0xff] %v183
          %v185 = vld [vmem:[%s157 + $0x68] sm:$0xff]
          %186 = vst [vmem:[%s158 + $0x68] sm:$0xff] %v185
          %v187 = vld [vmem:[%s157 + $0x70] sm:$0xff]
          %188 = vst [vmem:[%s158 + $0x70] sm:$0xff] %v187
          %v189 = vld [vmem:[%s157 + $0x78] sm:$0xff]
          %190 = vst [vmem:[%s158 + $0x78] sm:$0xff] %v189
          %v191 = vld [vmem:[%s157 + $0x80] sm:$0xff]
          %192 = vst [vmem:[%s158 + $0x80] sm:$0xff] %v191
          %v193 = vld [vmem:[%s157 + $0x88] sm:$0xff]
          %194 = vst [vmem:[%s158 + $0x88] sm:$0xff] %v193
          %v195 = vld [vmem:[%s157 + $0x90] sm:$0xff]
          %196 = vst [vmem:[%s158 + $0x90] sm:$0xff] %v195
          %v197 = vld [vmem:[%s157 + $0x98] sm:$0xff]
          %198 = vst [vmem:[%s158 + $0x98] sm:$0xff] %v197
          %v199 = vld [vmem:[%s157 + $0xa0] sm:$0xff]
          %200 = vst [vmem:[%s158 + $0xa0] sm:$0xff] %v199
          %v201 = vld [vmem:[%s157 + $0xa8] sm:$0xff]
          %202 = vst [vmem:[%s158 + $0xa8] sm:$0xff] %v201
          %v203 = vld [vmem:[%s157 + $0xb0] sm:$0xff]
          %204 = vst [vmem:[%s158 + $0xb0] sm:$0xff] %v203
          %v205 = vld [vmem:[%s157 + $0xb8] sm:$0xff]
          %206 = vst [vmem:[%s158 + $0xb8] sm:$0xff] %v205
          %v207 = vld [vmem:[%s157 + $0xc0] sm:$0xff]
          %208 = vst [vmem:[%s158 + $0xc0] sm:$0xff] %v207
          %v209 = vld [vmem:[%s157 + $0xc8] sm:$0xff]
          %210 = vst [vmem:[%s158 + $0xc8] sm:$0xff] %v209
          %v211 = vld [vmem:[%s157 + $0xd0] sm:$0xff]
          %212 = vst [vmem:[%s158 + $0xd0] sm:$0xff] %v211
        $region37: #{repvgg_block.2} parent=31 // loop_footer
          %s156 = sadd.s32 1, %s152
        $region38: #{repvgg_block.2} parent=31 // loop_footer_branch
          %151 = sbr.rel target = $region34
        $region39: #{repvgg_block.2} parent=31 // loop_exit
          _
      $region32: #{repvgg_block.2} parent=27 // pred_fallthru
        _
      // Predicated region
      $region40: #{repvgg_block.2} parent=27 // pred_check
        _
      $region41: #{repvgg_block.2} parent=27 // pred_check_branch
        %214 = sbr.rel target = $region43
      $region42: #{repvgg_block.2} parent=27 // pred_region
        _
      $region43: #{repvgg_block.2} parent=27 // pred_fallthru
        _
      // Predicated region
      $region44: #{repvgg_block.2} parent=27 // pred_check
        _
      $region45: #{repvgg_block.2} parent=27 // pred_check_branch
        %217 = sbr.rel (0) target = $region47
      $region46: #{repvgg_block.2} parent=27 // pred_region
        %218 = vsyncadd [#allocation3], 3456
      $region47: #{repvgg_block.2} parent=27 // pred_fallthru
        _
      %s219 = smul.u32 4, 1
      %s220 = smul.u32 %s219, 18
      %s221 = smul.u32 %s220, 3
      %s222 = smul.u32 %s221, 1
      %s223 = sshll.u32 %s222, 4
      %224 = dma.done [#allocation3], %s223
      %v225 = vld [vmem:[#allocation2] sm:$0xf]
      %v226 = vld [vmem:[#allocation2 + $0x4] sm:$0xf]
      %v227 = vld [vmem:[#allocation2 + $0xc] sm:$0xf]
      %v228 = vld [vmem:[#allocation2 + $0x10] sm:$0xf]
      %v229 = vld [vmem:[#allocation2 + $0x18] sm:$0xf]
      %v230 = vld [vmem:[#allocation2 + $0x1c] sm:$0xf]
      %v231 = vld [vmem:[#allocation2 + $0x24] sm:$0xf]
      %v232 = vld [vmem:[#allocation2 + $0x28] sm:$0xf]
      %v233 = vld [vmem:[#allocation2 + $0x30] sm:$0xf]
      %v234 = vld [vmem:[#allocation2 + $0x34] sm:$0xf]
      %v235 = vld [vmem:[#allocation2 + $0x3c] sm:$0xf]
      %v236 = vld [vmem:[#allocation2 + $0x40] sm:$0xf]
      %v237 = vld [vmem:[#allocation2 + $0x48] sm:$0xf]
      %v238 = vld [vmem:[#allocation2 + $0x4c] sm:$0xf]
      %v239 = vld [vmem:[#allocation2 + $0x54] sm:$0xf]
      %v240 = vld [vmem:[#allocation2 + $0x58] sm:$0xf]
      %v241 = vld [vmem:[#allocation2 + $0x60] sm:$0xf]
      %v242 = vld [vmem:[#allocation2 + $0x64] sm:$0xf]
      %v243 = vld [vmem:[#allocation2 + $0x6c] sm:$0xf]
      %v244 = vld [vmem:[#allocation2 + $0x70] sm:$0xf]
      %v245 = vld [vmem:[#allocation2 + $0x78] sm:$0xf]
      %v246 = vld [vmem:[#allocation2 + $0x7c] sm:$0xf]
      %v247 = vld [vmem:[#allocation2 + $0x84] sm:$0xf]
      %v248 = vld [vmem:[#allocation2 + $0x88] sm:$0xf]
      %v249 = vld [vmem:[#allocation2 + $0x90] sm:$0xf]
      %v250 = vld [vmem:[#allocation2 + $0x94] sm:$0xf]
      %v251 = vld [vmem:[#allocation2 + $0x9c] sm:$0xf]
      %v252 = vld [vmem:[#allocation2 + $0xa0] sm:$0xf]
      %v253 = vld [vmem:[#allocation2 + $0xa8] sm:$0xf]
      %v254 = vld [vmem:[#allocation2 + $0xac] sm:$0xf]
      %v255 = vld [vmem:[#allocation2 + $0xb4] sm:$0xf]
      %v256 = vld [vmem:[#allocation2 + $0xb8] sm:$0xf]
      %v257 = vld [vmem:[#allocation2 + $0x8] sm:$0x1]
      %v258 = vld [vmem:[#allocation2 + $0x14] sm:$0x1]
      %v259 = vld [vmem:[#allocation2 + $0x20] sm:$0x1]
      %v260 = vld [vmem:[#allocation2 + $0x2c] sm:$0x1]
      %v261 = vld [vmem:[#allocation2 + $0x38] sm:$0x1]
      %v262 = vld [vmem:[#allocation2 + $0x44] sm:$0x1]
      %v263 = vld [vmem:[#allocation2 + $0x50] sm:$0x1]
      %v264 = vld [vmem:[#allocation2 + $0x5c] sm:$0x1]
      %v265 = vld [vmem:[#allocation2 + $0x68] sm:$0x1]
      %v266 = vld [vmem:[#allocation2 + $0x74] sm:$0x1]
      %v267 = vld [vmem:[#allocation2 + $0x80] sm:$0x1]
      %v268 = vld [vmem:[#allocation2 + $0x8c] sm:$0x1]
      %v269 = vld [vmem:[#allocation2 + $0x98] sm:$0x1]
      %v270 = vld [vmem:[#allocation2 + $0xa4] sm:$0x1]
      %v271 = vld [vmem:[#allocation2 + $0xb0] sm:$0x1]
      %v272 = vld [vmem:[#allocation2 + $0xbc] sm:$0x1]
      %v273 = vld [vmem:[#allocation2] sm:$0xe]
      %v274 = vld [vmem:[#allocation2 + $0xc] sm:$0xe]
      %v275 = vld [vmem:[#allocation2 + $0x18] sm:$0xe]
      %v276 = vld [vmem:[#allocation2 + $0x24] sm:$0xe]
      %v277 = vld [vmem:[#allocation2 + $0x30] sm:$0xe]
      %v278 = vld [vmem:[#allocation2 + $0x3c] sm:$0xe]
      %v279 = vld [vmem:[#allocation2 + $0x48] sm:$0xe]
      %v280 = vld [vmem:[#allocation2 + $0x54] sm:$0xe]
      %v281 = vld [vmem:[#allocation2 + $0x60] sm:$0xe]
      %v282 = vld [vmem:[#allocation2 + $0x6c] sm:$0xe]
      %v283 = vld [vmem:[#allocation2 + $0x78] sm:$0xe]
      %v284 = vld [vmem:[#allocation2 + $0x84] sm:$0xe]
      %v285 = vld [vmem:[#allocation2 + $0x90] sm:$0xe]
      %v286 = vld [vmem:[#allocation2 + $0x9c] sm:$0xe]
      %v287 = vld [vmem:[#allocation2 + $0xa8] sm:$0xe]
      %v288 = vld [vmem:[#allocation2 + $0xb4] sm:$0xe]
      %s289 = scalar_lea.vmem [#allocation2], 12
      %v290 = vld [vmem:[%s289] sm:$0xf]
      %v291 = vld [vmem:[%s289 + $0x4] sm:$0xf]
      %v292 = vld [vmem:[%s289 + $0xc] sm:$0xf]
      %v293 = vld [vmem:[%s289 + $0x10] sm:$0xf]
      %v294 = vld [vmem:[%s289 + $0x18] sm:$0xf]
      %v295 = vld [vmem:[%s289 + $0x1c] sm:$0xf]
      %v296 = vld [vmem:[%s289 + $0x24] sm:$0xf]
      %v297 = vld [vmem:[%s289 + $0x28] sm:$0xf]
      %v298 = vld [vmem:[%s289 + $0x30] sm:$0xf]
      %v299 = vld [vmem:[%s289 + $0x34] sm:$0xf]
      %v300 = vld [vmem:[%s289 + $0x3c] sm:$0xf]
      %v301 = vld [vmem:[%s289 + $0x40] sm:$0xf]
      %v302 = vld [vmem:[%s289 + $0x48] sm:$0xf]
      %v303 = vld [vmem:[%s289 + $0x4c] sm:$0xf]
      %v304 = vld [vmem:[%s289 + $0x54] sm:$0xf]
      %v305 = vld [vmem:[%s289 + $0x58] sm:$0xf]
      %v306 = vld [vmem:[%s289 + $0x60] sm:$0xf]
      %v307 = vld [vmem:[%s289 + $0x64] sm:$0xf]
      %v308 = vld [vmem:[%s289 + $0x6c] sm:$0xf]
      %v309 = vld [vmem:[%s289 + $0x70] sm:$0xf]
      %v310 = vld [vmem:[%s289 + $0x78] sm:$0xf]
      %v311 = vld [vmem:[%s289 + $0x7c] sm:$0xf]
      %v312 = vld [vmem:[%s289 + $0x84] sm:$0xf]
      %v313 = vld [vmem:[%s289 + $0x88] sm:$0xf]
      %v314 = vld [vmem:[%s289 + $0x90] sm:$0xf]
      %v315 = vld [vmem:[%s289 + $0x94] sm:$0xf]
      %v316 = vld [vmem:[%s289 + $0x9c] sm:$0xf]
      %v317 = vld [vmem:[%s289 + $0xa0] sm:$0xf]
      %v318 = vld [vmem:[%s289 + $0xa8] sm:$0xf]
      %v319 = vld [vmem:[%s289 + $0xac] sm:$0xf]
      %v320 = vld [vmem:[%s289 + $0xb4] sm:$0xf]
      %v321 = vld [vmem:[%s289 + $0xb8] sm:$0xf]
      %v322 = vld [vmem:[%s289 + $0x8] sm:$0x1]
      %v323 = vld [vmem:[%s289 + $0x14] sm:$0x1]
      %v324 = vld [vmem:[%s289 + $0x20] sm:$0x1]
      %v325 = vld [vmem:[%s289 + $0x2c] sm:$0x1]
      %v326 = vld [vmem:[%s289 + $0x38] sm:$0x1]
      %v327 = vld [vmem:[%s289 + $0x44] sm:$0x1]
      %v328 = vld [vmem:[%s289 + $0x50] sm:$0x1]
      %v329 = vld [vmem:[%s289 + $0x5c] sm:$0x1]
      %v330 = vld [vmem:[%s289 + $0x68] sm:$0x1]
      %v331 = vld [vmem:[%s289 + $0x74] sm:$0x1]
      %v332 = vld [vmem:[%s289 + $0x80] sm:$0x1]
      %v333 = vld [vmem:[%s289 + $0x8c] sm:$0x1]
      %v334 = vld [vmem:[%s289 + $0x98] sm:$0x1]
      %v335 = vld [vmem:[%s289 + $0xa4] sm:$0x1]
      %v336 = vld [vmem:[%s289 + $0xb0] sm:$0x1]
      %v337 = vld [vmem:[%s289 + $0xbc] sm:$0x1]
      %v338 = vld [vmem:[%s289] sm:$0xe]
      %v339 = vld [vmem:[%s289 + $0xc] sm:$0xe]
      %v340 = vld [vmem:[%s289 + $0x18] sm:$0xe]
      %v341 = vld [vmem:[%s289 + $0x24] sm:$0xe]
      %v342 = vld [vmem:[%s289 + $0x30] sm:$0xe]
      %v343 = vld [vmem:[%s289 + $0x3c] sm:$0xe]
      %v344 = vld [vmem:[%s289 + $0x48] sm:$0xe]
      %v345 = vld [vmem:[%s289 + $0x54] sm:$0xe]
      %v346 = vld [vmem:[%s289 + $0x60] sm:$0xe]
      %v347 = vld [vmem:[%s289 + $0x6c] sm:$0xe]
      %v348 = vld [vmem:[%s289 + $0x78] sm:$0xe]
      %v349 = vld [vmem:[%s289 + $0x84] sm:$0xe]
      %v350 = vld [vmem:[%s289 + $0x90] sm:$0xe]
      %v351 = vld [vmem:[%s289 + $0x9c] sm:$0xe]
      %v352 = vld [vmem:[%s289 + $0xa8] sm:$0xe]
      %v353 = vld [vmem:[%s289 + $0xb4] sm:$0xe]
      %s354 = scalar_lea.vmem [#allocation2], 24
      %v355 = vld [vmem:[%s354] sm:$0xf]
      %v356 = vld [vmem:[%s354 + $0x4] sm:$0xf]
      %v357 = vld [vmem:[%s354 + $0xc] sm:$0xf]
      %v358 = vld [vmem:[%s354 + $0x10] sm:$0xf]
      %v359 = vld [vmem:[%s354 + $0x18] sm:$0xf]
      %v360 = vld [vmem:[%s354 + $0x1c] sm:$0xf]
      %v361 = vld [vmem:[%s354 + $0x24] sm:$0xf]
      %v362 = vld [vmem:[%s354 + $0x28] sm:$0xf]
      %v363 = vld [vmem:[%s354 + $0x30] sm:$0xf]
      %v364 = vld [vmem:[%s354 + $0x34] sm:$0xf]
      %v365 = vld [vmem:[%s354 + $0x3c] sm:$0xf]
      %v366 = vld [vmem:[%s354 + $0x40] sm:$0xf]
      %v367 = vld [vmem:[%s354 + $0x48] sm:$0xf]
      %v368 = vld [vmem:[%s354 + $0x4c] sm:$0xf]
      %v369 = vld [vmem:[%s354 + $0x54] sm:$0xf]
      %v370 = vld [vmem:[%s354 + $0x58] sm:$0xf]
      %v371 = vld [vmem:[%s354 + $0x60] sm:$0xf]
      %v372 = vld [vmem:[%s354 + $0x64] sm:$0xf]
      %v373 = vld [vmem:[%s354 + $0x6c] sm:$0xf]
      %v374 = vld [vmem:[%s354 + $0x70] sm:$0xf]
      %v375 = vld [vmem:[%s354 + $0x78] sm:$0xf]
      %v376 = vld [vmem:[%s354 + $0x7c] sm:$0xf]
      %v377 = vld [vmem:[%s354 + $0x84] sm:$0xf]
      %v378 = vld [vmem:[%s354 + $0x88] sm:$0xf]
      %v379 = vld [vmem:[%s354 + $0x90] sm:$0xf]
      %v380 = vld [vmem:[%s354 + $0x94] sm:$0xf]
      %v381 = vld [vmem:[%s354 + $0x9c] sm:$0xf]
      %v382 = vld [vmem:[%s354 + $0xa0] sm:$0xf]
      %v383 = vld [vmem:[%s354 + $0xa8] sm:$0xf]
      %v384 = vld [vmem:[%s354 + $0xac] sm:$0xf]
      %v385 = vld [vmem:[%s354 + $0xb4] sm:$0xf]
      %v386 = vld [vmem:[%s354 + $0xb8] sm:$0xf]
      %v387 = vld [vmem:[%s354 + $0x8] sm:$0x1]
      %v388 = vld [vmem:[%s354 + $0x14] sm:$0x1]
      %v389 = vld [vmem:[%s354 + $0x20] sm:$0x1]
      %v390 = vld [vmem:[%s354 + $0x2c] sm:$0x1]
      %v391 = vld [vmem:[%s354 + $0x38] sm:$0x1]
      %v392 = vld [vmem:[%s354 + $0x44] sm:$0x1]
      %v393 = vld [vmem:[%s354 + $0x50] sm:$0x1]
      %v394 = vld [vmem:[%s354 + $0x5c] sm:$0x1]
      %v395 = vld [vmem:[%s354 + $0x68] sm:$0x1]
      %v396 = vld [vmem:[%s354 + $0x74] sm:$0x1]
      %v397 = vld [vmem:[%s354 + $0x80] sm:$0x1]
      %v398 = vld [vmem:[%s354 + $0x8c] sm:$0x1]
      %v399 = vld [vmem:[%s354 + $0x98] sm:$0x1]
      %v400 = vld [vmem:[%s354 + $0xa4] sm:$0x1]
      %v401 = vld [vmem:[%s354 + $0xb0] sm:$0x1]
      %v402 = vld [vmem:[%s354 + $0xbc] sm:$0x1]
      %v403 = vld [vmem:[%s354] sm:$0xe]
      %v404 = vld [vmem:[%s354 + $0xc] sm:$0xe]
      %v405 = vld [vmem:[%s354 + $0x18] sm:$0xe]
      %v406 = vld [vmem:[%s354 + $0x24] sm:$0xe]
      %v407 = vld [vmem:[%s354 + $0x30] sm:$0xe]
      %v408 = vld [vmem:[%s354 + $0x3c] sm:$0xe]
      %v409 = vld [vmem:[%s354 + $0x48] sm:$0xe]
      %v410 = vld [vmem:[%s354 + $0x54] sm:$0xe]
      %v411 = vld [vmem:[%s354 + $0x60] sm:$0xe]
      %v412 = vld [vmem:[%s354 + $0x6c] sm:$0xe]
      %v413 = vld [vmem:[%s354 + $0x78] sm:$0xe]
      %v414 = vld [vmem:[%s354 + $0x84] sm:$0xe]
      %v415 = vld [vmem:[%s354 + $0x90] sm:$0xe]
      %v416 = vld [vmem:[%s354 + $0x9c] sm:$0xe]
      %v417 = vld [vmem:[%s354 + $0xa8] sm:$0xe]
      %v418 = vld [vmem:[%s354 + $0xb4] sm:$0xe]
      %v451 = vunpack.c.l.b16 %v225
      %v452 = vunpack.c.l.b16 %v226
      %v453 = vunpack.c.l.b16 %v227
      %v454 = vunpack.c.l.b16 %v228
      %v455 = vunpack.c.l.b16 %v229
      %v456 = vunpack.c.l.b16 %v230
      %v457 = vunpack.c.l.b16 %v231
      %v458 = vunpack.c.l.b16 %v232
      %v459 = vunpack.c.l.b16 %v233
      %v460 = vunpack.c.l.b16 %v234
      %v461 = vunpack.c.l.b16 %v235
      %v462 = vunpack.c.l.b16 %v236
      %v463 = vunpack.c.l.b16 %v237
      %v464 = vunpack.c.l.b16 %v238
      %v465 = vunpack.c.l.b16 %v239
      %v466 = vunpack.c.l.b16 %v240
      %v467 = vunpack.c.l.b16 %v241
      %v468 = vunpack.c.l.b16 %v242
      %v469 = vunpack.c.l.b16 %v243
      %v470 = vunpack.c.l.b16 %v244
      %v471 = vunpack.c.l.b16 %v245
      %v472 = vunpack.c.l.b16 %v246
      %v473 = vunpack.c.l.b16 %v247
      %v474 = vunpack.c.l.b16 %v248
      %v475 = vunpack.c.l.b16 %v249
      %v476 = vunpack.c.l.b16 %v250
      %v477 = vunpack.c.l.b16 %v251
      %v478 = vunpack.c.l.b16 %v252
      %v479 = vunpack.c.l.b16 %v253
      %v480 = vunpack.c.l.b16 %v254
      %v481 = vunpack.c.l.b16 %v255
      %v482 = vunpack.c.l.b16 %v256
      %v483 = vpack.c.b16 %v452, %v451
      %v484 = vpack.c.b16 %v454, %v453
      %v485 = vpack.c.b16 %v456, %v455
      %v486 = vpack.c.b16 %v458, %v457
      %v487 = vpack.c.b16 %v460, %v459
      %v488 = vpack.c.b16 %v462, %v461
      %v489 = vpack.c.b16 %v464, %v463
      %v490 = vpack.c.b16 %v466, %v465
      %v491 = vpack.c.b16 %v468, %v467
      %v492 = vpack.c.b16 %v470, %v469
      %v493 = vpack.c.b16 %v472, %v471
      %v494 = vpack.c.b16 %v474, %v473
      %v495 = vpack.c.b16 %v476, %v475
      %v496 = vpack.c.b16 %v478, %v477
      %v497 = vpack.c.b16 %v480, %v479
      %v498 = vpack.c.b16 %v482, %v481
      %v531 = vunpack.c.l.b16 %v257
      %v532 = vunpack.c.l.b16 %v258
      %v533 = vunpack.c.l.b16 %v259
      %v534 = vunpack.c.l.b16 %v260
      %v535 = vunpack.c.l.b16 %v261
      %v536 = vunpack.c.l.b16 %v262
      %v537 = vunpack.c.l.b16 %v263
      %v538 = vunpack.c.l.b16 %v264
      %v539 = vunpack.c.l.b16 %v265
      %v540 = vunpack.c.l.b16 %v266
      %v541 = vunpack.c.l.b16 %v267
      %v542 = vunpack.c.l.b16 %v268
      %v543 = vunpack.c.l.b16 %v269
      %v544 = vunpack.c.l.b16 %v270
      %v545 = vunpack.c.l.b16 %v271
      %v546 = vunpack.c.l.b16 %v272
      %v547 = vpack.c.b16 %v531, %v531
      %v548 = vpack.c.b16 %v532, %v532
      %v549 = vpack.c.b16 %v533, %v533
      %v550 = vpack.c.b16 %v534, %v534
      %v551 = vpack.c.b16 %v535, %v535
      %v552 = vpack.c.b16 %v536, %v536
      %v553 = vpack.c.b16 %v537, %v537
      %v554 = vpack.c.b16 %v538, %v538
      %v555 = vpack.c.b16 %v539, %v539
      %v556 = vpack.c.b16 %v540, %v540
      %v557 = vpack.c.b16 %v541, %v541
      %v558 = vpack.c.b16 %v542, %v542
      %v559 = vpack.c.b16 %v543, %v543
      %v560 = vpack.c.b16 %v544, %v544
      %v561 = vpack.c.b16 %v545, %v545
      %v562 = vpack.c.b16 %v546, %v546
      %vm563 = vsmask.f32 7424
      %v565 = vshrl.u32 %v483, 16
      %v567 = vshll.u32 %v483, 16
      %v569 = vrot.slane %v567, 1
      %v570 = vor.u32 %v565, %v569
      %v572 = vshll.u32 %v547, 16
      %v574 = vrot.slane %v572, 1
      %v575 = vsel %vm563, %v570, %v574
      %v577 = vshrl.u32 %v484, 16
      %v579 = vshll.u32 %v484, 16
      %v581 = vrot.slane %v579, 1
      %v582 = vor.u32 %v577, %v581
      %v584 = vshll.u32 %v548, 16
      %v586 = vrot.slane %v584, 1
      %v587 = vsel %vm563, %v582, %v586
      %v589 = vshrl.u32 %v485, 16
      %v591 = vshll.u32 %v485, 16
      %v593 = vrot.slane %v591, 1
      %v594 = vor.u32 %v589, %v593
      %v596 = vshll.u32 %v549, 16
      %v598 = vrot.slane %v596, 1
      %v599 = vsel %vm563, %v594, %v598
      %v601 = vshrl.u32 %v486, 16
      %v603 = vshll.u32 %v486, 16
      %v605 = vrot.slane %v603, 1
      %v606 = vor.u32 %v601, %v605
      %v608 = vshll.u32 %v550, 16
      %v610 = vrot.slane %v608, 1
      %v611 = vsel %vm563, %v606, %v610
      %v613 = vshrl.u32 %v487, 16
      %v615 = vshll.u32 %v487, 16
      %v617 = vrot.slane %v615, 1
      %v618 = vor.u32 %v613, %v617
      %v620 = vshll.u32 %v551, 16
      %v622 = vrot.slane %v620, 1
      %v623 = vsel %vm563, %v618, %v622
      %v625 = vshrl.u32 %v488, 16
      %v627 = vshll.u32 %v488, 16
      %v629 = vrot.slane %v627, 1
      %v630 = vor.u32 %v625, %v629
      %v632 = vshll.u32 %v552, 16
      %v634 = vrot.slane %v632, 1
      %v635 = vsel %vm563, %v630, %v634
      %v637 = vshrl.u32 %v489, 16
      %v639 = vshll.u32 %v489, 16
      %v641 = vrot.slane %v639, 1
      %v642 = vor.u32 %v637, %v641
      %v644 = vshll.u32 %v553, 16
      %v646 = vrot.slane %v644, 1
      %v647 = vsel %vm563, %v642, %v646
      %v649 = vshrl.u32 %v490, 16
      %v651 = vshll.u32 %v490, 16
      %v653 = vrot.slane %v651, 1
      %v654 = vor.u32 %v649, %v653
      %v656 = vshll.u32 %v554, 16
      %v658 = vrot.slane %v656, 1
      %v659 = vsel %vm563, %v654, %v658
      %v661 = vshrl.u32 %v491, 16
      %v663 = vshll.u32 %v491, 16
      %v665 = vrot.slane %v663, 1
      %v666 = vor.u32 %v661, %v665
      %v668 = vshll.u32 %v555, 16
      %v670 = vrot.slane %v668, 1
      %v671 = vsel %vm563, %v666, %v670
      %v673 = vshrl.u32 %v492, 16
      %v675 = vshll.u32 %v492, 16
      %v677 = vrot.slane %v675, 1
      %v678 = vor.u32 %v673, %v677
      %v680 = vshll.u32 %v556, 16
      %v682 = vrot.slane %v680, 1
      %v683 = vsel %vm563, %v678, %v682
      %v685 = vshrl.u32 %v493, 16
      %v687 = vshll.u32 %v493, 16
      %v689 = vrot.slane %v687, 1
      %v690 = vor.u32 %v685, %v689
      %v692 = vshll.u32 %v557, 16
      %v694 = vrot.slane %v692, 1
      %v695 = vsel %vm563, %v690, %v694
      %v697 = vshrl.u32 %v494, 16
      %v699 = vshll.u32 %v494, 16
      %v701 = vrot.slane %v699, 1
      %v702 = vor.u32 %v697, %v701
      %v704 = vshll.u32 %v558, 16
      %v706 = vrot.slane %v704, 1
      %v707 = vsel %vm563, %v702, %v706
      %v709 = vshrl.u32 %v495, 16
      %v711 = vshll.u32 %v495, 16
      %v713 = vrot.slane %v711, 1
      %v714 = vor.u32 %v709, %v713
      %v716 = vshll.u32 %v559, 16
      %v718 = vrot.slane %v716, 1
      %v719 = vsel %vm563, %v714, %v718
      %v721 = vshrl.u32 %v496, 16
      %v723 = vshll.u32 %v496, 16
      %v725 = vrot.slane %v723, 1
      %v726 = vor.u32 %v721, %v725
      %v728 = vshll.u32 %v560, 16
      %v730 = vrot.slane %v728, 1
      %v731 = vsel %vm563, %v726, %v730
      %v733 = vshrl.u32 %v497, 16
      %v735 = vshll.u32 %v497, 16
      %v737 = vrot.slane %v735, 1
      %v738 = vor.u32 %v733, %v737
      %v740 = vshll.u32 %v561, 16
      %v742 = vrot.slane %v740, 1
      %v743 = vsel %vm563, %v738, %v742
      %v745 = vshrl.u32 %v498, 16
      %v747 = vshll.u32 %v498, 16
      %v749 = vrot.slane %v747, 1
      %v750 = vor.u32 %v745, %v749
      %v752 = vshll.u32 %v562, 16
      %v754 = vrot.slane %v752, 1
      %v755 = vsel %vm563, %v750, %v754
      %v788 = vunpack.c.l.b16 %v273
      %v789 = vunpack.c.l.b16 %v274
      %v790 = vunpack.c.l.b16 %v275
      %v791 = vunpack.c.l.b16 %v276
      %v792 = vunpack.c.l.b16 %v277
      %v793 = vunpack.c.l.b16 %v278
      %v794 = vunpack.c.l.b16 %v279
      %v795 = vunpack.c.l.b16 %v280
      %v796 = vunpack.c.l.b16 %v281
      %v797 = vunpack.c.l.b16 %v282
      %v798 = vunpack.c.l.b16 %v283
      %v799 = vunpack.c.l.b16 %v284
      %v800 = vunpack.c.l.b16 %v285
      %v801 = vunpack.c.l.b16 %v286
      %v802 = vunpack.c.l.b16 %v287
      %v803 = vunpack.c.l.b16 %v288
      %v804 = vpack.c.b16 %v452, %v788
      %v805 = vpack.c.b16 %v454, %v789
      %v806 = vpack.c.b16 %v456, %v790
      %v807 = vpack.c.b16 %v458, %v791
      %v808 = vpack.c.b16 %v460, %v792
      %v809 = vpack.c.b16 %v462, %v793
      %v810 = vpack.c.b16 %v464, %v794
      %v811 = vpack.c.b16 %v466, %v795
      %v812 = vpack.c.b16 %v468, %v796
      %v813 = vpack.c.b16 %v470, %v797
      %v814 = vpack.c.b16 %v472, %v798
      %v815 = vpack.c.b16 %v474, %v799
      %v816 = vpack.c.b16 %v476, %v800
      %v817 = vpack.c.b16 %v478, %v801
      %v818 = vpack.c.b16 %v480, %v802
      %v819 = vpack.c.b16 %v482, %v803
      %vm820 = vcmask 1046528
      %v821 = vrot.slane %v804, 1
      %v822 = vrot.slane %v547, 1
      %v823 = vsel %vm820, %v821, %v822
      %v824 = vrot.slane %v805, 1
      %v825 = vrot.slane %v548, 1
      %v826 = vsel %vm820, %v824, %v825
      %v827 = vrot.slane %v806, 1
      %v828 = vrot.slane %v549, 1
      %v829 = vsel %vm820, %v827, %v828
      %v830 = vrot.slane %v807, 1
      %v831 = vrot.slane %v550, 1
      %v832 = vsel %vm820, %v830, %v831
      %v833 = vrot.slane %v808, 1
      %v834 = vrot.slane %v551, 1
      %v835 = vsel %vm820, %v833, %v834
      %v836 = vrot.slane %v809, 1
      %v837 = vrot.slane %v552, 1
      %v838 = vsel %vm820, %v836, %v837
      %v839 = vrot.slane %v810, 1
      %v840 = vrot.slane %v553, 1
      %v841 = vsel %vm820, %v839, %v840
      %v842 = vrot.slane %v811, 1
      %v843 = vrot.slane %v554, 1
      %v844 = vsel %vm820, %v842, %v843
      %v845 = vrot.slane %v812, 1
      %v846 = vrot.slane %v555, 1
      %v847 = vsel %vm820, %v845, %v846
      %v848 = vrot.slane %v813, 1
      %v849 = vrot.slane %v556, 1
      %v850 = vsel %vm820, %v848, %v849
      %v851 = vrot.slane %v814, 1
      %v852 = vrot.slane %v557, 1
      %v853 = vsel %vm820, %v851, %v852
      %v854 = vrot.slane %v815, 1
      %v855 = vrot.slane %v558, 1
      %v856 = vsel %vm820, %v854, %v855
      %v857 = vrot.slane %v816, 1
      %v858 = vrot.slane %v559, 1
      %v859 = vsel %vm820, %v857, %v858
      %v860 = vrot.slane %v817, 1
      %v861 = vrot.slane %v560, 1
      %v862 = vsel %vm820, %v860, %v861
      %v863 = vrot.slane %v818, 1
      %v864 = vrot.slane %v561, 1
      %v865 = vsel %vm820, %v863, %v864
      %v866 = vrot.slane %v819, 1
      %v867 = vrot.slane %v562, 1
      %v868 = vsel %vm820, %v866, %v867
      %v917 = vunpack.c.l.b16 %v290
      %v918 = vunpack.c.l.b16 %v291
      %v919 = vunpack.c.l.b16 %v292
      %v920 = vunpack.c.l.b16 %v293
      %v921 = vunpack.c.l.b16 %v294
      %v922 = vunpack.c.l.b16 %v295
      %v923 = vunpack.c.l.b16 %v296
      %v924 = vunpack.c.l.b16 %v297
      %v925 = vunpack.c.l.b16 %v298
      %v926 = vunpack.c.l.b16 %v299
      %v927 = vunpack.c.l.b16 %v300
      %v928 = vunpack.c.l.b16 %v301
      %v929 = vunpack.c.l.b16 %v302
      %v930 = vunpack.c.l.b16 %v303
      %v931 = vunpack.c.l.b16 %v304
      %v932 = vunpack.c.l.b16 %v305
      %v933 = vunpack.c.l.b16 %v306
      %v934 = vunpack.c.l.b16 %v307
      %v935 = vunpack.c.l.b16 %v308
      %v936 = vunpack.c.l.b16 %v309
      %v937 = vunpack.c.l.b16 %v310
      %v938 = vunpack.c.l.b16 %v311
      %v939 = vunpack.c.l.b16 %v312
      %v940 = vunpack.c.l.b16 %v313
      %v941 = vunpack.c.l.b16 %v314
      %v942 = vunpack.c.l.b16 %v315
      %v943 = vunpack.c.l.b16 %v316
      %v944 = vunpack.c.l.b16 %v317
      %v945 = vunpack.c.l.b16 %v318
      %v946 = vunpack.c.l.b16 %v319
      %v947 = vunpack.c.l.b16 %v320
      %v948 = vunpack.c.l.b16 %v321
      %v949 = vpack.c.b16 %v918, %v917
      %v950 = vpack.c.b16 %v920, %v919
      %v951 = vpack.c.b16 %v922, %v921
      %v952 = vpack.c.b16 %v924, %v923
      %v953 = vpack.c.b16 %v926, %v925
      %v954 = vpack.c.b16 %v928, %v927
      %v955 = vpack.c.b16 %v930, %v929
      %v956 = vpack.c.b16 %v932, %v931
      %v957 = vpack.c.b16 %v934, %v933
      %v958 = vpack.c.b16 %v936, %v935
      %v959 = vpack.c.b16 %v938, %v937
      %v960 = vpack.c.b16 %v940, %v939
      %v961 = vpack.c.b16 %v942, %v941
      %v962 = vpack.c.b16 %v944, %v943
      %v963 = vpack.c.b16 %v946, %v945
      %v964 = vpack.c.b16 %v948, %v947
      %v997 = vunpack.c.l.b16 %v322
      %v998 = vunpack.c.l.b16 %v323
      %v999 = vunpack.c.l.b16 %v324
      %v1000 = vunpack.c.l.b16 %v325
      %v1001 = vunpack.c.l.b16 %v326
      %v1002 = vunpack.c.l.b16 %v327
      %v1003 = vunpack.c.l.b16 %v328
      %v1004 = vunpack.c.l.b16 %v329
      %v1005 = vunpack.c.l.b16 %v330
      %v1006 = vunpack.c.l.b16 %v331
      %v1007 = vunpack.c.l.b16 %v332
      %v1008 = vunpack.c.l.b16 %v333
      %v1009 = vunpack.c.l.b16 %v334
      %v1010 = vunpack.c.l.b16 %v335
      %v1011 = vunpack.c.l.b16 %v336
      %v1012 = vunpack.c.l.b16 %v337
      %v1013 = vpack.c.b16 %v997, %v997
      %v1014 = vpack.c.b16 %v998, %v998
      %v1015 = vpack.c.b16 %v999, %v999
      %v1016 = vpack.c.b16 %v1000, %v1000
      %v1017 = vpack.c.b16 %v1001, %v1001
      %v1018 = vpack.c.b16 %v1002, %v1002
      %v1019 = vpack.c.b16 %v1003, %v1003
      %v1020 = vpack.c.b16 %v1004, %v1004
      %v1021 = vpack.c.b16 %v1005, %v1005
      %v1022 = vpack.c.b16 %v1006, %v1006
      %v1023 = vpack.c.b16 %v1007, %v1007
      %v1024 = vpack.c.b16 %v1008, %v1008
      %v1025 = vpack.c.b16 %v1009, %v1009
      %v1026 = vpack.c.b16 %v1010, %v1010
      %v1027 = vpack.c.b16 %v1011, %v1011
      %v1028 = vpack.c.b16 %v1012, %v1012
      %v1030 = vshrl.u32 %v949, 16
      %v1032 = vshll.u32 %v949, 16
      %v1034 = vrot.slane %v1032, 1
      %v1035 = vor.u32 %v1030, %v1034
      %v1037 = vshll.u32 %v1013, 16
      %v1039 = vrot.slane %v1037, 1
      %v1040 = vsel %vm563, %v1035, %v1039
      %v1042 = vshrl.u32 %v950, 16
      %v1044 = vshll.u32 %v950, 16
      %v1046 = vrot.slane %v1044, 1
      %v1047 = vor.u32 %v1042, %v1046
      %v1049 = vshll.u32 %v1014, 16
      %v1051 = vrot.slane %v1049, 1
      %v1052 = vsel %vm563, %v1047, %v1051
      %v1054 = vshrl.u32 %v951, 16
      %v1056 = vshll.u32 %v951, 16
      %v1058 = vrot.slane %v1056, 1
      %v1059 = vor.u32 %v1054, %v1058
      %v1061 = vshll.u32 %v1015, 16
      %v1063 = vrot.slane %v1061, 1
      %v1064 = vsel %vm563, %v1059, %v1063
      %v1066 = vshrl.u32 %v952, 16
      %v1068 = vshll.u32 %v952, 16
      %v1070 = vrot.slane %v1068, 1
      %v1071 = vor.u32 %v1066, %v1070
      %v1073 = vshll.u32 %v1016, 16
      %v1075 = vrot.slane %v1073, 1
      %v1076 = vsel %vm563, %v1071, %v1075
      %v1078 = vshrl.u32 %v953, 16
      %v1080 = vshll.u32 %v953, 16
      %v1082 = vrot.slane %v1080, 1
      %v1083 = vor.u32 %v1078, %v1082
      %v1085 = vshll.u32 %v1017, 16
      %v1087 = vrot.slane %v1085, 1
      %v1088 = vsel %vm563, %v1083, %v1087
      %v1090 = vshrl.u32 %v954, 16
      %v1092 = vshll.u32 %v954, 16
      %v1094 = vrot.slane %v1092, 1
      %v1095 = vor.u32 %v1090, %v1094
      %v1097 = vshll.u32 %v1018, 16
      %v1099 = vrot.slane %v1097, 1
      %v1100 = vsel %vm563, %v1095, %v1099
      %v1102 = vshrl.u32 %v955, 16
      %v1104 = vshll.u32 %v955, 16
      %v1106 = vrot.slane %v1104, 1
      %v1107 = vor.u32 %v1102, %v1106
      %v1109 = vshll.u32 %v1019, 16
      %v1111 = vrot.slane %v1109, 1
      %v1112 = vsel %vm563, %v1107, %v1111
      %v1114 = vshrl.u32 %v956, 16
      %v1116 = vshll.u32 %v956, 16
      %v1118 = vrot.slane %v1116, 1
      %v1119 = vor.u32 %v1114, %v1118
      %v1121 = vshll.u32 %v1020, 16
      %v1123 = vrot.slane %v1121, 1
      %v1124 = vsel %vm563, %v1119, %v1123
      %v1126 = vshrl.u32 %v957, 16
      %v1128 = vshll.u32 %v957, 16
      %v1130 = vrot.slane %v1128, 1
      %v1131 = vor.u32 %v1126, %v1130
      %v1133 = vshll.u32 %v1021, 16
      %v1135 = vrot.slane %v1133, 1
      %v1136 = vsel %vm563, %v1131, %v1135
      %v1138 = vshrl.u32 %v958, 16
      %v1140 = vshll.u32 %v958, 16
      %v1142 = vrot.slane %v1140, 1
      %v1143 = vor.u32 %v1138, %v1142
      %v1145 = vshll.u32 %v1022, 16
      %v1147 = vrot.slane %v1145, 1
      %v1148 = vsel %vm563, %v1143, %v1147
      %v1150 = vshrl.u32 %v959, 16
      %v1152 = vshll.u32 %v959, 16
      %v1154 = vrot.slane %v1152, 1
      %v1155 = vor.u32 %v1150, %v1154
      %v1157 = vshll.u32 %v1023, 16
      %v1159 = vrot.slane %v1157, 1
      %v1160 = vsel %vm563, %v1155, %v1159
      %v1162 = vshrl.u32 %v960, 16
      %v1164 = vshll.u32 %v960, 16
      %v1166 = vrot.slane %v1164, 1
      %v1167 = vor.u32 %v1162, %v1166
      %v1169 = vshll.u32 %v1024, 16
      %v1171 = vrot.slane %v1169, 1
      %v1172 = vsel %vm563, %v1167, %v1171
      %v1174 = vshrl.u32 %v961, 16
      %v1176 = vshll.u32 %v961, 16
      %v1178 = vrot.slane %v1176, 1
      %v1179 = vor.u32 %v1174, %v1178
      %v1181 = vshll.u32 %v1025, 16
      %v1183 = vrot.slane %v1181, 1
      %v1184 = vsel %vm563, %v1179, %v1183
      %v1186 = vshrl.u32 %v962, 16
      %v1188 = vshll.u32 %v962, 16
      %v1190 = vrot.slane %v1188, 1
      %v1191 = vor.u32 %v1186, %v1190
      %v1193 = vshll.u32 %v1026, 16
      %v1195 = vrot.slane %v1193, 1
      %v1196 = vsel %vm563, %v1191, %v1195
      %v1198 = vshrl.u32 %v963, 16
      %v1200 = vshll.u32 %v963, 16
      %v1202 = vrot.slane %v1200, 1
      %v1203 = vor.u32 %v1198, %v1202
      %v1205 = vshll.u32 %v1027, 16
      %v1207 = vrot.slane %v1205, 1
      %v1208 = vsel %vm563, %v1203, %v1207
      %v1210 = vshrl.u32 %v964, 16
      %v1212 = vshll.u32 %v964, 16
      %v1214 = vrot.slane %v1212, 1
      %v1215 = vor.u32 %v1210, %v1214
      %v1217 = vshll.u32 %v1028, 16
      %v1219 = vrot.slane %v1217, 1
      %v1220 = vsel %vm563, %v1215, %v1219
      %v1253 = vunpack.c.l.b16 %v338
      %v1254 = vunpack.c.l.b16 %v339
      %v1255 = vunpack.c.l.b16 %v340
      %v1256 = vunpack.c.l.b16 %v341
      %v1257 = vunpack.c.l.b16 %v342
      %v1258 = vunpack.c.l.b16 %v343
      %v1259 = vunpack.c.l.b16 %v344
      %v1260 = vunpack.c.l.b16 %v345
      %v1261 = vunpack.c.l.b16 %v346
      %v1262 = vunpack.c.l.b16 %v347
      %v1263 = vunpack.c.l.b16 %v348
      %v1264 = vunpack.c.l.b16 %v349
      %v1265 = vunpack.c.l.b16 %v350
      %v1266 = vunpack.c.l.b16 %v351
      %v1267 = vunpack.c.l.b16 %v352
      %v1268 = vunpack.c.l.b16 %v353
      %v1269 = vpack.c.b16 %v918, %v1253
      %v1270 = vpack.c.b16 %v920, %v1254
      %v1271 = vpack.c.b16 %v922, %v1255
      %v1272 = vpack.c.b16 %v924, %v1256
      %v1273 = vpack.c.b16 %v926, %v1257
      %v1274 = vpack.c.b16 %v928, %v1258
      %v1275 = vpack.c.b16 %v930, %v1259
      %v1276 = vpack.c.b16 %v932, %v1260
      %v1277 = vpack.c.b16 %v934, %v1261
      %v1278 = vpack.c.b16 %v936, %v1262
      %v1279 = vpack.c.b16 %v938, %v1263
      %v1280 = vpack.c.b16 %v940, %v1264
      %v1281 = vpack.c.b16 %v942, %v1265
      %v1282 = vpack.c.b16 %v944, %v1266
      %v1283 = vpack.c.b16 %v946, %v1267
      %v1284 = vpack.c.b16 %v948, %v1268
      %v1285 = vrot.slane %v1269, 1
      %v1286 = vrot.slane %v1013, 1
      %v1287 = vsel %vm820, %v1285, %v1286
      %v1288 = vrot.slane %v1270, 1
      %v1289 = vrot.slane %v1014, 1
      %v1290 = vsel %vm820, %v1288, %v1289
      %v1291 = vrot.slane %v1271, 1
      %v1292 = vrot.slane %v1015, 1
      %v1293 = vsel %vm820, %v1291, %v1292
      %v1294 = vrot.slane %v1272, 1
      %v1295 = vrot.slane %v1016, 1
      %v1296 = vsel %vm820, %v1294, %v1295
      %v1297 = vrot.slane %v1273, 1
      %v1298 = vrot.slane %v1017, 1
      %v1299 = vsel %vm820, %v1297, %v1298
      %v1300 = vrot.slane %v1274, 1
      %v1301 = vrot.slane %v1018, 1
      %v1302 = vsel %vm820, %v1300, %v1301
      %v1303 = vrot.slane %v1275, 1
      %v1304 = vrot.slane %v1019, 1
      %v1305 = vsel %vm820, %v1303, %v1304
      %v1306 = vrot.slane %v1276, 1
      %v1307 = vrot.slane %v1020, 1
      %v1308 = vsel %vm820, %v1306, %v1307
      %v1309 = vrot.slane %v1277, 1
      %v1310 = vrot.slane %v1021, 1
      %v1311 = vsel %vm820, %v1309, %v1310
      %v1312 = vrot.slane %v1278, 1
      %v1313 = vrot.slane %v1022, 1
      %v1314 = vsel %vm820, %v1312, %v1313
      %v1315 = vrot.slane %v1279, 1
      %v1316 = vrot.slane %v1023, 1
      %v1317 = vsel %vm820, %v1315, %v1316
      %v1318 = vrot.slane %v1280, 1
      %v1319 = vrot.slane %v1024, 1
      %v1320 = vsel %vm820, %v1318, %v1319
      %v1321 = vrot.slane %v1281, 1
      %v1322 = vrot.slane %v1025, 1
      %v1323 = vsel %vm820, %v1321, %v1322
      %v1324 = vrot.slane %v1282, 1
      %v1325 = vrot.slane %v1026, 1
      %v1326 = vsel %vm820, %v1324, %v1325
      %v1327 = vrot.slane %v1283, 1
      %v1328 = vrot.slane %v1027, 1
      %v1329 = vsel %vm820, %v1327, %v1328
      %v1330 = vrot.slane %v1284, 1
      %v1331 = vrot.slane %v1028, 1
      %v1332 = vsel %vm820, %v1330, %v1331
      %v1381 = vunpack.c.l.b16 %v355
      %v1382 = vunpack.c.l.b16 %v356
      %v1383 = vunpack.c.l.b16 %v357
      %v1384 = vunpack.c.l.b16 %v358
      %v1385 = vunpack.c.l.b16 %v359
      %v1386 = vunpack.c.l.b16 %v360
      %v1387 = vunpack.c.l.b16 %v361
      %v1388 = vunpack.c.l.b16 %v362
      %v1389 = vunpack.c.l.b16 %v363
      %v1390 = vunpack.c.l.b16 %v364
      %v1391 = vunpack.c.l.b16 %v365
      %v1392 = vunpack.c.l.b16 %v366
      %v1393 = vunpack.c.l.b16 %v367
      %v1394 = vunpack.c.l.b16 %v368
      %v1395 = vunpack.c.l.b16 %v369
      %v1396 = vunpack.c.l.b16 %v370
      %v1397 = vunpack.c.l.b16 %v371
      %v1398 = vunpack.c.l.b16 %v372
      %v1399 = vunpack.c.l.b16 %v373
      %v1400 = vunpack.c.l.b16 %v374
      %v1401 = vunpack.c.l.b16 %v375
      %v1402 = vunpack.c.l.b16 %v376
      %v1403 = vunpack.c.l.b16 %v377
      %v1404 = vunpack.c.l.b16 %v378
      %v1405 = vunpack.c.l.b16 %v379
      %v1406 = vunpack.c.l.b16 %v380
      %v1407 = vunpack.c.l.b16 %v381
      %v1408 = vunpack.c.l.b16 %v382
      %v1409 = vunpack.c.l.b16 %v383
      %v1410 = vunpack.c.l.b16 %v384
      %v1411 = vunpack.c.l.b16 %v385
      %v1412 = vunpack.c.l.b16 %v386
      %v1413 = vpack.c.b16 %v1382, %v1381
      %v1414 = vpack.c.b16 %v1384, %v1383
      %v1415 = vpack.c.b16 %v1386, %v1385
      %v1416 = vpack.c.b16 %v1388, %v1387
      %v1417 = vpack.c.b16 %v1390, %v1389
      %v1418 = vpack.c.b16 %v1392, %v1391
      %v1419 = vpack.c.b16 %v1394, %v1393
      %v1420 = vpack.c.b16 %v1396, %v1395
      %v1421 = vpack.c.b16 %v1398, %v1397
      %v1422 = vpack.c.b16 %v1400, %v1399
      %v1423 = vpack.c.b16 %v1402, %v1401
      %v1424 = vpack.c.b16 %v1404, %v1403
      %v1425 = vpack.c.b16 %v1406, %v1405
      %v1426 = vpack.c.b16 %v1408, %v1407
      %v1427 = vpack.c.b16 %v1410, %v1409
      %v1428 = vpack.c.b16 %v1412, %v1411
      %v1461 = vunpack.c.l.b16 %v387
      %v1462 = vunpack.c.l.b16 %v388
      %v1463 = vunpack.c.l.b16 %v389
      %v1464 = vunpack.c.l.b16 %v390
      %v1465 = vunpack.c.l.b16 %v391
      %v1466 = vunpack.c.l.b16 %v392
      %v1467 = vunpack.c.l.b16 %v393
      %v1468 = vunpack.c.l.b16 %v394
      %v1469 = vunpack.c.l.b16 %v395
      %v1470 = vunpack.c.l.b16 %v396
      %v1471 = vunpack.c.l.b16 %v397
      %v1472 = vunpack.c.l.b16 %v398
      %v1473 = vunpack.c.l.b16 %v399
      %v1474 = vunpack.c.l.b16 %v400
      %v1475 = vunpack.c.l.b16 %v401
      %v1476 = vunpack.c.l.b16 %v402
      %v1477 = vpack.c.b16 %v1461, %v1461
      %v1478 = vpack.c.b16 %v1462, %v1462
      %v1479 = vpack.c.b16 %v1463, %v1463
      %v1480 = vpack.c.b16 %v1464, %v1464
      %v1481 = vpack.c.b16 %v1465, %v1465
      %v1482 = vpack.c.b16 %v1466, %v1466
      %v1483 = vpack.c.b16 %v1467, %v1467
      %v1484 = vpack.c.b16 %v1468, %v1468
      %v1485 = vpack.c.b16 %v1469, %v1469
      %v1486 = vpack.c.b16 %v1470, %v1470
      %v1487 = vpack.c.b16 %v1471, %v1471
      %v1488 = vpack.c.b16 %v1472, %v1472
      %v1489 = vpack.c.b16 %v1473, %v1473
      %v1490 = vpack.c.b16 %v1474, %v1474
      %v1491 = vpack.c.b16 %v1475, %v1475
      %v1492 = vpack.c.b16 %v1476, %v1476
      %v1494 = vshrl.u32 %v1413, 16
      %v1496 = vshll.u32 %v1413, 16
      %v1498 = vrot.slane %v1496, 1
      %v1499 = vor.u32 %v1494, %v1498
      %v1501 = vshll.u32 %v1477, 16
      %v1503 = vrot.slane %v1501, 1
      %v1504 = vsel %vm563, %v1499, %v1503
      %v1506 = vshrl.u32 %v1414, 16
      %v1508 = vshll.u32 %v1414, 16
      %v1510 = vrot.slane %v1508, 1
      %v1511 = vor.u32 %v1506, %v1510
      %v1513 = vshll.u32 %v1478, 16
      %v1515 = vrot.slane %v1513, 1
      %v1516 = vsel %vm563, %v1511, %v1515
      %v1518 = vshrl.u32 %v1415, 16
      %v1520 = vshll.u32 %v1415, 16
      %v1522 = vrot.slane %v1520, 1
      %v1523 = vor.u32 %v1518, %v1522
      %v1525 = vshll.u32 %v1479, 16
      %v1527 = vrot.slane %v1525, 1
      %v1528 = vsel %vm563, %v1523, %v1527
      %v1530 = vshrl.u32 %v1416, 16
      %v1532 = vshll.u32 %v1416, 16
      %v1534 = vrot.slane %v1532, 1
      %v1535 = vor.u32 %v1530, %v1534
      %v1537 = vshll.u32 %v1480, 16
      %v1539 = vrot.slane %v1537, 1
      %v1540 = vsel %vm563, %v1535, %v1539
      %v1542 = vshrl.u32 %v1417, 16
      %v1544 = vshll.u32 %v1417, 16
      %v1546 = vrot.slane %v1544, 1
      %v1547 = vor.u32 %v1542, %v1546
      %v1549 = vshll.u32 %v1481, 16
      %v1551 = vrot.slane %v1549, 1
      %v1552 = vsel %vm563, %v1547, %v1551
      %v1554 = vshrl.u32 %v1418, 16
      %v1556 = vshll.u32 %v1418, 16
      %v1558 = vrot.slane %v1556, 1
      %v1559 = vor.u32 %v1554, %v1558
      %v1561 = vshll.u32 %v1482, 16
      %v1563 = vrot.slane %v1561, 1
      %v1564 = vsel %vm563, %v1559, %v1563
      %v1566 = vshrl.u32 %v1419, 16
      %v1568 = vshll.u32 %v1419, 16
      %v1570 = vrot.slane %v1568, 1
      %v1571 = vor.u32 %v1566, %v1570
      %v1573 = vshll.u32 %v1483, 16
      %v1575 = vrot.slane %v1573, 1
      %v1576 = vsel %vm563, %v1571, %v1575
      %v1578 = vshrl.u32 %v1420, 16
      %v1580 = vshll.u32 %v1420, 16
      %v1582 = vrot.slane %v1580, 1
      %v1583 = vor.u32 %v1578, %v1582
      %v1585 = vshll.u32 %v1484, 16
      %v1587 = vrot.slane %v1585, 1
      %v1588 = vsel %vm563, %v1583, %v1587
      %v1590 = vshrl.u32 %v1421, 16
      %v1592 = vshll.u32 %v1421, 16
      %v1594 = vrot.slane %v1592, 1
      %v1595 = vor.u32 %v1590, %v1594
      %v1597 = vshll.u32 %v1485, 16
      %v1599 = vrot.slane %v1597, 1
      %v1600 = vsel %vm563, %v1595, %v1599
      %v1602 = vshrl.u32 %v1422, 16
      %v1604 = vshll.u32 %v1422, 16
      %v1606 = vrot.slane %v1604, 1
      %v1607 = vor.u32 %v1602, %v1606
      %v1609 = vshll.u32 %v1486, 16
      %v1611 = vrot.slane %v1609, 1
      %v1612 = vsel %vm563, %v1607, %v1611
      %v1614 = vshrl.u32 %v1423, 16
      %v1616 = vshll.u32 %v1423, 16
      %v1618 = vrot.slane %v1616, 1
      %v1619 = vor.u32 %v1614, %v1618
      %v1621 = vshll.u32 %v1487, 16
      %v1623 = vrot.slane %v1621, 1
      %v1624 = vsel %vm563, %v1619, %v1623
      %v1626 = vshrl.u32 %v1424, 16
      %v1628 = vshll.u32 %v1424, 16
      %v1630 = vrot.slane %v1628, 1
      %v1631 = vor.u32 %v1626, %v1630
      %v1633 = vshll.u32 %v1488, 16
      %v1635 = vrot.slane %v1633, 1
      %v1636 = vsel %vm563, %v1631, %v1635
      %v1638 = vshrl.u32 %v1425, 16
      %v1640 = vshll.u32 %v1425, 16
      %v1642 = vrot.slane %v1640, 1
      %v1643 = vor.u32 %v1638, %v1642
      %v1645 = vshll.u32 %v1489, 16
      %v1647 = vrot.slane %v1645, 1
      %v1648 = vsel %vm563, %v1643, %v1647
      %v1650 = vshrl.u32 %v1426, 16
      %v1652 = vshll.u32 %v1426, 16
      %v1654 = vrot.slane %v1652, 1
      %v1655 = vor.u32 %v1650, %v1654
      %v1657 = vshll.u32 %v1490, 16
      %v1659 = vrot.slane %v1657, 1
      %v1660 = vsel %vm563, %v1655, %v1659
      %v1662 = vshrl.u32 %v1427, 16
      %v1664 = vshll.u32 %v1427, 16
      %v1666 = vrot.slane %v1664, 1
      %v1667 = vor.u32 %v1662, %v1666
      %v1669 = vshll.u32 %v1491, 16
      %v1671 = vrot.slane %v1669, 1
      %v1672 = vsel %vm563, %v1667, %v1671
      %v1674 = vshrl.u32 %v1428, 16
      %v1676 = vshll.u32 %v1428, 16
      %v1678 = vrot.slane %v1676, 1
      %v1679 = vor.u32 %v1674, %v1678
      %v1681 = vshll.u32 %v1492, 16
      %v1683 = vrot.slane %v1681, 1
      %v1684 = vsel %vm563, %v1679, %v1683
      %v1717 = vunpack.c.l.b16 %v403
      %v1718 = vunpack.c.l.b16 %v404
      %v1719 = vunpack.c.l.b16 %v405
      %v1720 = vunpack.c.l.b16 %v406
      %v1721 = vunpack.c.l.b16 %v407
      %v1722 = vunpack.c.l.b16 %v408
      %v1723 = vunpack.c.l.b16 %v409
      %v1724 = vunpack.c.l.b16 %v410
      %v1725 = vunpack.c.l.b16 %v411
      %v1726 = vunpack.c.l.b16 %v412
      %v1727 = vunpack.c.l.b16 %v413
      %v1728 = vunpack.c.l.b16 %v414
      %v1729 = vunpack.c.l.b16 %v415
      %v1730 = vunpack.c.l.b16 %v416
      %v1731 = vunpack.c.l.b16 %v417
      %v1732 = vunpack.c.l.b16 %v418
      %v1733 = vpack.c.b16 %v1382, %v1717
      %v1734 = vpack.c.b16 %v1384, %v1718
      %v1735 = vpack.c.b16 %v1386, %v1719
      %v1736 = vpack.c.b16 %v1388, %v1720
      %v1737 = vpack.c.b16 %v1390, %v1721
      %v1738 = vpack.c.b16 %v1392, %v1722
      %v1739 = vpack.c.b16 %v1394, %v1723
      %v1740 = vpack.c.b16 %v1396, %v1724
      %v1741 = vpack.c.b16 %v1398, %v1725
      %v1742 = vpack.c.b16 %v1400, %v1726
      %v1743 = vpack.c.b16 %v1402, %v1727
      %v1744 = vpack.c.b16 %v1404, %v1728
      %v1745 = vpack.c.b16 %v1406, %v1729
      %v1746 = vpack.c.b16 %v1408, %v1730
      %v1747 = vpack.c.b16 %v1410, %v1731
      %v1748 = vpack.c.b16 %v1412, %v1732
      %v1749 = vrot.slane %v1733, 1
      %v1750 = vrot.slane %v1477, 1
      %v1751 = vsel %vm820, %v1749, %v1750
      %v1752 = vrot.slane %v1734, 1
      %v1753 = vrot.slane %v1478, 1
      %v1754 = vsel %vm820, %v1752, %v1753
      %v1755 = vrot.slane %v1735, 1
      %v1756 = vrot.slane %v1479, 1
      %v1757 = vsel %vm820, %v1755, %v1756
      %v1758 = vrot.slane %v1736, 1
      %v1759 = vrot.slane %v1480, 1
      %v1760 = vsel %vm820, %v1758, %v1759
      %v1761 = vrot.slane %v1737, 1
      %v1762 = vrot.slane %v1481, 1
      %v1763 = vsel %vm820, %v1761, %v1762
      %v1764 = vrot.slane %v1738, 1
      %v1765 = vrot.slane %v1482, 1
      %v1766 = vsel %vm820, %v1764, %v1765
      %v1767 = vrot.slane %v1739, 1
      %v1768 = vrot.slane %v1483, 1
      %v1769 = vsel %vm820, %v1767, %v1768
      %v1770 = vrot.slane %v1740, 1
      %v1771 = vrot.slane %v1484, 1
      %v1772 = vsel %vm820, %v1770, %v1771
      %v1773 = vrot.slane %v1741, 1
      %v1774 = vrot.slane %v1485, 1
      %v1775 = vsel %vm820, %v1773, %v1774
      %v1776 = vrot.slane %v1742, 1
      %v1777 = vrot.slane %v1486, 1
      %v1778 = vsel %vm820, %v1776, %v1777
      %v1779 = vrot.slane %v1743, 1
      %v1780 = vrot.slane %v1487, 1
      %v1781 = vsel %vm820, %v1779, %v1780
      %v1782 = vrot.slane %v1744, 1
      %v1783 = vrot.slane %v1488, 1
      %v1784 = vsel %vm820, %v1782, %v1783
      %v1785 = vrot.slane %v1745, 1
      %v1786 = vrot.slane %v1489, 1
      %v1787 = vsel %vm820, %v1785, %v1786
      %v1788 = vrot.slane %v1746, 1
      %v1789 = vrot.slane %v1490, 1
      %v1790 = vsel %vm820, %v1788, %v1789
      %v1791 = vrot.slane %v1747, 1
      %v1792 = vrot.slane %v1491, 1
      %v1793 = vsel %vm820, %v1791, %v1792
      %v1794 = vrot.slane %v1748, 1
      %v1795 = vrot.slane %v1492, 1
      %v1796 = vsel %vm820, %v1794, %v1795
      %v1813 = vld [vmem:[%s1] sm:$0xf]
      %v1814 = vld [vmem:[%s1 + $0x4] sm:$0xf]
      %v1815 = vld [vmem:[%s1 + $0x8] sm:$0xf]
      %v1816 = vld [vmem:[%s1 + $0xc] sm:$0xf]
      %v1817 = vld [vmem:[%s1 + $0x10] sm:$0xf]
      %v1818 = vld [vmem:[%s1 + $0x14] sm:$0xf]
      %v1819 = vld [vmem:[%s1 + $0x18] sm:$0xf]
      %v1820 = vld [vmem:[%s1 + $0x1c] sm:$0xf]
      %v1821 = vld [vmem:[%s1 + $0x20] sm:$0xf]
      %v1822 = vld [vmem:[%s1 + $0x24] sm:$0xf]
      %v1823 = vld [vmem:[%s1 + $0x28] sm:$0xf]
      %v1824 = vld [vmem:[%s1 + $0x2c] sm:$0xf]
      %v1825 = vld [vmem:[%s1 + $0x30] sm:$0xf]
      %v1826 = vld [vmem:[%s1 + $0x34] sm:$0xf]
      %v1827 = vld [vmem:[%s1 + $0x38] sm:$0xf]
      %v1828 = vld [vmem:[%s1 + $0x3c] sm:$0xf]
      %v1829 = vld [vmem:[%s1 + $0x40] sm:$0xf]
      %v1830 = vld [vmem:[%s1 + $0x44] sm:$0xf]
      %v1831 = vld [vmem:[%s1 + $0x48] sm:$0xf]
      %v1832 = vld [vmem:[%s1 + $0x4c] sm:$0xf]
      %v1833 = vld [vmem:[%s1 + $0x50] sm:$0xf]
      %v1834 = vld [vmem:[%s1 + $0x54] sm:$0xf]
      %v1835 = vld [vmem:[%s1 + $0x58] sm:$0xf]
      %v1836 = vld [vmem:[%s1 + $0x5c] sm:$0xf]
      %v1837 = vld [vmem:[%s1 + $0x60] sm:$0xf]
      %v1838 = vld [vmem:[%s1 + $0x64] sm:$0xf]
      %v1839 = vld [vmem:[%s1 + $0x68] sm:$0xf]
      %v1840 = vld [vmem:[%s1 + $0x6c] sm:$0xf]
      %v1841 = vld [vmem:[%s1 + $0x70] sm:$0xf]
      %v1842 = vld [vmem:[%s1 + $0x74] sm:$0xf]
      %v1843 = vld [vmem:[%s1 + $0x78] sm:$0xf]
      %v1844 = vld [vmem:[%s1 + $0x7c] sm:$0xf]
      %v1845 = vld [vmem:[%s1 + $0x80] sm:$0xf]
      %v1846 = vld [vmem:[%s1 + $0x84] sm:$0xf]
      %v1847 = vld [vmem:[%s1 + $0x88] sm:$0xf]
      %v1848 = vld [vmem:[%s1 + $0x8c] sm:$0xf]
      %v1849 = vld [vmem:[%s1 + $0x90] sm:$0xf]
      %v1850 = vld [vmem:[%s1 + $0x94] sm:$0xf]
      %v1851 = vld [vmem:[%s1 + $0x98] sm:$0xf]
      %v1852 = vld [vmem:[%s1 + $0x9c] sm:$0xf]
      %v1853 = vld [vmem:[%s1 + $0xa0] sm:$0xf]
      %v1854 = vld [vmem:[%s1 + $0xa4] sm:$0xf]
      %v1855 = vld [vmem:[%s1 + $0xa8] sm:$0xf]
      %v1856 = vld [vmem:[%s1 + $0xac] sm:$0xf]
      %v1857 = vld [vmem:[%s1 + $0xb0] sm:$0xf]
      %v1858 = vld [vmem:[%s1 + $0xb4] sm:$0xf]
      %v1859 = vld [vmem:[%s1 + $0xb8] sm:$0xf]
      %v1860 = vld [vmem:[%s1 + $0xbc] sm:$0xf]
      %v1861 = vld [vmem:[%s1 + $0xc0] sm:$0xf]
      %v1862 = vld [vmem:[%s1 + $0xc4] sm:$0xf]
      %v1863 = vld [vmem:[%s1 + $0xc8] sm:$0xf]
      %v1864 = vld [vmem:[%s1 + $0xcc] sm:$0xf]
      %v1865 = vld [vmem:[%s1 + $0xd0] sm:$0xf]
      %v1866 = vld [vmem:[%s1 + $0xd4] sm:$0xf]
      %v1867 = vld [vmem:[%s1 + $0xd8] sm:$0xf]
      %v1868 = vld [vmem:[%s1 + $0xdc] sm:$0xf]
      %v1869 = vld [vmem:[%s1 + $0xe0] sm:$0xf]
      %v1870 = vld [vmem:[%s1 + $0xe4] sm:$0xf]
      %v1871 = vld [vmem:[%s1 + $0xe8] sm:$0xf]
      %v1872 = vld [vmem:[%s1 + $0xec] sm:$0xf]
      %v1873 = vld [vmem:[%s1 + $0xf0] sm:$0xf]
      %v1874 = vld [vmem:[%s1 + $0xf4] sm:$0xf]
      %v1875 = vld [vmem:[%s1 + $0xf8] sm:$0xf]
      %v1876 = vld [vmem:[%s1 + $0xfc] sm:$0xf]
      %v1877 = vld [vmem:[%s1 + $0x100] sm:$0xf]
      %v1878 = vld [vmem:[%s1 + $0x104] sm:$0xf]
      %v1879 = vld [vmem:[%s1 + $0x108] sm:$0xf]
      %v1880 = vld [vmem:[%s1 + $0x10c] sm:$0xf]
      %v1881 = vld [vmem:[%s1 + $0x110] sm:$0xf]
      %v1882 = vld [vmem:[%s1 + $0x114] sm:$0xf]
      %v1883 = vld [vmem:[%s1 + $0x118] sm:$0xf]
      %v1884 = vld [vmem:[%s1 + $0x11c] sm:$0xf]
      %v1885 = vld [vmem:[%s1 + $0x120] sm:$0xf]
      %v1886 = vld [vmem:[%s1 + $0x124] sm:$0xf]
      %v1887 = vld [vmem:[%s1 + $0x128] sm:$0xf]
      %v1888 = vld [vmem:[%s1 + $0x12c] sm:$0xf]
      %v1889 = vld [vmem:[%s1 + $0x130] sm:$0xf]
      %v1890 = vld [vmem:[%s1 + $0x134] sm:$0xf]
      %v1891 = vld [vmem:[%s1 + $0x138] sm:$0xf]
      %v1892 = vld [vmem:[%s1 + $0x13c] sm:$0xf]
      %v1893 = vld [vmem:[%s1 + $0x140] sm:$0xf]
      %v1894 = vld [vmem:[%s1 + $0x144] sm:$0xf]
      %v1895 = vld [vmem:[%s1 + $0x148] sm:$0xf]
      %v1896 = vld [vmem:[%s1 + $0x14c] sm:$0xf]
      %v1897 = vld [vmem:[%s1 + $0x150] sm:$0xf]
      %v1898 = vld [vmem:[%s1 + $0x154] sm:$0xf]
      %v1899 = vld [vmem:[%s1 + $0x158] sm:$0xf]
      %v1900 = vld [vmem:[%s1 + $0x15c] sm:$0xf]
      %v1901 = vld [vmem:[%s1 + $0x160] sm:$0xf]
      %v1902 = vld [vmem:[%s1 + $0x164] sm:$0xf]
      %v1903 = vld [vmem:[%s1 + $0x168] sm:$0xf]
      %v1904 = vld [vmem:[%s1 + $0x16c] sm:$0xf]
      %v1905 = vld [vmem:[%s1 + $0x170] sm:$0xf]
      %v1906 = vld [vmem:[%s1 + $0x174] sm:$0xf]
      %v1907 = vld [vmem:[%s1 + $0x178] sm:$0xf]
      %v1908 = vld [vmem:[%s1 + $0x17c] sm:$0xf]
      %v1909 = vld [vmem:[%s1 + $0x180] sm:$0xf]
      %v1910 = vld [vmem:[%s1 + $0x184] sm:$0xf]
      %v1911 = vld [vmem:[%s1 + $0x188] sm:$0xf]
      %v1912 = vld [vmem:[%s1 + $0x18c] sm:$0xf]
      %v1913 = vld [vmem:[%s1 + $0x190] sm:$0xf]
      %v1914 = vld [vmem:[%s1 + $0x194] sm:$0xf]
      %v1915 = vld [vmem:[%s1 + $0x198] sm:$0xf]
      %v1916 = vld [vmem:[%s1 + $0x19c] sm:$0xf]
      %v1917 = vld [vmem:[%s1 + $0x1a0] sm:$0xf]
      %v1918 = vld [vmem:[%s1 + $0x1a4] sm:$0xf]
      %v1919 = vld [vmem:[%s1 + $0x1a8] sm:$0xf]
      %v1920 = vld [vmem:[%s1 + $0x1ac] sm:$0xf]
      %v1921 = vld [vmem:[%s1 + $0x1b0] sm:$0xf]
      %v1922 = vld [vmem:[%s1 + $0x1b4] sm:$0xf]
      %v1923 = vld [vmem:[%s1 + $0x1b8] sm:$0xf]
      %v1924 = vld [vmem:[%s1 + $0x1bc] sm:$0xf]
      %v1925 = vld [vmem:[%s1 + $0x1c0] sm:$0xf]
      %v1926 = vld [vmem:[%s1 + $0x1c4] sm:$0xf]
      %v1927 = vld [vmem:[%s1 + $0x1c8] sm:$0xf]
      %v1928 = vld [vmem:[%s1 + $0x1cc] sm:$0xf]
      %v1929 = vld [vmem:[%s1 + $0x1d0] sm:$0xf]
      %v1930 = vld [vmem:[%s1 + $0x1d4] sm:$0xf]
      %v1931 = vld [vmem:[%s1 + $0x1d8] sm:$0xf]
      %v1932 = vld [vmem:[%s1 + $0x1dc] sm:$0xf]
      %v1933 = vld [vmem:[%s1 + $0x1e0] sm:$0xf]
      %v1934 = vld [vmem:[%s1 + $0x1e4] sm:$0xf]
      %v1935 = vld [vmem:[%s1 + $0x1e8] sm:$0xf]
      %v1936 = vld [vmem:[%s1 + $0x1ec] sm:$0xf]
      %v1937 = vld [vmem:[%s1 + $0x1f0] sm:$0xf]
      %v1938 = vld [vmem:[%s1 + $0x1f4] sm:$0xf]
      %v1939 = vld [vmem:[%s1 + $0x1f8] sm:$0xf]
      %v1940 = vld [vmem:[%s1 + $0x1fc] sm:$0xf]
      %v1941 = vld [vmem:[%s1 + $0x200] sm:$0xf]
      %v1942 = vld [vmem:[%s1 + $0x204] sm:$0xf]
      %v1943 = vld [vmem:[%s1 + $0x208] sm:$0xf]
      %v1944 = vld [vmem:[%s1 + $0x20c] sm:$0xf]
      %v1945 = vld [vmem:[%s1 + $0x210] sm:$0xf]
      %v1946 = vld [vmem:[%s1 + $0x214] sm:$0xf]
      %v1947 = vld [vmem:[%s1 + $0x218] sm:$0xf]
      %v1948 = vld [vmem:[%s1 + $0x21c] sm:$0xf]
      %v1949 = vld [vmem:[%s1 + $0x220] sm:$0xf]
      %v1950 = vld [vmem:[%s1 + $0x224] sm:$0xf]
      %v1951 = vld [vmem:[%s1 + $0x228] sm:$0xf]
      %v1952 = vld [vmem:[%s1 + $0x22c] sm:$0xf]
      %v1953 = vld [vmem:[%s1 + $0x230] sm:$0xf]
      %v1954 = vld [vmem:[%s1 + $0x234] sm:$0xf]
      %v1955 = vld [vmem:[%s1 + $0x238] sm:$0xf]
      %v1956 = vld [vmem:[%s1 + $0x23c] sm:$0xf]
      %v2101 = vunpack.c.l.b16 %v1813
      %v2102 = vunpack.c.l.b16 %v1814
      %v2103 = vunpack.c.l.b16 %v1815
      %v2104 = vunpack.c.l.b16 %v1816
      %v2105 = vunpack.c.l.b16 %v1817
      %v2106 = vunpack.c.l.b16 %v1818
      %v2107 = vunpack.c.l.b16 %v1819
      %v2108 = vunpack.c.l.b16 %v1820
      %v2109 = vunpack.c.l.b16 %v1821
      %v2110 = vunpack.c.l.b16 %v1822
      %v2111 = vunpack.c.l.b16 %v1823
      %v2112 = vunpack.c.l.b16 %v1824
      %v2113 = vunpack.c.l.b16 %v1825
      %v2114 = vunpack.c.l.b16 %v1826
      %v2115 = vunpack.c.l.b16 %v1827
      %v2116 = vunpack.c.l.b16 %v1828
      %v2117 = vunpack.c.l.b16 %v1829
      %v2118 = vunpack.c.l.b16 %v1830
      %v2119 = vunpack.c.l.b16 %v1831
      %v2120 = vunpack.c.l.b16 %v1832
      %v2121 = vunpack.c.l.b16 %v1833
      %v2122 = vunpack.c.l.b16 %v1834
      %v2123 = vunpack.c.l.b16 %v1835
      %v2124 = vunpack.c.l.b16 %v1836
      %v2125 = vunpack.c.l.b16 %v1837
      %v2126 = vunpack.c.l.b16 %v1838
      %v2127 = vunpack.c.l.b16 %v1839
      %v2128 = vunpack.c.l.b16 %v1840
      %v2129 = vunpack.c.l.b16 %v1841
      %v2130 = vunpack.c.l.b16 %v1842
      %v2131 = vunpack.c.l.b16 %v1843
      %v2132 = vunpack.c.l.b16 %v1844
      %v2133 = vunpack.c.l.b16 %v1845
      %v2134 = vunpack.c.l.b16 %v1846
      %v2135 = vunpack.c.l.b16 %v1847
      %v2136 = vunpack.c.l.b16 %v1848
      %v2137 = vunpack.c.l.b16 %v1849
      %v2138 = vunpack.c.l.b16 %v1850
      %v2139 = vunpack.c.l.b16 %v1851
      %v2140 = vunpack.c.l.b16 %v1852
      %v2141 = vunpack.c.l.b16 %v1853
      %v2142 = vunpack.c.l.b16 %v1854
      %v2143 = vunpack.c.l.b16 %v1855
      %v2144 = vunpack.c.l.b16 %v1856
      %v2145 = vunpack.c.l.b16 %v1857
      %v2146 = vunpack.c.l.b16 %v1858
      %v2147 = vunpack.c.l.b16 %v1859
      %v2148 = vunpack.c.l.b16 %v1860
      %v2149 = vunpack.c.l.b16 %v1861
      %v2150 = vunpack.c.l.b16 %v1862
      %v2151 = vunpack.c.l.b16 %v1863
      %v2152 = vunpack.c.l.b16 %v1864
      %v2153 = vunpack.c.l.b16 %v1865
      %v2154 = vunpack.c.l.b16 %v1866
      %v2155 = vunpack.c.l.b16 %v1867
      %v2156 = vunpack.c.l.b16 %v1868
      %v2157 = vunpack.c.l.b16 %v1869
      %v2158 = vunpack.c.l.b16 %v1870
      %v2159 = vunpack.c.l.b16 %v1871
      %v2160 = vunpack.c.l.b16 %v1872
      %v2161 = vunpack.c.l.b16 %v1873
      %v2162 = vunpack.c.l.b16 %v1874
      %v2163 = vunpack.c.l.b16 %v1875
      %v2164 = vunpack.c.l.b16 %v1876
      %v2165 = vunpack.c.l.b16 %v1877
      %v2166 = vunpack.c.l.b16 %v1878
      %v2167 = vunpack.c.l.b16 %v1879
      %v2168 = vunpack.c.l.b16 %v1880
      %v2169 = vunpack.c.l.b16 %v1881
      %v2170 = vunpack.c.l.b16 %v1882
      %v2171 = vunpack.c.l.b16 %v1883
      %v2172 = vunpack.c.l.b16 %v1884
      %v2173 = vunpack.c.l.b16 %v1885
      %v2174 = vunpack.c.l.b16 %v1886
      %v2175 = vunpack.c.l.b16 %v1887
      %v2176 = vunpack.c.l.b16 %v1888
      %v2177 = vunpack.c.l.b16 %v1889
      %v2178 = vunpack.c.l.b16 %v1890
      %v2179 = vunpack.c.l.b16 %v1891
      %v2180 = vunpack.c.l.b16 %v1892
      %v2181 = vunpack.c.l.b16 %v1893
      %v2182 = vunpack.c.l.b16 %v1894
      %v2183 = vunpack.c.l.b16 %v1895
      %v2184 = vunpack.c.l.b16 %v1896
      %v2185 = vunpack.c.l.b16 %v1897
      %v2186 = vunpack.c.l.b16 %v1898
      %v2187 = vunpack.c.l.b16 %v1899
      %v2188 = vunpack.c.l.b16 %v1900
      %v2189 = vunpack.c.l.b16 %v1901
      %v2190 = vunpack.c.l.b16 %v1902
      %v2191 = vunpack.c.l.b16 %v1903
      %v2192 = vunpack.c.l.b16 %v1904
      %v2193 = vunpack.c.l.b16 %v1905
      %v2194 = vunpack.c.l.b16 %v1906
      %v2195 = vunpack.c.l.b16 %v1907
      %v2196 = vunpack.c.l.b16 %v1908
      %v2197 = vunpack.c.l.b16 %v1909
      %v2198 = vunpack.c.l.b16 %v1910
      %v2199 = vunpack.c.l.b16 %v1911
      %v2200 = vunpack.c.l.b16 %v1912
      %v2201 = vunpack.c.l.b16 %v1913
      %v2202 = vunpack.c.l.b16 %v1914
      %v2203 = vunpack.c.l.b16 %v1915
      %v2204 = vunpack.c.l.b16 %v1916
      %v2205 = vunpack.c.l.b16 %v1917
      %v2206 = vunpack.c.l.b16 %v1918
      %v2207 = vunpack.c.l.b16 %v1919
      %v2208 = vunpack.c.l.b16 %v1920
      %v2209 = vunpack.c.l.b16 %v1921
      %v2210 = vunpack.c.l.b16 %v1922
      %v2211 = vunpack.c.l.b16 %v1923
      %v2212 = vunpack.c.l.b16 %v1924
      %v2213 = vunpack.c.l.b16 %v1925
      %v2214 = vunpack.c.l.b16 %v1926
      %v2215 = vunpack.c.l.b16 %v1927
      %v2216 = vunpack.c.l.b16 %v1928
      %v2217 = vunpack.c.l.b16 %v1929
      %v2218 = vunpack.c.l.b16 %v1930
      %v2219 = vunpack.c.l.b16 %v1931
      %v2220 = vunpack.c.l.b16 %v1932
      %v2221 = vunpack.c.l.b16 %v1933
      %v2222 = vunpack.c.l.b16 %v1934
      %v2223 = vunpack.c.l.b16 %v1935
      %v2224 = vunpack.c.l.b16 %v1936
      %v2225 = vunpack.c.l.b16 %v1937
      %v2226 = vunpack.c.l.b16 %v1938
      %v2227 = vunpack.c.l.b16 %v1939
      %v2228 = vunpack.c.l.b16 %v1940
      %v2229 = vunpack.c.l.b16 %v1941
      %v2230 = vunpack.c.l.b16 %v1942
      %v2231 = vunpack.c.l.b16 %v1943
      %v2232 = vunpack.c.l.b16 %v1944
      %v2233 = vunpack.c.l.b16 %v1945
      %v2234 = vunpack.c.l.b16 %v1946
      %v2235 = vunpack.c.l.b16 %v1947
      %v2236 = vunpack.c.l.b16 %v1948
      %v2237 = vunpack.c.l.b16 %v1949
      %v2238 = vunpack.c.l.b16 %v1950
      %v2239 = vunpack.c.l.b16 %v1951
      %v2240 = vunpack.c.l.b16 %v1952
      %v2241 = vunpack.c.l.b16 %v1953
      %v2242 = vunpack.c.l.b16 %v1954
      %v2243 = vunpack.c.l.b16 %v1955
      %v2244 = vunpack.c.l.b16 %v1956
      %v2245 = vpack.c.b16 %v2102, %v2101
      %v2246 = vpack.c.b16 %v2104, %v2103
      %v2247 = vpack.c.b16 %v2106, %v2105
      %v2248 = vpack.c.b16 %v2108, %v2107
      %v2249 = vpack.c.b16 %v2110, %v2109
      %v2250 = vpack.c.b16 %v2112, %v2111
      %v2251 = vpack.c.b16 %v2114, %v2113
      %v2252 = vpack.c.b16 %v2116, %v2115
      %v2253 = vpack.c.b16 %v2118, %v2117
      %v2254 = vpack.c.b16 %v2120, %v2119
      %v2255 = vpack.c.b16 %v2122, %v2121
      %v2256 = vpack.c.b16 %v2124, %v2123
      %v2257 = vpack.c.b16 %v2126, %v2125
      %v2258 = vpack.c.b16 %v2128, %v2127
      %v2259 = vpack.c.b16 %v2130, %v2129
      %v2260 = vpack.c.b16 %v2132, %v2131
      %v2261 = vpack.c.b16 %v2134, %v2133
      %v2262 = vpack.c.b16 %v2136, %v2135
      %v2263 = vpack.c.b16 %v2138, %v2137
      %v2264 = vpack.c.b16 %v2140, %v2139
      %v2265 = vpack.c.b16 %v2142, %v2141
      %v2266 = vpack.c.b16 %v2144, %v2143
      %v2267 = vpack.c.b16 %v2146, %v2145
      %v2268 = vpack.c.b16 %v2148, %v2147
      %v2269 = vpack.c.b16 %v2150, %v2149
      %v2270 = vpack.c.b16 %v2152, %v2151
      %v2271 = vpack.c.b16 %v2154, %v2153
      %v2272 = vpack.c.b16 %v2156, %v2155
      %v2273 = vpack.c.b16 %v2158, %v2157
      %v2274 = vpack.c.b16 %v2160, %v2159
      %v2275 = vpack.c.b16 %v2162, %v2161
      %v2276 = vpack.c.b16 %v2164, %v2163
      %v2277 = vpack.c.b16 %v2166, %v2165
      %v2278 = vpack.c.b16 %v2168, %v2167
      %v2279 = vpack.c.b16 %v2170, %v2169
      %v2280 = vpack.c.b16 %v2172, %v2171
      %v2281 = vpack.c.b16 %v2174, %v2173
      %v2282 = vpack.c.b16 %v2176, %v2175
      %v2283 = vpack.c.b16 %v2178, %v2177
      %v2284 = vpack.c.b16 %v2180, %v2179
      %v2285 = vpack.c.b16 %v2182, %v2181
      %v2286 = vpack.c.b16 %v2184, %v2183
      %v2287 = vpack.c.b16 %v2186, %v2185
      %v2288 = vpack.c.b16 %v2188, %v2187
      %v2289 = vpack.c.b16 %v2190, %v2189
      %v2290 = vpack.c.b16 %v2192, %v2191
      %v2291 = vpack.c.b16 %v2194, %v2193
      %v2292 = vpack.c.b16 %v2196, %v2195
      %v2293 = vpack.c.b16 %v2198, %v2197
      %v2294 = vpack.c.b16 %v2200, %v2199
      %v2295 = vpack.c.b16 %v2202, %v2201
      %v2296 = vpack.c.b16 %v2204, %v2203
      %v2297 = vpack.c.b16 %v2206, %v2205
      %v2298 = vpack.c.b16 %v2208, %v2207
      %v2299 = vpack.c.b16 %v2210, %v2209
      %v2300 = vpack.c.b16 %v2212, %v2211
      %v2301 = vpack.c.b16 %v2214, %v2213
      %v2302 = vpack.c.b16 %v2216, %v2215
      %v2303 = vpack.c.b16 %v2218, %v2217
      %v2304 = vpack.c.b16 %v2220, %v2219
      %v2305 = vpack.c.b16 %v2222, %v2221
      %v2306 = vpack.c.b16 %v2224, %v2223
      %v2307 = vpack.c.b16 %v2226, %v2225
      %v2308 = vpack.c.b16 %v2228, %v2227
      %v2309 = vpack.c.b16 %v2230, %v2229
      %v2310 = vpack.c.b16 %v2232, %v2231
      %v2311 = vpack.c.b16 %v2234, %v2233
      %v2312 = vpack.c.b16 %v2236, %v2235
      %v2313 = vpack.c.b16 %v2238, %v2237
      %v2314 = vpack.c.b16 %v2240, %v2239
      %v2315 = vpack.c.b16 %v2242, %v2241
      %v2316 = vpack.c.b16 %v2244, %v2243
      %2389 = vmatpush.bf16.msra.mxu0 %v2252
      %2390 = vmatpush.bf16.msra.mxu0 %v2251
      %2391 = vmatpush.bf16.msra.mxu0 %v2250
      %2392 = vmatpush.bf16.msra.mxu0 %v2249
      %2393 = vmatpush.bf16.msra.mxu0 %v2248
      %2394 = vmatpush.bf16.msra.mxu0 %v2247
      %2395 = vmatpush.bf16.msra.mxu0 %v2246
      %2396 = vmatpush.bf16.msra.mxu0 %v2245
      %2397 = vmatmul.bf16.gmra.mxu0 %v483
      %v2398 = vpop.f32.mrf.mxu0
      %v2399 = vadd.f32 0.0, %v2398
      %v2400 = vpop.f32.mrf.mxu0
      %v2401 = vadd.f32 0.0, %v2400
      %2402 = vmatmul.bf16.gmra.mxu0 %v484
      %v2403 = vpop.f32.mrf.mxu0
      %v2404 = vadd.f32 0.0, %v2403
      %v2405 = vpop.f32.mrf.mxu0
      %v2406 = vadd.f32 0.0, %v2405
      %2407 = vmatmul.bf16.gmra.mxu0 %v485
      %v2408 = vpop.f32.mrf.mxu0
      %v2409 = vadd.f32 0.0, %v2408
      %v2410 = vpop.f32.mrf.mxu0
      %v2411 = vadd.f32 0.0, %v2410
      %2412 = vmatmul.bf16.gmra.mxu0 %v486
      %v2413 = vpop.f32.mrf.mxu0
      %v2414 = vadd.f32 0.0, %v2413
      %v2415 = vpop.f32.mrf.mxu0
      %v2416 = vadd.f32 0.0, %v2415
      %2417 = vmatmul.bf16.gmra.mxu0 %v487
      %v2418 = vpop.f32.mrf.mxu0
      %v2419 = vadd.f32 0.0, %v2418
      %v2420 = vpop.f32.mrf.mxu0
      %v2421 = vadd.f32 0.0, %v2420
      %2422 = vmatmul.bf16.gmra.mxu0 %v488
      %v2423 = vpop.f32.mrf.mxu0
      %v2424 = vadd.f32 0.0, %v2423
      %v2425 = vpop.f32.mrf.mxu0
      %v2426 = vadd.f32 0.0, %v2425
      %2427 = vmatmul.bf16.gmra.mxu0 %v489
      %v2428 = vpop.f32.mrf.mxu0
      %v2429 = vadd.f32 0.0, %v2428
      %v2430 = vpop.f32.mrf.mxu0
      %v2431 = vadd.f32 0.0, %v2430
      %2432 = vmatmul.bf16.gmra.mxu0 %v490
      %v2433 = vpop.f32.mrf.mxu0
      %v2434 = vadd.f32 0.0, %v2433
      %v2435 = vpop.f32.mrf.mxu0
      %v2436 = vadd.f32 0.0, %v2435
      %2437 = vmatmul.bf16.gmra.mxu0 %v491
      %v2438 = vpop.f32.mrf.mxu0
      %v2439 = vadd.f32 0.0, %v2438
      %v2440 = vpop.f32.mrf.mxu0
      %v2441 = vadd.f32 0.0, %v2440
      %2442 = vmatmul.bf16.gmra.mxu0 %v492
      %v2443 = vpop.f32.mrf.mxu0
      %v2444 = vadd.f32 0.0, %v2443
      %v2445 = vpop.f32.mrf.mxu0
      %v2446 = vadd.f32 0.0, %v2445
      %2447 = vmatmul.bf16.gmra.mxu0 %v493
      %v2448 = vpop.f32.mrf.mxu0
      %v2449 = vadd.f32 0.0, %v2448
      %v2450 = vpop.f32.mrf.mxu0
      %v2451 = vadd.f32 0.0, %v2450
      %2452 = vmatmul.bf16.gmra.mxu0 %v494
      %v2453 = vpop.f32.mrf.mxu0
      %v2454 = vadd.f32 0.0, %v2453
      %v2455 = vpop.f32.mrf.mxu0
      %v2456 = vadd.f32 0.0, %v2455
      %2457 = vmatmul.bf16.gmra.mxu0 %v495
      %v2458 = vpop.f32.mrf.mxu0
      %v2459 = vadd.f32 0.0, %v2458
      %v2460 = vpop.f32.mrf.mxu0
      %v2461 = vadd.f32 0.0, %v2460
      %2462 = vmatmul.bf16.gmra.mxu0 %v496
      %v2463 = vpop.f32.mrf.mxu0
      %v2464 = vadd.f32 0.0, %v2463
      %v2465 = vpop.f32.mrf.mxu0
      %v2466 = vadd.f32 0.0, %v2465
      %2467 = vmatmul.bf16.gmra.mxu0 %v497
      %v2468 = vpop.f32.mrf.mxu0
      %v2469 = vadd.f32 0.0, %v2468
      %v2470 = vpop.f32.mrf.mxu0
      %v2471 = vadd.f32 0.0, %v2470
      %2472 = vmatmul.bf16.gmra.mxu0 %v498
      %v2473 = vpop.f32.mrf.mxu0
      %v2474 = vadd.f32 0.0, %v2473
      %v2475 = vpop.f32.mrf.mxu0
      %v2476 = vadd.f32 0.0, %v2475
      %2477 = vdwg.mxu0
      %2478 = vmatpush.bf16.msra.mxu0 %v2260
      %2479 = vmatpush.bf16.msra.mxu0 %v2259
      %2480 = vmatpush.bf16.msra.mxu0 %v2258
      %2481 = vmatpush.bf16.msra.mxu0 %v2257
      %2482 = vmatpush.bf16.msra.mxu0 %v2256
      %2483 = vmatpush.bf16.msra.mxu0 %v2255
      %2484 = vmatpush.bf16.msra.mxu0 %v2254
      %2485 = vmatpush.bf16.msra.mxu0 %v2253
      %2486 = vmatmul.bf16.gmra.mxu0 %v575
      %v2487 = vpop.f32.mrf.mxu0
      %v2488 = vadd.f32 %v2399, %v2487
      %v2489 = vpop.f32.mrf.mxu0
      %v2490 = vadd.f32 %v2401, %v2489
      %2491 = vmatmul.bf16.gmra.mxu0 %v587
      %v2492 = vpop.f32.mrf.mxu0
      %v2493 = vadd.f32 %v2404, %v2492
      %v2494 = vpop.f32.mrf.mxu0
      %v2495 = vadd.f32 %v2406, %v2494
      %2496 = vmatmul.bf16.gmra.mxu0 %v599
      %v2497 = vpop.f32.mrf.mxu0
      %v2498 = vadd.f32 %v2409, %v2497
      %v2499 = vpop.f32.mrf.mxu0
      %v2500 = vadd.f32 %v2411, %v2499
      %2501 = vmatmul.bf16.gmra.mxu0 %v611
      %v2502 = vpop.f32.mrf.mxu0
      %v2503 = vadd.f32 %v2414, %v2502
      %v2504 = vpop.f32.mrf.mxu0
      %v2505 = vadd.f32 %v2416, %v2504
      %2506 = vmatmul.bf16.gmra.mxu0 %v623
      %v2507 = vpop.f32.mrf.mxu0
      %v2508 = vadd.f32 %v2419, %v2507
      %v2509 = vpop.f32.mrf.mxu0
      %v2510 = vadd.f32 %v2421, %v2509
      %2511 = vmatmul.bf16.gmra.mxu0 %v635
      %v2512 = vpop.f32.mrf.mxu0
      %v2513 = vadd.f32 %v2424, %v2512
      %v2514 = vpop.f32.mrf.mxu0
      %v2515 = vadd.f32 %v2426, %v2514
      %2516 = vmatmul.bf16.gmra.mxu0 %v647
      %v2517 = vpop.f32.mrf.mxu0
      %v2518 = vadd.f32 %v2429, %v2517
      %v2519 = vpop.f32.mrf.mxu0
      %v2520 = vadd.f32 %v2431, %v2519
      %2521 = vmatmul.bf16.gmra.mxu0 %v659
      %v2522 = vpop.f32.mrf.mxu0
      %v2523 = vadd.f32 %v2434, %v2522
      %v2524 = vpop.f32.mrf.mxu0
      %v2525 = vadd.f32 %v2436, %v2524
      %2526 = vmatmul.bf16.gmra.mxu0 %v671
      %v2527 = vpop.f32.mrf.mxu0
      %v2528 = vadd.f32 %v2439, %v2527
      %v2529 = vpop.f32.mrf.mxu0
      %v2530 = vadd.f32 %v2441, %v2529
      %2531 = vmatmul.bf16.gmra.mxu0 %v683
      %v2532 = vpop.f32.mrf.mxu0
      %v2533 = vadd.f32 %v2444, %v2532
      %v2534 = vpop.f32.mrf.mxu0
      %v2535 = vadd.f32 %v2446, %v2534
      %2536 = vmatmul.bf16.gmra.mxu0 %v695
      %v2537 = vpop.f32.mrf.mxu0
      %v2538 = vadd.f32 %v2449, %v2537
      %v2539 = vpop.f32.mrf.mxu0
      %v2540 = vadd.f32 %v2451, %v2539
      %2541 = vmatmul.bf16.gmra.mxu0 %v707
      %v2542 = vpop.f32.mrf.mxu0
      %v2543 = vadd.f32 %v2454, %v2542
      %v2544 = vpop.f32.mrf.mxu0
      %v2545 = vadd.f32 %v2456, %v2544
      %2546 = vmatmul.bf16.gmra.mxu0 %v719
      %v2547 = vpop.f32.mrf.mxu0
      %v2548 = vadd.f32 %v2459, %v2547
      %v2549 = vpop.f32.mrf.mxu0
      %v2550 = vadd.f32 %v2461, %v2549
      %2551 = vmatmul.bf16.gmra.mxu0 %v731
      %v2552 = vpop.f32.mrf.mxu0
      %v2553 = vadd.f32 %v2464, %v2552
      %v2554 = vpop.f32.mrf.mxu0
      %v2555 = vadd.f32 %v2466, %v2554
      %2556 = vmatmul.bf16.gmra.mxu0 %v743
      %v2557 = vpop.f32.mrf.mxu0
      %v2558 = vadd.f32 %v2469, %v2557
      %v2559 = vpop.f32.mrf.mxu0
      %v2560 = vadd.f32 %v2471, %v2559
      %2561 = vmatmul.bf16.gmra.mxu0 %v755
      %v2562 = vpop.f32.mrf.mxu0
      %v2563 = vadd.f32 %v2474, %v2562
      %v2564 = vpop.f32.mrf.mxu0
      %v2565 = vadd.f32 %v2476, %v2564
      %2566 = vdwg.mxu0
      %2567 = vmatpush.bf16.msra.mxu0 %v2268
      %2568 = vmatpush.bf16.msra.mxu0 %v2267
      %2569 = vmatpush.bf16.msra.mxu0 %v2266
      %2570 = vmatpush.bf16.msra.mxu0 %v2265
      %2571 = vmatpush.bf16.msra.mxu0 %v2264
      %2572 = vmatpush.bf16.msra.mxu0 %v2263
      %2573 = vmatpush.bf16.msra.mxu0 %v2262
      %2574 = vmatpush.bf16.msra.mxu0 %v2261
      %2575 = vmatmul.bf16.gmra.mxu0 %v823
      %v2576 = vpop.f32.mrf.mxu0
      %v2577 = vadd.f32 %v2488, %v2576
      %v2578 = vpop.f32.mrf.mxu0
      %v2579 = vadd.f32 %v2490, %v2578
      %2580 = vmatmul.bf16.gmra.mxu0 %v826
      %v2581 = vpop.f32.mrf.mxu0
      %v2582 = vadd.f32 %v2493, %v2581
      %v2583 = vpop.f32.mrf.mxu0
      %v2584 = vadd.f32 %v2495, %v2583
      %2585 = vmatmul.bf16.gmra.mxu0 %v829
      %v2586 = vpop.f32.mrf.mxu0
      %v2587 = vadd.f32 %v2498, %v2586
      %v2588 = vpop.f32.mrf.mxu0
      %v2589 = vadd.f32 %v2500, %v2588
      %2590 = vmatmul.bf16.gmra.mxu0 %v832
      %v2591 = vpop.f32.mrf.mxu0
      %v2592 = vadd.f32 %v2503, %v2591
      %v2593 = vpop.f32.mrf.mxu0
      %v2594 = vadd.f32 %v2505, %v2593
      %2595 = vmatmul.bf16.gmra.mxu0 %v835
      %v2596 = vpop.f32.mrf.mxu0
      %v2597 = vadd.f32 %v2508, %v2596
      %v2598 = vpop.f32.mrf.mxu0
      %v2599 = vadd.f32 %v2510, %v2598
      %2600 = vmatmul.bf16.gmra.mxu0 %v838
      %v2601 = vpop.f32.mrf.mxu0
      %v2602 = vadd.f32 %v2513, %v2601
      %v2603 = vpop.f32.mrf.mxu0
      %v2604 = vadd.f32 %v2515, %v2603
      %2605 = vmatmul.bf16.gmra.mxu0 %v841
      %v2606 = vpop.f32.mrf.mxu0
      %v2607 = vadd.f32 %v2518, %v2606
      %v2608 = vpop.f32.mrf.mxu0
      %v2609 = vadd.f32 %v2520, %v2608
      %2610 = vmatmul.bf16.gmra.mxu0 %v844
      %v2611 = vpop.f32.mrf.mxu0
      %v2612 = vadd.f32 %v2523, %v2611
      %v2613 = vpop.f32.mrf.mxu0
      %v2614 = vadd.f32 %v2525, %v2613
      %2615 = vmatmul.bf16.gmra.mxu0 %v847
      %v2616 = vpop.f32.mrf.mxu0
      %v2617 = vadd.f32 %v2528, %v2616
      %v2618 = vpop.f32.mrf.mxu0
      %v2619 = vadd.f32 %v2530, %v2618
      %2620 = vmatmul.bf16.gmra.mxu0 %v850
      %v2621 = vpop.f32.mrf.mxu0
      %v2622 = vadd.f32 %v2533, %v2621
      %v2623 = vpop.f32.mrf.mxu0
      %v2624 = vadd.f32 %v2535, %v2623
      %2625 = vmatmul.bf16.gmra.mxu0 %v853
      %v2626 = vpop.f32.mrf.mxu0
      %v2627 = vadd.f32 %v2538, %v2626
      %v2628 = vpop.f32.mrf.mxu0
      %v2629 = vadd.f32 %v2540, %v2628
      %2630 = vmatmul.bf16.gmra.mxu0 %v856
      %v2631 = vpop.f32.mrf.mxu0
      %v2632 = vadd.f32 %v2543, %v2631
      %v2633 = vpop.f32.mrf.mxu0
      %v2634 = vadd.f32 %v2545, %v2633
      %2635 = vmatmul.bf16.gmra.mxu0 %v859
      %v2636 = vpop.f32.mrf.mxu0
      %v2637 = vadd.f32 %v2548, %v2636
      %v2638 = vpop.f32.mrf.mxu0
      %v2639 = vadd.f32 %v2550, %v2638
      %2640 = vmatmul.bf16.gmra.mxu0 %v862
      %v2641 = vpop.f32.mrf.mxu0
      %v2642 = vadd.f32 %v2553, %v2641
      %v2643 = vpop.f32.mrf.mxu0
      %v2644 = vadd.f32 %v2555, %v2643
      %2645 = vmatmul.bf16.gmra.mxu0 %v865
      %v2646 = vpop.f32.mrf.mxu0
      %v2647 = vadd.f32 %v2558, %v2646
      %v2648 = vpop.f32.mrf.mxu0
      %v2649 = vadd.f32 %v2560, %v2648
      %2650 = vmatmul.bf16.gmra.mxu0 %v868
      %v2651 = vpop.f32.mrf.mxu0
      %v2652 = vadd.f32 %v2563, %v2651
      %v2653 = vpop.f32.mrf.mxu0
      %v2654 = vadd.f32 %v2565, %v2653
      %2655 = vdwg.mxu0
      %2656 = vmatpush.bf16.msra.mxu0 %v2276
      %2657 = vmatpush.bf16.msra.mxu0 %v2275
      %2658 = vmatpush.bf16.msra.mxu0 %v2274
      %2659 = vmatpush.bf16.msra.mxu0 %v2273
      %2660 = vmatpush.bf16.msra.mxu0 %v2272
      %2661 = vmatpush.bf16.msra.mxu0 %v2271
      %2662 = vmatpush.bf16.msra.mxu0 %v2270
      %2663 = vmatpush.bf16.msra.mxu0 %v2269
      %2664 = vmatmul.bf16.gmra.mxu0 %v949
      %v2665 = vpop.f32.mrf.mxu0
      %v2666 = vadd.f32 %v2577, %v2665
      %v2667 = vpop.f32.mrf.mxu0
      %v2668 = vadd.f32 %v2579, %v2667
      %2669 = vmatmul.bf16.gmra.mxu0 %v950
      %v2670 = vpop.f32.mrf.mxu0
      %v2671 = vadd.f32 %v2582, %v2670
      %v2672 = vpop.f32.mrf.mxu0
      %v2673 = vadd.f32 %v2584, %v2672
      %2674 = vmatmul.bf16.gmra.mxu0 %v951
      %v2675 = vpop.f32.mrf.mxu0
      %v2676 = vadd.f32 %v2587, %v2675
      %v2677 = vpop.f32.mrf.mxu0
      %v2678 = vadd.f32 %v2589, %v2677
      %2679 = vmatmul.bf16.gmra.mxu0 %v952
      %v2680 = vpop.f32.mrf.mxu0
      %v2681 = vadd.f32 %v2592, %v2680
      %v2682 = vpop.f32.mrf.mxu0
      %v2683 = vadd.f32 %v2594, %v2682
      %2684 = vmatmul.bf16.gmra.mxu0 %v953
      %v2685 = vpop.f32.mrf.mxu0
      %v2686 = vadd.f32 %v2597, %v2685
      %v2687 = vpop.f32.mrf.mxu0
      %v2688 = vadd.f32 %v2599, %v2687
      %2689 = vmatmul.bf16.gmra.mxu0 %v954
      %v2690 = vpop.f32.mrf.mxu0
      %v2691 = vadd.f32 %v2602, %v2690
      %v2692 = vpop.f32.mrf.mxu0
      %v2693 = vadd.f32 %v2604, %v2692
      %2694 = vmatmul.bf16.gmra.mxu0 %v955
      %v2695 = vpop.f32.mrf.mxu0
      %v2696 = vadd.f32 %v2607, %v2695
      %v2697 = vpop.f32.mrf.mxu0
      %v2698 = vadd.f32 %v2609, %v2697
      %2699 = vmatmul.bf16.gmra.mxu0 %v956
      %v2700 = vpop.f32.mrf.mxu0
      %v2701 = vadd.f32 %v2612, %v2700
      %v2702 = vpop.f32.mrf.mxu0
      %v2703 = vadd.f32 %v2614, %v2702
      %2704 = vmatmul.bf16.gmra.mxu0 %v957
      %v2705 = vpop.f32.mrf.mxu0
      %v2706 = vadd.f32 %v2617, %v2705
      %v2707 = vpop.f32.mrf.mxu0
      %v2708 = vadd.f32 %v2619, %v2707
      %2709 = vmatmul.bf16.gmra.mxu0 %v958
      %v2710 = vpop.f32.mrf.mxu0
      %v2711 = vadd.f32 %v2622, %v2710
      %v2712 = vpop.f32.mrf.mxu0
      %v2713 = vadd.f32 %v2624, %v2712
      %2714 = vmatmul.bf16.gmra.mxu0 %v959
      %v2715 = vpop.f32.mrf.mxu0
      %v2716 = vadd.f32 %v2627, %v2715
      %v2717 = vpop.f32.mrf.mxu0
      %v2718 = vadd.f32 %v2629, %v2717
      %2719 = vmatmul.bf16.gmra.mxu0 %v960
      %v2720 = vpop.f32.mrf.mxu0
      %v2721 = vadd.f32 %v2632, %v2720
      %v2722 = vpop.f32.mrf.mxu0
      %v2723 = vadd.f32 %v2634, %v2722
      %2724 = vmatmul.bf16.gmra.mxu0 %v961
      %v2725 = vpop.f32.mrf.mxu0
      %v2726 = vadd.f32 %v2637, %v2725
      %v2727 = vpop.f32.mrf.mxu0
      %v2728 = vadd.f32 %v2639, %v2727
      %2729 = vmatmul.bf16.gmra.mxu0 %v962
      %v2730 = vpop.f32.mrf.mxu0
      %v2731 = vadd.f32 %v2642, %v2730
      %v2732 = vpop.f32.mrf.mxu0
      %v2733 = vadd.f32 %v2644, %v2732
      %2734 = vmatmul.bf16.gmra.mxu0 %v963
      %v2735 = vpop.f32.mrf.mxu0
      %v2736 = vadd.f32 %v2647, %v2735
      %v2737 = vpop.f32.mrf.mxu0
      %v2738 = vadd.f32 %v2649, %v2737
      %2739 = vmatmul.bf16.gmra.mxu0 %v964
      %v2740 = vpop.f32.mrf.mxu0
      %v2741 = vadd.f32 %v2652, %v2740
      %v2742 = vpop.f32.mrf.mxu0
      %v2743 = vadd.f32 %v2654, %v2742
      %2744 = vdwg.mxu0
      %2745 = vmatpush.bf16.msra.mxu0 %v2284
      %2746 = vmatpush.bf16.msra.mxu0 %v2283
      %2747 = vmatpush.bf16.msra.mxu0 %v2282
      %2748 = vmatpush.bf16.msra.mxu0 %v2281
      %2749 = vmatpush.bf16.msra.mxu0 %v2280
      %2750 = vmatpush.bf16.msra.mxu0 %v2279
      %2751 = vmatpush.bf16.msra.mxu0 %v2278
      %2752 = vmatpush.bf16.msra.mxu0 %v2277
      %2753 = vmatmul.bf16.gmra.mxu0 %v1040
      %v2754 = vpop.f32.mrf.mxu0
      %v2755 = vadd.f32 %v2666, %v2754
      %v2756 = vpop.f32.mrf.mxu0
      %v2757 = vadd.f32 %v2668, %v2756
      %2758 = vmatmul.bf16.gmra.mxu0 %v1052
      %v2759 = vpop.f32.mrf.mxu0
      %v2760 = vadd.f32 %v2671, %v2759
      %v2761 = vpop.f32.mrf.mxu0
      %v2762 = vadd.f32 %v2673, %v2761
      %2763 = vmatmul.bf16.gmra.mxu0 %v1064
      %v2764 = vpop.f32.mrf.mxu0
      %v2765 = vadd.f32 %v2676, %v2764
      %v2766 = vpop.f32.mrf.mxu0
      %v2767 = vadd.f32 %v2678, %v2766
      %2768 = vmatmul.bf16.gmra.mxu0 %v1076
      %v2769 = vpop.f32.mrf.mxu0
      %v2770 = vadd.f32 %v2681, %v2769
      %v2771 = vpop.f32.mrf.mxu0
      %v2772 = vadd.f32 %v2683, %v2771
      %2773 = vmatmul.bf16.gmra.mxu0 %v1088
      %v2774 = vpop.f32.mrf.mxu0
      %v2775 = vadd.f32 %v2686, %v2774
      %v2776 = vpop.f32.mrf.mxu0
      %v2777 = vadd.f32 %v2688, %v2776
      %2778 = vmatmul.bf16.gmra.mxu0 %v1100
      %v2779 = vpop.f32.mrf.mxu0
      %v2780 = vadd.f32 %v2691, %v2779
      %v2781 = vpop.f32.mrf.mxu0
      %v2782 = vadd.f32 %v2693, %v2781
      %2783 = vmatmul.bf16.gmra.mxu0 %v1112
      %v2784 = vpop.f32.mrf.mxu0
      %v2785 = vadd.f32 %v2696, %v2784
      %v2786 = vpop.f32.mrf.mxu0
      %v2787 = vadd.f32 %v2698, %v2786
      %2788 = vmatmul.bf16.gmra.mxu0 %v1124
      %v2789 = vpop.f32.mrf.mxu0
      %v2790 = vadd.f32 %v2701, %v2789
      %v2791 = vpop.f32.mrf.mxu0
      %v2792 = vadd.f32 %v2703, %v2791
      %2793 = vmatmul.bf16.gmra.mxu0 %v1136
      %v2794 = vpop.f32.mrf.mxu0
      %v2795 = vadd.f32 %v2706, %v2794
      %v2796 = vpop.f32.mrf.mxu0
      %v2797 = vadd.f32 %v2708, %v2796
      %2798 = vmatmul.bf16.gmra.mxu0 %v1148
      %v2799 = vpop.f32.mrf.mxu0
      %v2800 = vadd.f32 %v2711, %v2799
      %v2801 = vpop.f32.mrf.mxu0
      %v2802 = vadd.f32 %v2713, %v2801
      %2803 = vmatmul.bf16.gmra.mxu0 %v1160
      %v2804 = vpop.f32.mrf.mxu0
      %v2805 = vadd.f32 %v2716, %v2804
      %v2806 = vpop.f32.mrf.mxu0
      %v2807 = vadd.f32 %v2718, %v2806
      %2808 = vmatmul.bf16.gmra.mxu0 %v1172
      %v2809 = vpop.f32.mrf.mxu0
      %v2810 = vadd.f32 %v2721, %v2809
      %v2811 = vpop.f32.mrf.mxu0
      %v2812 = vadd.f32 %v2723, %v2811
      %2813 = vmatmul.bf16.gmra.mxu0 %v1184
      %v2814 = vpop.f32.mrf.mxu0
      %v2815 = vadd.f32 %v2726, %v2814
      %v2816 = vpop.f32.mrf.mxu0
      %v2817 = vadd.f32 %v2728, %v2816
      %2818 = vmatmul.bf16.gmra.mxu0 %v1196
      %v2819 = vpop.f32.mrf.mxu0
      %v2820 = vadd.f32 %v2731, %v2819
      %v2821 = vpop.f32.mrf.mxu0
      %v2822 = vadd.f32 %v2733, %v2821
      %2823 = vmatmul.bf16.gmra.mxu0 %v1208
      %v2824 = vpop.f32.mrf.mxu0
      %v2825 = vadd.f32 %v2736, %v2824
      %v2826 = vpop.f32.mrf.mxu0
      %v2827 = vadd.f32 %v2738, %v2826
      %2828 = vmatmul.bf16.gmra.mxu0 %v1220
      %v2829 = vpop.f32.mrf.mxu0
      %v2830 = vadd.f32 %v2741, %v2829
      %v2831 = vpop.f32.mrf.mxu0
      %v2832 = vadd.f32 %v2743, %v2831
      %2833 = vdwg.mxu0
      %2834 = vmatpush.bf16.msra.mxu0 %v2292
      %2835 = vmatpush.bf16.msra.mxu0 %v2291
      %2836 = vmatpush.bf16.msra.mxu0 %v2290
      %2837 = vmatpush.bf16.msra.mxu0 %v2289
      %2838 = vmatpush.bf16.msra.mxu0 %v2288
      %2839 = vmatpush.bf16.msra.mxu0 %v2287
      %2840 = vmatpush.bf16.msra.mxu0 %v2286
      %2841 = vmatpush.bf16.msra.mxu0 %v2285
      %2842 = vmatmul.bf16.gmra.mxu0 %v1287
      %v2843 = vpop.f32.mrf.mxu0
      %v2844 = vadd.f32 %v2755, %v2843
      %v2845 = vpop.f32.mrf.mxu0
      %v2846 = vadd.f32 %v2757, %v2845
      %2847 = vmatmul.bf16.gmra.mxu0 %v1290
      %v2848 = vpop.f32.mrf.mxu0
      %v2849 = vadd.f32 %v2760, %v2848
      %v2850 = vpop.f32.mrf.mxu0
      %v2851 = vadd.f32 %v2762, %v2850
      %2852 = vmatmul.bf16.gmra.mxu0 %v1293
      %v2853 = vpop.f32.mrf.mxu0
      %v2854 = vadd.f32 %v2765, %v2853
      %v2855 = vpop.f32.mrf.mxu0
      %v2856 = vadd.f32 %v2767, %v2855
      %2857 = vmatmul.bf16.gmra.mxu0 %v1296
      %v2858 = vpop.f32.mrf.mxu0
      %v2859 = vadd.f32 %v2770, %v2858
      %v2860 = vpop.f32.mrf.mxu0
      %v2861 = vadd.f32 %v2772, %v2860
      %2862 = vmatmul.bf16.gmra.mxu0 %v1299
      %v2863 = vpop.f32.mrf.mxu0
      %v2864 = vadd.f32 %v2775, %v2863
      %v2865 = vpop.f32.mrf.mxu0
      %v2866 = vadd.f32 %v2777, %v2865
      %2867 = vmatmul.bf16.gmra.mxu0 %v1302
      %v2868 = vpop.f32.mrf.mxu0
      %v2869 = vadd.f32 %v2780, %v2868
      %v2870 = vpop.f32.mrf.mxu0
      %v2871 = vadd.f32 %v2782, %v2870
      %2872 = vmatmul.bf16.gmra.mxu0 %v1305
      %v2873 = vpop.f32.mrf.mxu0
      %v2874 = vadd.f32 %v2785, %v2873
      %v2875 = vpop.f32.mrf.mxu0
      %v2876 = vadd.f32 %v2787, %v2875
      %2877 = vmatmul.bf16.gmra.mxu0 %v1308
      %v2878 = vpop.f32.mrf.mxu0
      %v2879 = vadd.f32 %v2790, %v2878
      %v2880 = vpop.f32.mrf.mxu0
      %v2881 = vadd.f32 %v2792, %v2880
      %2882 = vmatmul.bf16.gmra.mxu0 %v1311
      %v2883 = vpop.f32.mrf.mxu0
      %v2884 = vadd.f32 %v2795, %v2883
      %v2885 = vpop.f32.mrf.mxu0
      %v2886 = vadd.f32 %v2797, %v2885
      %2887 = vmatmul.bf16.gmra.mxu0 %v1314
      %v2888 = vpop.f32.mrf.mxu0
      %v2889 = vadd.f32 %v2800, %v2888
      %v2890 = vpop.f32.mrf.mxu0
      %v2891 = vadd.f32 %v2802, %v2890
      %2892 = vmatmul.bf16.gmra.mxu0 %v1317
      %v2893 = vpop.f32.mrf.mxu0
      %v2894 = vadd.f32 %v2805, %v2893
      %v2895 = vpop.f32.mrf.mxu0
      %v2896 = vadd.f32 %v2807, %v2895
      %2897 = vmatmul.bf16.gmra.mxu0 %v1320
      %v2898 = vpop.f32.mrf.mxu0
      %v2899 = vadd.f32 %v2810, %v2898
      %v2900 = vpop.f32.mrf.mxu0
      %v2901 = vadd.f32 %v2812, %v2900
      %2902 = vmatmul.bf16.gmra.mxu0 %v1323
      %v2903 = vpop.f32.mrf.mxu0
      %v2904 = vadd.f32 %v2815, %v2903
      %v2905 = vpop.f32.mrf.mxu0
      %v2906 = vadd.f32 %v2817, %v2905
      %2907 = vmatmul.bf16.gmra.mxu0 %v1326
      %v2908 = vpop.f32.mrf.mxu0
      %v2909 = vadd.f32 %v2820, %v2908
      %v2910 = vpop.f32.mrf.mxu0
      %v2911 = vadd.f32 %v2822, %v2910
      %2912 = vmatmul.bf16.gmra.mxu0 %v1329
      %v2913 = vpop.f32.mrf.mxu0
      %v2914 = vadd.f32 %v2825, %v2913
      %v2915 = vpop.f32.mrf.mxu0
      %v2916 = vadd.f32 %v2827, %v2915
      %2917 = vmatmul.bf16.gmra.mxu0 %v1332
      %v2918 = vpop.f32.mrf.mxu0
      %v2919 = vadd.f32 %v2830, %v2918
      %v2920 = vpop.f32.mrf.mxu0
      %v2921 = vadd.f32 %v2832, %v2920
      %2922 = vdwg.mxu0
      %2923 = vmatpush.bf16.msra.mxu0 %v2300
      %2924 = vmatpush.bf16.msra.mxu0 %v2299
      %2925 = vmatpush.bf16.msra.mxu0 %v2298
      %2926 = vmatpush.bf16.msra.mxu0 %v2297
      %2927 = vmatpush.bf16.msra.mxu0 %v2296
      %2928 = vmatpush.bf16.msra.mxu0 %v2295
      %2929 = vmatpush.bf16.msra.mxu0 %v2294
      %2930 = vmatpush.bf16.msra.mxu0 %v2293
      %2931 = vmatmul.bf16.gmra.mxu0 %v1413
      %v2932 = vpop.f32.mrf.mxu0
      %v2933 = vadd.f32 %v2844, %v2932
      %v2934 = vpop.f32.mrf.mxu0
      %v2935 = vadd.f32 %v2846, %v2934
      %2936 = vmatmul.bf16.gmra.mxu0 %v1414
      %v2937 = vpop.f32.mrf.mxu0
      %v2938 = vadd.f32 %v2849, %v2937
      %v2939 = vpop.f32.mrf.mxu0
      %v2940 = vadd.f32 %v2851, %v2939
      %2941 = vmatmul.bf16.gmra.mxu0 %v1415
      %v2942 = vpop.f32.mrf.mxu0
      %v2943 = vadd.f32 %v2854, %v2942
      %v2944 = vpop.f32.mrf.mxu0
      %v2945 = vadd.f32 %v2856, %v2944
      %2946 = vmatmul.bf16.gmra.mxu0 %v1416
      %v2947 = vpop.f32.mrf.mxu0
      %v2948 = vadd.f32 %v2859, %v2947
      %v2949 = vpop.f32.mrf.mxu0
      %v2950 = vadd.f32 %v2861, %v2949
      %2951 = vmatmul.bf16.gmra.mxu0 %v1417
      %v2952 = vpop.f32.mrf.mxu0
      %v2953 = vadd.f32 %v2864, %v2952
      %v2954 = vpop.f32.mrf.mxu0
      %v2955 = vadd.f32 %v2866, %v2954
      %2956 = vmatmul.bf16.gmra.mxu0 %v1418
      %v2957 = vpop.f32.mrf.mxu0
      %v2958 = vadd.f32 %v2869, %v2957
      %v2959 = vpop.f32.mrf.mxu0
      %v2960 = vadd.f32 %v2871, %v2959
      %2961 = vmatmul.bf16.gmra.mxu0 %v1419
      %v2962 = vpop.f32.mrf.mxu0
      %v2963 = vadd.f32 %v2874, %v2962
      %v2964 = vpop.f32.mrf.mxu0
      %v2965 = vadd.f32 %v2876, %v2964
      %2966 = vmatmul.bf16.gmra.mxu0 %v1420
      %v2967 = vpop.f32.mrf.mxu0
      %v2968 = vadd.f32 %v2879, %v2967
      %v2969 = vpop.f32.mrf.mxu0
      %v2970 = vadd.f32 %v2881, %v2969
      %2971 = vmatmul.bf16.gmra.mxu0 %v1421
      %v2972 = vpop.f32.mrf.mxu0
      %v2973 = vadd.f32 %v2884, %v2972
      %v2974 = vpop.f32.mrf.mxu0
      %v2975 = vadd.f32 %v2886, %v2974
      %2976 = vmatmul.bf16.gmra.mxu0 %v1422
      %v2977 = vpop.f32.mrf.mxu0
      %v2978 = vadd.f32 %v2889, %v2977
      %v2979 = vpop.f32.mrf.mxu0
      %v2980 = vadd.f32 %v2891, %v2979
      %2981 = vmatmul.bf16.gmra.mxu0 %v1423
      %v2982 = vpop.f32.mrf.mxu0
      %v2983 = vadd.f32 %v2894, %v2982
      %v2984 = vpop.f32.mrf.mxu0
      %v2985 = vadd.f32 %v2896, %v2984
      %2986 = vmatmul.bf16.gmra.mxu0 %v1424
      %v2987 = vpop.f32.mrf.mxu0
      %v2988 = vadd.f32 %v2899, %v2987
      %v2989 = vpop.f32.mrf.mxu0
      %v2990 = vadd.f32 %v2901, %v2989
      %2991 = vmatmul.bf16.gmra.mxu0 %v1425
      %v2992 = vpop.f32.mrf.mxu0
      %v2993 = vadd.f32 %v2904, %v2992
      %v2994 = vpop.f32.mrf.mxu0
      %v2995 = vadd.f32 %v2906, %v2994
      %2996 = vmatmul.bf16.gmra.mxu0 %v1426
      %v2997 = vpop.f32.mrf.mxu0
      %v2998 = vadd.f32 %v2909, %v2997
      %v2999 = vpop.f32.mrf.mxu0
      %v3000 = vadd.f32 %v2911, %v2999
      %3001 = vmatmul.bf16.gmra.mxu0 %v1427
      %v3002 = vpop.f32.mrf.mxu0
      %v3003 = vadd.f32 %v2914, %v3002
      %v3004 = vpop.f32.mrf.mxu0
      %v3005 = vadd.f32 %v2916, %v3004
      %3006 = vmatmul.bf16.gmra.mxu0 %v1428
      %v3007 = vpop.f32.mrf.mxu0
      %v3008 = vadd.f32 %v2919, %v3007
      %v3009 = vpop.f32.mrf.mxu0
      %v3010 = vadd.f32 %v2921, %v3009
      %3011 = vdwg.mxu0
      %3012 = vmatpush.bf16.msra.mxu0 %v2308
      %3013 = vmatpush.bf16.msra.mxu0 %v2307
      %3014 = vmatpush.bf16.msra.mxu0 %v2306
      %3015 = vmatpush.bf16.msra.mxu0 %v2305
      %3016 = vmatpush.bf16.msra.mxu0 %v2304
      %3017 = vmatpush.bf16.msra.mxu0 %v2303
      %3018 = vmatpush.bf16.msra.mxu0 %v2302
      %3019 = vmatpush.bf16.msra.mxu0 %v2301
      %3020 = vmatmul.bf16.gmra.mxu0 %v1504
      %v3021 = vpop.f32.mrf.mxu0
      %v3022 = vadd.f32 %v2933, %v3021
      %v3023 = vpop.f32.mrf.mxu0
      %v3024 = vadd.f32 %v2935, %v3023
      %3025 = vmatmul.bf16.gmra.mxu0 %v1516
      %v3026 = vpop.f32.mrf.mxu0
      %v3027 = vadd.f32 %v2938, %v3026
      %v3028 = vpop.f32.mrf.mxu0
      %v3029 = vadd.f32 %v2940, %v3028
      %3030 = vmatmul.bf16.gmra.mxu0 %v1528
      %v3031 = vpop.f32.mrf.mxu0
      %v3032 = vadd.f32 %v2943, %v3031
      %v3033 = vpop.f32.mrf.mxu0
      %v3034 = vadd.f32 %v2945, %v3033
      %3035 = vmatmul.bf16.gmra.mxu0 %v1540
      %v3036 = vpop.f32.mrf.mxu0
      %v3037 = vadd.f32 %v2948, %v3036
      %v3038 = vpop.f32.mrf.mxu0
      %v3039 = vadd.f32 %v2950, %v3038
      %3040 = vmatmul.bf16.gmra.mxu0 %v1552
      %v3041 = vpop.f32.mrf.mxu0
      %v3042 = vadd.f32 %v2953, %v3041
      %v3043 = vpop.f32.mrf.mxu0
      %v3044 = vadd.f32 %v2955, %v3043
      %3045 = vmatmul.bf16.gmra.mxu0 %v1564
      %v3046 = vpop.f32.mrf.mxu0
      %v3047 = vadd.f32 %v2958, %v3046
      %v3048 = vpop.f32.mrf.mxu0
      %v3049 = vadd.f32 %v2960, %v3048
      %3050 = vmatmul.bf16.gmra.mxu0 %v1576
      %v3051 = vpop.f32.mrf.mxu0
      %v3052 = vadd.f32 %v2963, %v3051
      %v3053 = vpop.f32.mrf.mxu0
      %v3054 = vadd.f32 %v2965, %v3053
      %3055 = vmatmul.bf16.gmra.mxu0 %v1588
      %v3056 = vpop.f32.mrf.mxu0
      %v3057 = vadd.f32 %v2968, %v3056
      %v3058 = vpop.f32.mrf.mxu0
      %v3059 = vadd.f32 %v2970, %v3058
      %3060 = vmatmul.bf16.gmra.mxu0 %v1600
      %v3061 = vpop.f32.mrf.mxu0
      %v3062 = vadd.f32 %v2973, %v3061
      %v3063 = vpop.f32.mrf.mxu0
      %v3064 = vadd.f32 %v2975, %v3063
      %3065 = vmatmul.bf16.gmra.mxu0 %v1612
      %v3066 = vpop.f32.mrf.mxu0
      %v3067 = vadd.f32 %v2978, %v3066
      %v3068 = vpop.f32.mrf.mxu0
      %v3069 = vadd.f32 %v2980, %v3068
      %3070 = vmatmul.bf16.gmra.mxu0 %v1624
      %v3071 = vpop.f32.mrf.mxu0
      %v3072 = vadd.f32 %v2983, %v3071
      %v3073 = vpop.f32.mrf.mxu0
      %v3074 = vadd.f32 %v2985, %v3073
      %3075 = vmatmul.bf16.gmra.mxu0 %v1636
      %v3076 = vpop.f32.mrf.mxu0
      %v3077 = vadd.f32 %v2988, %v3076
      %v3078 = vpop.f32.mrf.mxu0
      %v3079 = vadd.f32 %v2990, %v3078
      %3080 = vmatmul.bf16.gmra.mxu0 %v1648
      %v3081 = vpop.f32.mrf.mxu0
      %v3082 = vadd.f32 %v2993, %v3081
      %v3083 = vpop.f32.mrf.mxu0
      %v3084 = vadd.f32 %v2995, %v3083
      %3085 = vmatmul.bf16.gmra.mxu0 %v1660
      %v3086 = vpop.f32.mrf.mxu0
      %v3087 = vadd.f32 %v2998, %v3086
      %v3088 = vpop.f32.mrf.mxu0
      %v3089 = vadd.f32 %v3000, %v3088
      %3090 = vmatmul.bf16.gmra.mxu0 %v1672
      %v3091 = vpop.f32.mrf.mxu0
      %v3092 = vadd.f32 %v3003, %v3091
      %v3093 = vpop.f32.mrf.mxu0
      %v3094 = vadd.f32 %v3005, %v3093
      %3095 = vmatmul.bf16.gmra.mxu0 %v1684
      %v3096 = vpop.f32.mrf.mxu0
      %v3097 = vadd.f32 %v3008, %v3096
      %v3098 = vpop.f32.mrf.mxu0
      %v3099 = vadd.f32 %v3010, %v3098
      %3100 = vdwg.mxu0
      %3101 = vmatpush.bf16.msra.mxu0 %v2316
      %3102 = vmatpush.bf16.msra.mxu0 %v2315
      %3103 = vmatpush.bf16.msra.mxu0 %v2314
      %3104 = vmatpush.bf16.msra.mxu0 %v2313
      %3105 = vmatpush.bf16.msra.mxu0 %v2312
      %3106 = vmatpush.bf16.msra.mxu0 %v2311
      %3107 = vmatpush.bf16.msra.mxu0 %v2310
      %3108 = vmatpush.bf16.msra.mxu0 %v2309
      %3109 = vmatmul.bf16.gmra.mxu0 %v1751
      %v3110 = vpop.f32.mrf.mxu0
      %v3111 = vadd.f32 %v3022, %v3110
      %v3112 = vpop.f32.mrf.mxu0
      %v3113 = vadd.f32 %v3024, %v3112
      %3114 = vmatmul.bf16.gmra.mxu0 %v1754
      %v3115 = vpop.f32.mrf.mxu0
      %v3116 = vadd.f32 %v3027, %v3115
      %v3117 = vpop.f32.mrf.mxu0
      %v3118 = vadd.f32 %v3029, %v3117
      %3119 = vmatmul.bf16.gmra.mxu0 %v1757
      %v3120 = vpop.f32.mrf.mxu0
      %v3121 = vadd.f32 %v3032, %v3120
      %v3122 = vpop.f32.mrf.mxu0
      %v3123 = vadd.f32 %v3034, %v3122
      %3124 = vmatmul.bf16.gmra.mxu0 %v1760
      %v3125 = vpop.f32.mrf.mxu0
      %v3126 = vadd.f32 %v3037, %v3125
      %v3127 = vpop.f32.mrf.mxu0
      %v3128 = vadd.f32 %v3039, %v3127
      %3129 = vmatmul.bf16.gmra.mxu0 %v1763
      %v3130 = vpop.f32.mrf.mxu0
      %v3131 = vadd.f32 %v3042, %v3130
      %v3132 = vpop.f32.mrf.mxu0
      %v3133 = vadd.f32 %v3044, %v3132
      %3134 = vmatmul.bf16.gmra.mxu0 %v1766
      %v3135 = vpop.f32.mrf.mxu0
      %v3136 = vadd.f32 %v3047, %v3135
      %v3137 = vpop.f32.mrf.mxu0
      %v3138 = vadd.f32 %v3049, %v3137
      %3139 = vmatmul.bf16.gmra.mxu0 %v1769
      %v3140 = vpop.f32.mrf.mxu0
      %v3141 = vadd.f32 %v3052, %v3140
      %v3142 = vpop.f32.mrf.mxu0
      %v3143 = vadd.f32 %v3054, %v3142
      %3144 = vmatmul.bf16.gmra.mxu0 %v1772
      %v3145 = vpop.f32.mrf.mxu0
      %v3146 = vadd.f32 %v3057, %v3145
      %v3147 = vpop.f32.mrf.mxu0
      %v3148 = vadd.f32 %v3059, %v3147
      %3149 = vmatmul.bf16.gmra.mxu0 %v1775
      %v3150 = vpop.f32.mrf.mxu0
      %v3151 = vadd.f32 %v3062, %v3150
      %v3152 = vpop.f32.mrf.mxu0
      %v3153 = vadd.f32 %v3064, %v3152
      %3154 = vmatmul.bf16.gmra.mxu0 %v1778
      %v3155 = vpop.f32.mrf.mxu0
      %v3156 = vadd.f32 %v3067, %v3155
      %v3157 = vpop.f32.mrf.mxu0
      %v3158 = vadd.f32 %v3069, %v3157
      %3159 = vmatmul.bf16.gmra.mxu0 %v1781
      %v3160 = vpop.f32.mrf.mxu0
      %v3161 = vadd.f32 %v3072, %v3160
      %v3162 = vpop.f32.mrf.mxu0
      %v3163 = vadd.f32 %v3074, %v3162
      %3164 = vmatmul.bf16.gmra.mxu0 %v1784
      %v3165 = vpop.f32.mrf.mxu0
      %v3166 = vadd.f32 %v3077, %v3165
      %v3167 = vpop.f32.mrf.mxu0
      %v3168 = vadd.f32 %v3079, %v3167
      %3169 = vmatmul.bf16.gmra.mxu0 %v1787
      %v3170 = vpop.f32.mrf.mxu0
      %v3171 = vadd.f32 %v3082, %v3170
      %v3172 = vpop.f32.mrf.mxu0
      %v3173 = vadd.f32 %v3084, %v3172
      %3174 = vmatmul.bf16.gmra.mxu0 %v1790
      %v3175 = vpop.f32.mrf.mxu0
      %v3176 = vadd.f32 %v3087, %v3175
      %v3177 = vpop.f32.mrf.mxu0
      %v3178 = vadd.f32 %v3089, %v3177
      %3179 = vmatmul.bf16.gmra.mxu0 %v1793
      %v3180 = vpop.f32.mrf.mxu0
      %v3181 = vadd.f32 %v3092, %v3180
      %v3182 = vpop.f32.mrf.mxu0
      %v3183 = vadd.f32 %v3094, %v3182
      %3184 = vmatmul.bf16.gmra.mxu0 %v1796
      %v3185 = vpop.f32.mrf.mxu0
      %v3186 = vadd.f32 %v3097, %v3185
      %v3187 = vpop.f32.mrf.mxu0
      %v3188 = vadd.f32 %v3099, %v3187
      %3189 = vdwg.mxu0
      %vm3190 = vsmask.f32 3328
      %vm3191 = vsmask.f32 7440
      %vm3192 = vmor %vm3190, %vm3191
      %v3194 = vshrl.u32 %v290, 16
      %v3196 = vrot.slane %v3194, 4
      %v3197 = vshll.u32 %v290, 16
      %v3199 = vrot.slane %v3197, 5
      %v3200 = vor.u32 %v3196, %v3199
      %v3201 = vrot.slane %v3200, 4
      %v3203 = vshll.u32 %v291, 16
      %v3205 = vrot.slane %v3203, 5
      %v3206 = vsel %vm3192, %v3201, %v3205
      %v3207 = vshrl.u32 %v291, 16
      %v3209 = vrot.slane %v3207, 4
      %v3210 = vor.u32 %v3209, %v3205
      %v3211 = vrot.slane %v3210, 4
      %v3213 = vshll.u32 %v322, 16
      %v3215 = vrot.slane %v3213, 5
      %v3216 = vsel %vm3192, %v3211, %v3215
      %v3218 = vshrl.u32 %v292, 16
      %v3220 = vrot.slane %v3218, 4
      %v3221 = vshll.u32 %v292, 16
      %v3223 = vrot.slane %v3221, 5
      %v3224 = vor.u32 %v3220, %v3223
      %v3225 = vrot.slane %v3224, 4
      %v3227 = vshll.u32 %v293, 16
      %v3229 = vrot.slane %v3227, 5
      %v3230 = vsel %vm3192, %v3225, %v3229
      %v3231 = vshrl.u32 %v293, 16
      %v3233 = vrot.slane %v3231, 4
      %v3234 = vor.u32 %v3233, %v3229
      %v3235 = vrot.slane %v3234, 4
      %v3237 = vshll.u32 %v323, 16
      %v3239 = vrot.slane %v3237, 5
      %v3240 = vsel %vm3192, %v3235, %v3239
      %v3242 = vshrl.u32 %v294, 16
      %v3244 = vrot.slane %v3242, 4
      %v3245 = vshll.u32 %v294, 16
      %v3247 = vrot.slane %v3245, 5
      %v3248 = vor.u32 %v3244, %v3247
      %v3249 = vrot.slane %v3248, 4
      %v3251 = vshll.u32 %v295, 16
      %v3253 = vrot.slane %v3251, 5
      %v3254 = vsel %vm3192, %v3249, %v3253
      %v3255 = vshrl.u32 %v295, 16
      %v3257 = vrot.slane %v3255, 4
      %v3258 = vor.u32 %v3257, %v3253
      %v3259 = vrot.slane %v3258, 4
      %v3261 = vshll.u32 %v324, 16
      %v3263 = vrot.slane %v3261, 5
      %v3264 = vsel %vm3192, %v3259, %v3263
      %v3266 = vshrl.u32 %v296, 16
      %v3268 = vrot.slane %v3266, 4
      %v3269 = vshll.u32 %v296, 16
      %v3271 = vrot.slane %v3269, 5
      %v3272 = vor.u32 %v3268, %v3271
      %v3273 = vrot.slane %v3272, 4
      %v3275 = vshll.u32 %v297, 16
      %v3277 = vrot.slane %v3275, 5
      %v3278 = vsel %vm3192, %v3273, %v3277
      %v3279 = vshrl.u32 %v297, 16
      %v3281 = vrot.slane %v3279, 4
      %v3282 = vor.u32 %v3281, %v3277
      %v3283 = vrot.slane %v3282, 4
      %v3285 = vshll.u32 %v325, 16
      %v3287 = vrot.slane %v3285, 5
      %v3288 = vsel %vm3192, %v3283, %v3287
      %v3290 = vshrl.u32 %v298, 16
      %v3292 = vrot.slane %v3290, 4
      %v3293 = vshll.u32 %v298, 16
      %v3295 = vrot.slane %v3293, 5
      %v3296 = vor.u32 %v3292, %v3295
      %v3297 = vrot.slane %v3296, 4
      %v3299 = vshll.u32 %v299, 16
      %v3301 = vrot.slane %v3299, 5
      %v3302 = vsel %vm3192, %v3297, %v3301
      %v3303 = vshrl.u32 %v299, 16
      %v3305 = vrot.slane %v3303, 4
      %v3306 = vor.u32 %v3305, %v3301
      %v3307 = vrot.slane %v3306, 4
      %v3309 = vshll.u32 %v326, 16
      %v3311 = vrot.slane %v3309, 5
      %v3312 = vsel %vm3192, %v3307, %v3311
      %v3314 = vshrl.u32 %v300, 16
      %v3316 = vrot.slane %v3314, 4
      %v3317 = vshll.u32 %v300, 16
      %v3319 = vrot.slane %v3317, 5
      %v3320 = vor.u32 %v3316, %v3319
      %v3321 = vrot.slane %v3320, 4
      %v3323 = vshll.u32 %v301, 16
      %v3325 = vrot.slane %v3323, 5
      %v3326 = vsel %vm3192, %v3321, %v3325
      %v3327 = vshrl.u32 %v301, 16
      %v3329 = vrot.slane %v3327, 4
      %v3330 = vor.u32 %v3329, %v3325
      %v3331 = vrot.slane %v3330, 4
      %v3333 = vshll.u32 %v327, 16
      %v3335 = vrot.slane %v3333, 5
      %v3336 = vsel %vm3192, %v3331, %v3335
      %v3338 = vshrl.u32 %v302, 16
      %v3340 = vrot.slane %v3338, 4
      %v3341 = vshll.u32 %v302, 16
      %v3343 = vrot.slane %v3341, 5
      %v3344 = vor.u32 %v3340, %v3343
      %v3345 = vrot.slane %v3344, 4
      %v3347 = vshll.u32 %v303, 16
      %v3349 = vrot.slane %v3347, 5
      %v3350 = vsel %vm3192, %v3345, %v3349
      %v3351 = vshrl.u32 %v303, 16
      %v3353 = vrot.slane %v3351, 4
      %v3354 = vor.u32 %v3353, %v3349
      %v3355 = vrot.slane %v3354, 4
      %v3357 = vshll.u32 %v328, 16
      %v3359 = vrot.slane %v3357, 5
      %v3360 = vsel %vm3192, %v3355, %v3359
      %v3362 = vshrl.u32 %v304, 16
      %v3364 = vrot.slane %v3362, 4
      %v3365 = vshll.u32 %v304, 16
      %v3367 = vrot.slane %v3365, 5
      %v3368 = vor.u32 %v3364, %v3367
      %v3369 = vrot.slane %v3368, 4
      %v3371 = vshll.u32 %v305, 16
      %v3373 = vrot.slane %v3371, 5
      %v3374 = vsel %vm3192, %v3369, %v3373
      %v3375 = vshrl.u32 %v305, 16
      %v3377 = vrot.slane %v3375, 4
      %v3378 = vor.u32 %v3377, %v3373
      %v3379 = vrot.slane %v3378, 4
      %v3381 = vshll.u32 %v329, 16
      %v3383 = vrot.slane %v3381, 5
      %v3384 = vsel %vm3192, %v3379, %v3383
      %v3386 = vshrl.u32 %v306, 16
      %v3388 = vrot.slane %v3386, 4
      %v3389 = vshll.u32 %v306, 16
      %v3391 = vrot.slane %v3389, 5
      %v3392 = vor.u32 %v3388, %v3391
      %v3393 = vrot.slane %v3392, 4
      %v3395 = vshll.u32 %v307, 16
      %v3397 = vrot.slane %v3395, 5
      %v3398 = vsel %vm3192, %v3393, %v3397
      %v3399 = vshrl.u32 %v307, 16
      %v3401 = vrot.slane %v3399, 4
      %v3402 = vor.u32 %v3401, %v3397
      %v3403 = vrot.slane %v3402, 4
      %v3405 = vshll.u32 %v330, 16
      %v3407 = vrot.slane %v3405, 5
      %v3408 = vsel %vm3192, %v3403, %v3407
      %v3410 = vshrl.u32 %v308, 16
      %v3412 = vrot.slane %v3410, 4
      %v3413 = vshll.u32 %v308, 16
      %v3415 = vrot.slane %v3413, 5
      %v3416 = vor.u32 %v3412, %v3415
      %v3417 = vrot.slane %v3416, 4
      %v3419 = vshll.u32 %v309, 16
      %v3421 = vrot.slane %v3419, 5
      %v3422 = vsel %vm3192, %v3417, %v3421
      %v3423 = vshrl.u32 %v309, 16
      %v3425 = vrot.slane %v3423, 4
      %v3426 = vor.u32 %v3425, %v3421
      %v3427 = vrot.slane %v3426, 4
      %v3429 = vshll.u32 %v331, 16
      %v3431 = vrot.slane %v3429, 5
      %v3432 = vsel %vm3192, %v3427, %v3431
      %v3434 = vshrl.u32 %v310, 16
      %v3436 = vrot.slane %v3434, 4
      %v3437 = vshll.u32 %v310, 16
      %v3439 = vrot.slane %v3437, 5
      %v3440 = vor.u32 %v3436, %v3439
      %v3441 = vrot.slane %v3440, 4
      %v3443 = vshll.u32 %v311, 16
      %v3445 = vrot.slane %v3443, 5
      %v3446 = vsel %vm3192, %v3441, %v3445
      %v3447 = vshrl.u32 %v311, 16
      %v3449 = vrot.slane %v3447, 4
      %v3450 = vor.u32 %v3449, %v3445
      %v3451 = vrot.slane %v3450, 4
      %v3453 = vshll.u32 %v332, 16
      %v3455 = vrot.slane %v3453, 5
      %v3456 = vsel %vm3192, %v3451, %v3455
      %v3458 = vshrl.u32 %v312, 16
      %v3460 = vrot.slane %v3458, 4
      %v3461 = vshll.u32 %v312, 16
      %v3463 = vrot.slane %v3461, 5
      %v3464 = vor.u32 %v3460, %v3463
      %v3465 = vrot.slane %v3464, 4
      %v3467 = vshll.u32 %v313, 16
      %v3469 = vrot.slane %v3467, 5
      %v3470 = vsel %vm3192, %v3465, %v3469
      %v3471 = vshrl.u32 %v313, 16
      %v3473 = vrot.slane %v3471, 4
      %v3474 = vor.u32 %v3473, %v3469
      %v3475 = vrot.slane %v3474, 4
      %v3477 = vshll.u32 %v333, 16
      %v3479 = vrot.slane %v3477, 5
      %v3480 = vsel %vm3192, %v3475, %v3479
      %v3482 = vshrl.u32 %v314, 16
      %v3484 = vrot.slane %v3482, 4
      %v3485 = vshll.u32 %v314, 16
      %v3487 = vrot.slane %v3485, 5
      %v3488 = vor.u32 %v3484, %v3487
      %v3489 = vrot.slane %v3488, 4
      %v3491 = vshll.u32 %v315, 16
      %v3493 = vrot.slane %v3491, 5
      %v3494 = vsel %vm3192, %v3489, %v3493
      %v3495 = vshrl.u32 %v315, 16
      %v3497 = vrot.slane %v3495, 4
      %v3498 = vor.u32 %v3497, %v3493
      %v3499 = vrot.slane %v3498, 4
      %v3501 = vshll.u32 %v334, 16
      %v3503 = vrot.slane %v3501, 5
      %v3504 = vsel %vm3192, %v3499, %v3503
      %v3506 = vshrl.u32 %v316, 16
      %v3508 = vrot.slane %v3506, 4
      %v3509 = vshll.u32 %v316, 16
      %v3511 = vrot.slane %v3509, 5
      %v3512 = vor.u32 %v3508, %v3511
      %v3513 = vrot.slane %v3512, 4
      %v3515 = vshll.u32 %v317, 16
      %v3517 = vrot.slane %v3515, 5
      %v3518 = vsel %vm3192, %v3513, %v3517
      %v3519 = vshrl.u32 %v317, 16
      %v3521 = vrot.slane %v3519, 4
      %v3522 = vor.u32 %v3521, %v3517
      %v3523 = vrot.slane %v3522, 4
      %v3525 = vshll.u32 %v335, 16
      %v3527 = vrot.slane %v3525, 5
      %v3528 = vsel %vm3192, %v3523, %v3527
      %v3530 = vshrl.u32 %v318, 16
      %v3532 = vrot.slane %v3530, 4
      %v3533 = vshll.u32 %v318, 16
      %v3535 = vrot.slane %v3533, 5
      %v3536 = vor.u32 %v3532, %v3535
      %v3537 = vrot.slane %v3536, 4
      %v3539 = vshll.u32 %v319, 16
      %v3541 = vrot.slane %v3539, 5
      %v3542 = vsel %vm3192, %v3537, %v3541
      %v3543 = vshrl.u32 %v319, 16
      %v3545 = vrot.slane %v3543, 4
      %v3546 = vor.u32 %v3545, %v3541
      %v3547 = vrot.slane %v3546, 4
      %v3549 = vshll.u32 %v336, 16
      %v3551 = vrot.slane %v3549, 5
      %v3552 = vsel %vm3192, %v3547, %v3551
      %v3554 = vshrl.u32 %v320, 16
      %v3556 = vrot.slane %v3554, 4
      %v3557 = vshll.u32 %v320, 16
      %v3559 = vrot.slane %v3557, 5
      %v3560 = vor.u32 %v3556, %v3559
      %v3561 = vrot.slane %v3560, 4
      %v3563 = vshll.u32 %v321, 16
      %v3565 = vrot.slane %v3563, 5
      %v3566 = vsel %vm3192, %v3561, %v3565
      %v3567 = vshrl.u32 %v321, 16
      %v3569 = vrot.slane %v3567, 4
      %v3570 = vor.u32 %v3569, %v3565
      %v3571 = vrot.slane %v3570, 4
      %v3573 = vshll.u32 %v337, 16
      %v3575 = vrot.slane %v3573, 5
      %v3576 = vsel %vm3192, %v3571, %v3575
      %v3609 = vld [vmem:[%s2] sm:$0xf]
      %v3610 = vld [vmem:[%s2 + $0x4] sm:$0xf]
      %v3611 = vld [vmem:[%s2 + $0x8] sm:$0xf]
      %v3612 = vld [vmem:[%s2 + $0xc] sm:$0xf]
      %v3613 = vld [vmem:[%s2 + $0x10] sm:$0xf]
      %v3614 = vld [vmem:[%s2 + $0x14] sm:$0xf]
      %v3615 = vld [vmem:[%s2 + $0x18] sm:$0xf]
      %v3616 = vld [vmem:[%s2 + $0x1c] sm:$0xf]
      %v3617 = vld [vmem:[%s2 + $0x20] sm:$0xf]
      %v3618 = vld [vmem:[%s2 + $0x24] sm:$0xf]
      %v3619 = vld [vmem:[%s2 + $0x28] sm:$0xf]
      %v3620 = vld [vmem:[%s2 + $0x2c] sm:$0xf]
      %v3621 = vld [vmem:[%s2 + $0x30] sm:$0xf]
      %v3622 = vld [vmem:[%s2 + $0x34] sm:$0xf]
      %v3623 = vld [vmem:[%s2 + $0x38] sm:$0xf]
      %v3624 = vld [vmem:[%s2 + $0x3c] sm:$0xf]
      %v3625 = vunpack.c.l.b16 %v3206
      %v3626 = vunpack.c.l.b16 %v3216
      %v3627 = vunpack.c.l.b16 %v3230
      %v3628 = vunpack.c.l.b16 %v3240
      %v3629 = vunpack.c.l.b16 %v3254
      %v3630 = vunpack.c.l.b16 %v3264
      %v3631 = vunpack.c.l.b16 %v3278
      %v3632 = vunpack.c.l.b16 %v3288
      %v3633 = vunpack.c.l.b16 %v3302
      %v3634 = vunpack.c.l.b16 %v3312
      %v3635 = vunpack.c.l.b16 %v3326
      %v3636 = vunpack.c.l.b16 %v3336
      %v3637 = vunpack.c.l.b16 %v3350
      %v3638 = vunpack.c.l.b16 %v3360
      %v3639 = vunpack.c.l.b16 %v3374
      %v3640 = vunpack.c.l.b16 %v3384
      %v3641 = vunpack.c.l.b16 %v3398
      %v3642 = vunpack.c.l.b16 %v3408
      %v3643 = vunpack.c.l.b16 %v3422
      %v3644 = vunpack.c.l.b16 %v3432
      %v3645 = vunpack.c.l.b16 %v3446
      %v3646 = vunpack.c.l.b16 %v3456
      %v3647 = vunpack.c.l.b16 %v3470
      %v3648 = vunpack.c.l.b16 %v3480
      %v3649 = vunpack.c.l.b16 %v3494
      %v3650 = vunpack.c.l.b16 %v3504
      %v3651 = vunpack.c.l.b16 %v3518
      %v3652 = vunpack.c.l.b16 %v3528
      %v3653 = vunpack.c.l.b16 %v3542
      %v3654 = vunpack.c.l.b16 %v3552
      %v3655 = vunpack.c.l.b16 %v3566
      %v3656 = vunpack.c.l.b16 %v3576
      %v3657 = vpack.c.b16 %v3626, %v3625
      %v3658 = vpack.c.b16 %v3628, %v3627
      %v3659 = vpack.c.b16 %v3630, %v3629
      %v3660 = vpack.c.b16 %v3632, %v3631
      %v3661 = vpack.c.b16 %v3634, %v3633
      %v3662 = vpack.c.b16 %v3636, %v3635
      %v3663 = vpack.c.b16 %v3638, %v3637
      %v3664 = vpack.c.b16 %v3640, %v3639
      %v3665 = vpack.c.b16 %v3642, %v3641
      %v3666 = vpack.c.b16 %v3644, %v3643
      %v3667 = vpack.c.b16 %v3646, %v3645
      %v3668 = vpack.c.b16 %v3648, %v3647
      %v3669 = vpack.c.b16 %v3650, %v3649
      %v3670 = vpack.c.b16 %v3652, %v3651
      %v3671 = vpack.c.b16 %v3654, %v3653
      %v3672 = vpack.c.b16 %v3656, %v3655
      %v3705 = vunpack.c.l.b16 %v3609
      %v3706 = vunpack.c.l.b16 %v3610
      %v3707 = vunpack.c.l.b16 %v3611
      %v3708 = vunpack.c.l.b16 %v3612
      %v3709 = vunpack.c.l.b16 %v3613
      %v3710 = vunpack.c.l.b16 %v3614
      %v3711 = vunpack.c.l.b16 %v3615
      %v3712 = vunpack.c.l.b16 %v3616
      %v3713 = vunpack.c.l.b16 %v3617
      %v3714 = vunpack.c.l.b16 %v3618
      %v3715 = vunpack.c.l.b16 %v3619
      %v3716 = vunpack.c.l.b16 %v3620
      %v3717 = vunpack.c.l.b16 %v3621
      %v3718 = vunpack.c.l.b16 %v3622
      %v3719 = vunpack.c.l.b16 %v3623
      %v3720 = vunpack.c.l.b16 %v3624
      %v3721 = vpack.c.b16 %v3706, %v3705
      %v3722 = vpack.c.b16 %v3708, %v3707
      %v3723 = vpack.c.b16 %v3710, %v3709
      %v3724 = vpack.c.b16 %v3712, %v3711
      %v3725 = vpack.c.b16 %v3714, %v3713
      %v3726 = vpack.c.b16 %v3716, %v3715
      %v3727 = vpack.c.b16 %v3718, %v3717
      %v3728 = vpack.c.b16 %v3720, %v3719
      %3737 = vmatpush.bf16.msra.mxu0 %v3728
      %3738 = vmatpush.bf16.msra.mxu0 %v3727
      %3739 = vmatpush.bf16.msra.mxu0 %v3726
      %3740 = vmatpush.bf16.msra.mxu0 %v3725
      %3741 = vmatpush.bf16.msra.mxu0 %v3724
      %3742 = vmatpush.bf16.msra.mxu0 %v3723
      %3743 = vmatpush.bf16.msra.mxu0 %v3722
      %3744 = vmatpush.bf16.msra.mxu0 %v3721
      %3745 = vmatmul.bf16.gmra.mxu0 %v3657
      %v3746 = vpop.f32.mrf.mxu0
      %v3747 = vadd.f32 0.0, %v3746
      %v3748 = vpop.f32.mrf.mxu0
      %v3749 = vadd.f32 0.0, %v3748
      %3750 = vmatmul.bf16.gmra.mxu0 %v3658
      %v3751 = vpop.f32.mrf.mxu0
      %v3752 = vadd.f32 0.0, %v3751
      %v3753 = vpop.f32.mrf.mxu0
      %v3754 = vadd.f32 0.0, %v3753
      %3755 = vmatmul.bf16.gmra.mxu0 %v3659
      %v3756 = vpop.f32.mrf.mxu0
      %v3757 = vadd.f32 0.0, %v3756
      %v3758 = vpop.f32.mrf.mxu0
      %v3759 = vadd.f32 0.0, %v3758
      %3760 = vmatmul.bf16.gmra.mxu0 %v3660
      %v3761 = vpop.f32.mrf.mxu0
      %v3762 = vadd.f32 0.0, %v3761
      %v3763 = vpop.f32.mrf.mxu0
      %v3764 = vadd.f32 0.0, %v3763
      %3765 = vmatmul.bf16.gmra.mxu0 %v3661
      %v3766 = vpop.f32.mrf.mxu0
      %v3767 = vadd.f32 0.0, %v3766
      %v3768 = vpop.f32.mrf.mxu0
      %v3769 = vadd.f32 0.0, %v3768
      %3770 = vmatmul.bf16.gmra.mxu0 %v3662
      %v3771 = vpop.f32.mrf.mxu0
      %v3772 = vadd.f32 0.0, %v3771
      %v3773 = vpop.f32.mrf.mxu0
      %v3774 = vadd.f32 0.0, %v3773
      %3775 = vmatmul.bf16.gmra.mxu0 %v3663
      %v3776 = vpop.f32.mrf.mxu0
      %v3777 = vadd.f32 0.0, %v3776
      %v3778 = vpop.f32.mrf.mxu0
      %v3779 = vadd.f32 0.0, %v3778
      %3780 = vmatmul.bf16.gmra.mxu0 %v3664
      %v3781 = vpop.f32.mrf.mxu0
      %v3782 = vadd.f32 0.0, %v3781
      %v3783 = vpop.f32.mrf.mxu0
      %v3784 = vadd.f32 0.0, %v3783
      %3785 = vmatmul.bf16.gmra.mxu0 %v3665
      %v3786 = vpop.f32.mrf.mxu0
      %v3787 = vadd.f32 0.0, %v3786
      %v3788 = vpop.f32.mrf.mxu0
      %v3789 = vadd.f32 0.0, %v3788
      %3790 = vmatmul.bf16.gmra.mxu0 %v3666
      %v3791 = vpop.f32.mrf.mxu0
      %v3792 = vadd.f32 0.0, %v3791
      %v3793 = vpop.f32.mrf.mxu0
      %v3794 = vadd.f32 0.0, %v3793
      %3795 = vmatmul.bf16.gmra.mxu0 %v3667
      %v3796 = vpop.f32.mrf.mxu0
      %v3797 = vadd.f32 0.0, %v3796
      %v3798 = vpop.f32.mrf.mxu0
      %v3799 = vadd.f32 0.0, %v3798
      %3800 = vmatmul.bf16.gmra.mxu0 %v3668
      %v3801 = vpop.f32.mrf.mxu0
      %v3802 = vadd.f32 0.0, %v3801
      %v3803 = vpop.f32.mrf.mxu0
      %v3804 = vadd.f32 0.0, %v3803
      %3805 = vmatmul.bf16.gmra.mxu0 %v3669
      %v3806 = vpop.f32.mrf.mxu0
      %v3807 = vadd.f32 0.0, %v3806
      %v3808 = vpop.f32.mrf.mxu0
      %v3809 = vadd.f32 0.0, %v3808
      %3810 = vmatmul.bf16.gmra.mxu0 %v3670
      %v3811 = vpop.f32.mrf.mxu0
      %v3812 = vadd.f32 0.0, %v3811
      %v3813 = vpop.f32.mrf.mxu0
      %v3814 = vadd.f32 0.0, %v3813
      %3815 = vmatmul.bf16.gmra.mxu0 %v3671
      %v3816 = vpop.f32.mrf.mxu0
      %v3817 = vadd.f32 0.0, %v3816
      %v3818 = vpop.f32.mrf.mxu0
      %v3819 = vadd.f32 0.0, %v3818
      %3820 = vmatmul.bf16.gmra.mxu0 %v3672
      %v3821 = vpop.f32.mrf.mxu0
      %v3822 = vadd.f32 0.0, %v3821
      %v3823 = vpop.f32.mrf.mxu0
      %v3824 = vadd.f32 0.0, %v3823
      %3825 = vdwg.mxu0
      %v3826 = vunpack.c.l.bf16 %v3206
      %v3827 = vunpack.c.l.bf16 %v3216
      %v3828 = vunpack.c.l.bf16 %v3230
      %v3829 = vunpack.c.l.bf16 %v3240
      %v3830 = vunpack.c.l.bf16 %v3254
      %v3831 = vunpack.c.l.bf16 %v3264
      %v3832 = vunpack.c.l.bf16 %v3278
      %v3833 = vunpack.c.l.bf16 %v3288
      %v3834 = vunpack.c.l.bf16 %v3302
      %v3835 = vunpack.c.l.bf16 %v3312
      %v3836 = vunpack.c.l.bf16 %v3326
      %v3837 = vunpack.c.l.bf16 %v3336
      %v3838 = vunpack.c.l.bf16 %v3350
      %v3839 = vunpack.c.l.bf16 %v3360
      %v3840 = vunpack.c.l.bf16 %v3374
      %v3841 = vunpack.c.l.bf16 %v3384
      %v3842 = vunpack.c.l.bf16 %v3398
      %v3843 = vunpack.c.l.bf16 %v3408
      %v3844 = vunpack.c.l.bf16 %v3422
      %v3845 = vunpack.c.l.bf16 %v3432
      %v3846 = vunpack.c.l.bf16 %v3446
      %v3847 = vunpack.c.l.bf16 %v3456
      %v3848 = vunpack.c.l.bf16 %v3470
      %v3849 = vunpack.c.l.bf16 %v3480
      %v3850 = vunpack.c.l.bf16 %v3494
      %v3851 = vunpack.c.l.bf16 %v3504
      %v3852 = vunpack.c.l.bf16 %v3518
      %v3853 = vunpack.c.l.bf16 %v3528
      %v3854 = vunpack.c.l.bf16 %v3542
      %v3855 = vunpack.c.l.bf16 %v3552
      %v3856 = vunpack.c.l.bf16 %v3566
      %v3857 = vunpack.c.l.bf16 %v3576
      %v3858 = vadd.f32 %v3111, %v3113
      %v3859 = vadd.f32 %v3858, %v3116
      %v3860 = vadd.f32 %v3859, %v3118
      %v3861 = vadd.f32 %v3860, %v3121
      %v3862 = vadd.f32 %v3861, %v3123
      %v3863 = vadd.f32 %v3862, %v3126
      %v3864 = vadd.f32 %v3863, %v3128
      %v3865 = vadd.f32 %v3864, %v3131
      %v3866 = vadd.f32 %v3865, %v3133
      %v3867 = vadd.f32 %v3866, %v3136
      %v3868 = vadd.f32 %v3867, %v3138
      %v3869 = vadd.f32 %v3868, %v3141
      %v3870 = vadd.f32 %v3869, %v3143
      %v3871 = vadd.f32 %v3870, %v3146
      %v3872 = vadd.f32 %v3871, %v3148
      %v3873 = vadd.f32 %v3872, %v3151
      %v3874 = vadd.f32 %v3873, %v3153
      %v3875 = vadd.f32 %v3874, %v3156
      %v3876 = vadd.f32 %v3875, %v3158
      %v3877 = vadd.f32 %v3876, %v3161
      %v3878 = vadd.f32 %v3877, %v3163
      %v3879 = vadd.f32 %v3878, %v3166
      %v3880 = vadd.f32 %v3879, %v3168
      %v3881 = vadd.f32 %v3880, %v3171
      %v3882 = vadd.f32 %v3881, %v3173
      %v3883 = vadd.f32 %v3882, %v3176
      %v3884 = vadd.f32 %v3883, %v3178
      %v3885 = vadd.f32 %v3884, %v3181
      %v3886 = vadd.f32 %v3885, %v3183
      %v3887 = vadd.f32 %v3886, %v3186
      %v3888 = vadd.f32 %v3887, %v3188
      %v3889 = vrot.slane %v3888, 4
      %v3890 = vadd.f32 %v3888, %v3889
      %v3891 = vrot.slane %v3890, 2
      %v3892 = vadd.f32 %v3890, %v3891
      %v3893 = vrot.slane %v3892, 1
      %v3894 = vadd.f32 %v3892, %v3893
      %v3895 = vmul.f32 %v3111, %v3111
      %v3896 = vmul.f32 %v3113, %v3113
      %v3897 = vmul.f32 %v3116, %v3116
      %v3898 = vmul.f32 %v3118, %v3118
      %v3899 = vmul.f32 %v3121, %v3121
      %v3900 = vmul.f32 %v3123, %v3123
      %v3901 = vmul.f32 %v3126, %v3126
      %v3902 = vmul.f32 %v3128, %v3128
      %v3903 = vmul.f32 %v3131, %v3131
      %v3904 = vmul.f32 %v3133, %v3133
      %v3905 = vmul.f32 %v3136, %v3136
      %v3906 = vmul.f32 %v3138, %v3138
      %v3907 = vmul.f32 %v3141, %v3141
      %v3908 = vmul.f32 %v3143, %v3143
      %v3909 = vmul.f32 %v3146, %v3146
      %v3910 = vmul.f32 %v3148, %v3148
      %v3911 = vmul.f32 %v3151, %v3151
      %v3912 = vmul.f32 %v3153, %v3153
      %v3913 = vmul.f32 %v3156, %v3156
      %v3914 = vmul.f32 %v3158, %v3158
      %v3915 = vmul.f32 %v3161, %v3161
      %v3916 = vmul.f32 %v3163, %v3163
      %v3917 = vmul.f32 %v3166, %v3166
      %v3918 = vmul.f32 %v3168, %v3168
      %v3919 = vmul.f32 %v3171, %v3171
      %v3920 = vmul.f32 %v3173, %v3173
      %v3921 = vmul.f32 %v3176, %v3176
      %v3922 = vmul.f32 %v3178, %v3178
      %v3923 = vmul.f32 %v3181, %v3181
      %v3924 = vmul.f32 %v3183, %v3183
      %v3925 = vmul.f32 %v3186, %v3186
      %v3926 = vmul.f32 %v3188, %v3188
      %v3927 = vadd.f32 %v3895, %v3896
      %v3928 = vadd.f32 %v3927, %v3897
      %v3929 = vadd.f32 %v3928, %v3898
      %v3930 = vadd.f32 %v3929, %v3899
      %v3931 = vadd.f32 %v3930, %v3900
      %v3932 = vadd.f32 %v3931, %v3901
      %v3933 = vadd.f32 %v3932, %v3902
      %v3934 = vadd.f32 %v3933, %v3903
      %v3935 = vadd.f32 %v3934, %v3904
      %v3936 = vadd.f32 %v3935, %v3905
      %v3937 = vadd.f32 %v3936, %v3906
      %v3938 = vadd.f32 %v3937, %v3907
      %v3939 = vadd.f32 %v3938, %v3908
      %v3940 = vadd.f32 %v3939, %v3909
      %v3941 = vadd.f32 %v3940, %v3910
      %v3942 = vadd.f32 %v3941, %v3911
      %v3943 = vadd.f32 %v3942, %v3912
      %v3944 = vadd.f32 %v3943, %v3913
      %v3945 = vadd.f32 %v3944, %v3914
      %v3946 = vadd.f32 %v3945, %v3915
      %v3947 = vadd.f32 %v3946, %v3916
      %v3948 = vadd.f32 %v3947, %v3917
      %v3949 = vadd.f32 %v3948, %v3918
      %v3950 = vadd.f32 %v3949, %v3919
      %v3951 = vadd.f32 %v3950, %v3920
      %v3952 = vadd.f32 %v3951, %v3921
      %v3953 = vadd.f32 %v3952, %v3922
      %v3954 = vadd.f32 %v3953, %v3923
      %v3955 = vadd.f32 %v3954, %v3924
      %v3956 = vadd.f32 %v3955, %v3925
      %v3957 = vadd.f32 %v3956, %v3926
      %v3958 = vrot.slane %v3957, 4
      %v3959 = vadd.f32 %v3957, %v3958
      %v3960 = vrot.slane %v3959, 2
      %v3961 = vadd.f32 %v3959, %v3960
      %v3962 = vrot.slane %v3961, 1
      %v3963 = vadd.f32 %v3961, %v3962
      %v3964 = vadd.f32 %v3747, %v3749
      %v3965 = vadd.f32 %v3964, %v3752
      %v3966 = vadd.f32 %v3965, %v3754
      %v3967 = vadd.f32 %v3966, %v3757
      %v3968 = vadd.f32 %v3967, %v3759
      %v3969 = vadd.f32 %v3968, %v3762
      %v3970 = vadd.f32 %v3969, %v3764
      %v3971 = vadd.f32 %v3970, %v3767
      %v3972 = vadd.f32 %v3971, %v3769
      %v3973 = vadd.f32 %v3972, %v3772
      %v3974 = vadd.f32 %v3973, %v3774
      %v3975 = vadd.f32 %v3974, %v3777
      %v3976 = vadd.f32 %v3975, %v3779
      %v3977 = vadd.f32 %v3976, %v3782
      %v3978 = vadd.f32 %v3977, %v3784
      %v3979 = vadd.f32 %v3978, %v3787
      %v3980 = vadd.f32 %v3979, %v3789
      %v3981 = vadd.f32 %v3980, %v3792
      %v3982 = vadd.f32 %v3981, %v3794
      %v3983 = vadd.f32 %v3982, %v3797
      %v3984 = vadd.f32 %v3983, %v3799
      %v3985 = vadd.f32 %v3984, %v3802
      %v3986 = vadd.f32 %v3985, %v3804
      %v3987 = vadd.f32 %v3986, %v3807
      %v3988 = vadd.f32 %v3987, %v3809
      %v3989 = vadd.f32 %v3988, %v3812
      %v3990 = vadd.f32 %v3989, %v3814
      %v3991 = vadd.f32 %v3990, %v3817
      %v3992 = vadd.f32 %v3991, %v3819
      %v3993 = vadd.f32 %v3992, %v3822
      %v3994 = vadd.f32 %v3993, %v3824
      %v3995 = vrot.slane %v3994, 4
      %v3996 = vadd.f32 %v3994, %v3995
      %v3997 = vrot.slane %v3996, 2
      %v3998 = vadd.f32 %v3996, %v3997
      %v3999 = vrot.slane %v3998, 1
      %v4000 = vadd.f32 %v3998, %v3999
      %v4001 = vmul.f32 %v3747, %v3747
      %v4002 = vmul.f32 %v3749, %v3749
      %v4003 = vmul.f32 %v3752, %v3752
      %v4004 = vmul.f32 %v3754, %v3754
      %v4005 = vmul.f32 %v3757, %v3757
      %v4006 = vmul.f32 %v3759, %v3759
      %v4007 = vmul.f32 %v3762, %v3762
      %v4008 = vmul.f32 %v3764, %v3764
      %v4009 = vmul.f32 %v3767, %v3767
      %v4010 = vmul.f32 %v3769, %v3769
      %v4011 = vmul.f32 %v3772, %v3772
      %v4012 = vmul.f32 %v3774, %v3774
      %v4013 = vmul.f32 %v3777, %v3777
      %v4014 = vmul.f32 %v3779, %v3779
      %v4015 = vmul.f32 %v3782, %v3782
      %v4016 = vmul.f32 %v3784, %v3784
      %v4017 = vmul.f32 %v3787, %v3787
      %v4018 = vmul.f32 %v3789, %v3789
      %v4019 = vmul.f32 %v3792, %v3792
      %v4020 = vmul.f32 %v3794, %v3794
      %v4021 = vmul.f32 %v3797, %v3797
      %v4022 = vmul.f32 %v3799, %v3799
      %v4023 = vmul.f32 %v3802, %v3802
      %v4024 = vmul.f32 %v3804, %v3804
      %v4025 = vmul.f32 %v3807, %v3807
      %v4026 = vmul.f32 %v3809, %v3809
      %v4027 = vmul.f32 %v3812, %v3812
      %v4028 = vmul.f32 %v3814, %v3814
      %v4029 = vmul.f32 %v3817, %v3817
      %v4030 = vmul.f32 %v3819, %v3819
      %v4031 = vmul.f32 %v3822, %v3822
      %v4032 = vmul.f32 %v3824, %v3824
      %v4033 = vadd.f32 %v4001, %v4002
      %v4034 = vadd.f32 %v4033, %v4003
      %v4035 = vadd.f32 %v4034, %v4004
      %v4036 = vadd.f32 %v4035, %v4005
      %v4037 = vadd.f32 %v4036, %v4006
      %v4038 = vadd.f32 %v4037, %v4007
      %v4039 = vadd.f32 %v4038, %v4008
      %v4040 = vadd.f32 %v4039, %v4009
      %v4041 = vadd.f32 %v4040, %v4010
      %v4042 = vadd.f32 %v4041, %v4011
      %v4043 = vadd.f32 %v4042, %v4012
      %v4044 = vadd.f32 %v4043, %v4013
      %v4045 = vadd.f32 %v4044, %v4014
      %v4046 = vadd.f32 %v4045, %v4015
      %v4047 = vadd.f32 %v4046, %v4016
      %v4048 = vadd.f32 %v4047, %v4017
      %v4049 = vadd.f32 %v4048, %v4018
      %v4050 = vadd.f32 %v4049, %v4019
      %v4051 = vadd.f32 %v4050, %v4020
      %v4052 = vadd.f32 %v4051, %v4021
      %v4053 = vadd.f32 %v4052, %v4022
      %v4054 = vadd.f32 %v4053, %v4023
      %v4055 = vadd.f32 %v4054, %v4024
      %v4056 = vadd.f32 %v4055, %v4025
      %v4057 = vadd.f32 %v4056, %v4026
      %v4058 = vadd.f32 %v4057, %v4027
      %v4059 = vadd.f32 %v4058, %v4028
      %v4060 = vadd.f32 %v4059, %v4029
      %v4061 = vadd.f32 %v4060, %v4030
      %v4062 = vadd.f32 %v4061, %v4031
      %v4063 = vadd.f32 %v4062, %v4032
      %v4064 = vrot.slane %v4063, 4
      %v4065 = vadd.f32 %v4063, %v4064
      %v4066 = vrot.slane %v4065, 2
      %v4067 = vadd.f32 %v4065, %v4066
      %v4068 = vrot.slane %v4067, 1
      %v4069 = vadd.f32 %v4067, %v4068
      %v4070 = vadd.f32 %v3826, %v3827
      %v4071 = vadd.f32 %v4070, %v3828
      %v4072 = vadd.f32 %v4071, %v3829
      %v4073 = vadd.f32 %v4072, %v3830
      %v4074 = vadd.f32 %v4073, %v3831
      %v4075 = vadd.f32 %v4074, %v3832
      %v4076 = vadd.f32 %v4075, %v3833
      %v4077 = vadd.f32 %v4076, %v3834
      %v4078 = vadd.f32 %v4077, %v3835
      %v4079 = vadd.f32 %v4078, %v3836
      %v4080 = vadd.f32 %v4079, %v3837
      %v4081 = vadd.f32 %v4080, %v3838
      %v4082 = vadd.f32 %v4081, %v3839
      %v4083 = vadd.f32 %v4082, %v3840
      %v4084 = vadd.f32 %v4083, %v3841
      %v4085 = vadd.f32 %v4084, %v3842
      %v4086 = vadd.f32 %v4085, %v3843
      %v4087 = vadd.f32 %v4086, %v3844
      %v4088 = vadd.f32 %v4087, %v3845
      %v4089 = vadd.f32 %v4088, %v3846
      %v4090 = vadd.f32 %v4089, %v3847
      %v4091 = vadd.f32 %v4090, %v3848
      %v4092 = vadd.f32 %v4091, %v3849
      %v4093 = vadd.f32 %v4092, %v3850
      %v4094 = vadd.f32 %v4093, %v3851
      %v4095 = vadd.f32 %v4094, %v3852
      %v4096 = vadd.f32 %v4095, %v3853
      %v4097 = vadd.f32 %v4096, %v3854
      %v4098 = vadd.f32 %v4097, %v3855
      %v4099 = vadd.f32 %v4098, %v3856
      %v4100 = vadd.f32 %v4099, %v3857
      %v4101 = vrot.slane %v4100, 4
      %v4102 = vadd.f32 %v4100, %v4101
      %v4103 = vrot.slane %v4102, 2
      %v4104 = vadd.f32 %v4102, %v4103
      %v4105 = vrot.slane %v4104, 1
      %v4106 = vadd.f32 %v4104, %v4105
      %v4107 = vmul.f32 %v3826, %v3826
      %v4108 = vmul.f32 %v3827, %v3827
      %v4109 = vmul.f32 %v3828, %v3828
      %v4110 = vmul.f32 %v3829, %v3829
      %v4111 = vmul.f32 %v3830, %v3830
      %v4112 = vmul.f32 %v3831, %v3831
      %v4113 = vmul.f32 %v3832, %v3832
      %v4114 = vmul.f32 %v3833, %v3833
      %v4115 = vmul.f32 %v3834, %v3834
      %v4116 = vmul.f32 %v3835, %v3835
      %v4117 = vmul.f32 %v3836, %v3836
      %v4118 = vmul.f32 %v3837, %v3837
      %v4119 = vmul.f32 %v3838, %v3838
      %v4120 = vmul.f32 %v3839, %v3839
      %v4121 = vmul.f32 %v3840, %v3840
      %v4122 = vmul.f32 %v3841, %v3841
      %v4123 = vmul.f32 %v3842, %v3842
      %v4124 = vmul.f32 %v3843, %v3843
      %v4125 = vmul.f32 %v3844, %v3844
      %v4126 = vmul.f32 %v3845, %v3845
      %v4127 = vmul.f32 %v3846, %v3846
      %v4128 = vmul.f32 %v3847, %v3847
      %v4129 = vmul.f32 %v3848, %v3848
      %v4130 = vmul.f32 %v3849, %v3849
      %v4131 = vmul.f32 %v3850, %v3850
      %v4132 = vmul.f32 %v3851, %v3851
      %v4133 = vmul.f32 %v3852, %v3852
      %v4134 = vmul.f32 %v3853, %v3853
      %v4135 = vmul.f32 %v3854, %v3854
      %v4136 = vmul.f32 %v3855, %v3855
      %v4137 = vmul.f32 %v3856, %v3856
      %v4138 = vmul.f32 %v3857, %v3857
      %v4139 = vadd.f32 %v4107, %v4108
      %v4140 = vadd.f32 %v4139, %v4109
      %v4141 = vadd.f32 %v4140, %v4110
      %v4142 = vadd.f32 %v4141, %v4111
      %v4143 = vadd.f32 %v4142, %v4112
      %v4144 = vadd.f32 %v4143, %v4113
      %v4145 = vadd.f32 %v4144, %v4114
      %v4146 = vadd.f32 %v4145, %v4115
      %v4147 = vadd.f32 %v4146, %v4116
      %v4148 = vadd.f32 %v4147, %v4117
      %v4149 = vadd.f32 %v4148, %v4118
      %v4150 = vadd.f32 %v4149, %v4119
      %v4151 = vadd.f32 %v4150, %v4120
      %v4152 = vadd.f32 %v4151, %v4121
      %v4153 = vadd.f32 %v4152, %v4122
      %v4154 = vadd.f32 %v4153, %v4123
      %v4155 = vadd.f32 %v4154, %v4124
      %v4156 = vadd.f32 %v4155, %v4125
      %v4157 = vadd.f32 %v4156, %v4126
      %v4158 = vadd.f32 %v4157, %v4127
      %v4159 = vadd.f32 %v4158, %v4128
      %v4160 = vadd.f32 %v4159, %v4129
      %v4161 = vadd.f32 %v4160, %v4130
      %v4162 = vadd.f32 %v4161, %v4131
      %v4163 = vadd.f32 %v4162, %v4132
      %v4164 = vadd.f32 %v4163, %v4133
      %v4165 = vadd.f32 %v4164, %v4134
      %v4166 = vadd.f32 %v4165, %v4135
      %v4167 = vadd.f32 %v4166, %v4136
      %v4168 = vadd.f32 %v4167, %v4137
      %v4169 = vadd.f32 %v4168, %v4138
      %v4170 = vrot.slane %v4169, 4
      %v4171 = vadd.f32 %v4169, %v4170
      %v4172 = vrot.slane %v4171, 2
      %v4173 = vadd.f32 %v4171, %v4172
      %v4174 = vrot.slane %v4173, 1
      %v4175 = vadd.f32 %v4173, %v4174
      %vm4176 = vcmask 1040384
      %v4177 = vsel %vm4176, %v3894, %v3963
      %vm4178 = vcmask 1041408
      %v4179 = vsel %vm4178, %v4177, %v4000
      %vm4180 = vcmask 1042432
      %v4181 = vsel %vm4180, %v4179, %v4069
      %vm4182 = vcmask 1043456
      %v4183 = vsel %vm4182, %v4181, %v4106
      %vm4184 = vcmask 1044480
      %v4185 = vsel %vm4184, %v4183, %v4175
      %vm4186 = vcmask 1045504
      %v4187 = vsel %vm4186, %v4185, 0.0
      %4188 = vst [vmem:[%s142] sm:$0xff] %v4187
      %p4189 = scmp.lt.s32.totalorder %s18, 1
      %s4190 = scalar_select %p4189, %s18, 1
      %p4191 = scmp.lt.s32.totalorder %s19, 0
      %s4192 = scalar_select %p4191, %s19, 0
      %s4193 = sadd.s32 %s4192, %s4190
      %s4194 = smul.addr %s4193, 8
      %s4195 = scalar_lea.vmem %s3, %s4194
      // Predicated region
      $region48: #{repvgg_block.2} parent=27 // pred_check
        %p4196 = pneg %p88
      $region49: #{repvgg_block.2} parent=27 // pred_check_branch
        %4198 = sbr.rel (%p4196) target = $region51
      $region50: #{repvgg_block.2} parent=27 // pred_region
        _
      $region51: #{repvgg_block.2} parent=27 // pred_fallthru
        _
    $region28: #{repvgg_block.2} parent=5 // pred_fallthru
      _
    %p4199 = scmp.le.s32.totalorder 2, %s9
    // Predicated region
    $region52: #{repvgg_block.2} parent=5 // pred_check
      %p4200 = pneg %p4199
    $region53: #{repvgg_block.2} parent=5 // pred_check_branch
      %4202 = sbr.rel (%p4200) target = $region55
    $region54: #{repvgg_block.2} parent=5 // pred_region
      %s4203 = ssub.s32 %s9, 2
      // Predicated region
      $region56: #{repvgg_block.2} parent=54 // pred_check
        %p4204 = pneg %p94
      $region57: #{repvgg_block.2} parent=54 // pred_check_branch
        %4206 = sbr.rel (%p4204) target = $region59
      $region58: #{repvgg_block.2} parent=54 // pred_region
        %p4207 = scmp.lt.s32.totalorder %s20, 1
        %s4208 = scalar_select %p4207, %s20, 1
        %p4209 = scmp.lt.s32.totalorder %s21, 0
        %s4210 = scalar_select %p4209, %s21, 0
        %s4211 = sadd.s32 %s4210, %s4208
        %s4212 = smul.addr %s4211, 8
        %s4213 = scalar_lea.vmem %s3, %s4212
      $region59: #{repvgg_block.2} parent=54 // pred_fallthru
        _
    $region55: #{repvgg_block.2} parent=5 // pred_fallthru
      _
  $region6: #{repvgg_block.2} parent=0 // loop_footer
    %s13 = sadd.s32 1, %s9
  $region7: #{repvgg_block.2} parent=0 // loop_footer_branch
    %8 = sbr.rel target = $region3
  $region8: #{repvgg_block.2} parent=0 // loop_exit
    _
  %4214 = vsyncmov [#allocation3]
  %s4215 = vpop.sfrf %4214
  %p4216 = scmp.eq.s32.totalorder %s4215, 0
  %p4217 = pneg %p4216
  %4219 = shalt.err (%p4217)

// kernel: repvgg_block.3
$region0: #{repvgg_block.3}
  #allocation0 [shape = 'u32[]', space=smem, size = 0x4, offset = 0x4, fixed_abs, tag = 'smem constant byte address 0x4 - core index']
  #allocation1 [shape = 'u32[72,128]{1,0:T(1,128)}', space=vmem, size = 0x9000, scoped, tag = 'internal scratch']
  #allocation2 [shape = 'bf16[1,18,24,128]{3,2,1,0:T(8,128)(2,1)}', space=vmem, size = 0x1b000, scoped, tag = 'scratch operand']
  #allocation3 [shape = 's32[1]{0}', space=sflag, size = 0x4, scoped, tag = 'scratch operand']
  #allocation4 [shape = 's32[]', space=sflag, size = 0x4, offset = 0, fixed_abs, tag = 'sflag constant byte address 0x0 - dummy sync flag']
  %s0 = inlined_call_operand.vmem [shape: bf16[2,18,24,128], index: 0, kind: input, shape index: {}]
  %s1 = inlined_call_operand.vmem [shape: bf16[1152,128], index: 1, kind: input, shape index: {}]
  %s2 = inlined_call_operand.vmem [shape: f32[1,128], index: 2, kind: input, shape index: {}]
  %s3 = inlined_call_operand.vmem [shape: f32[2,16,16,128], index: 3, kind: output, shape index: {}]
  %s4 = sld [smem:[#allocation0]]
  $region60: #{repvgg_block.3} parent=0
    _
  %s6 = ssub.s32 1, %s4
  %s7 = scalar_select 0, %s6, %s4
  loop: start=0, step=1, limit=4
  $region2: #{repvgg_block.3} parent=0 // loop_pre_header
    _
  $region3: #{repvgg_block.3} parent=0 // loop_header
    %s9 = sphi 0, %s13
    %p10 = scmp.ge.s32.totalorder %s9, 4
    %s16 = sphi 0, %s28
    %s17 = sphi 0, %s24
    %s18 = sphi 0, %s16
    %s19 = sphi 0, %s17
    %s20 = sphi 0, %s18
    %s21 = sphi 0, %s19
    %s29 = sphi 0, %s29
    %s31 = sphi 0, %s29
    %s32 = sphi 0, %s31
    %s46 = sphi 0, %s32
    %s50 = sphi 0, %s50
    %s52 = sphi 0, %s50
    %s53 = sphi 0, %s52
    %s67 = sphi 0, %s53
    %s75 = sphi 0, %s77
    %s78 = sphi 0, %s75
    %s79 = sphi 0, %s78
    %s95 = sphi 0, %s79
  $region4: #{repvgg_block.3} parent=0 // loop_header_branch
    %12 = sbr.rel (%p10) target = $region8
  $region5: #{repvgg_block.3} parent=0 // loop_body
    %s14 = ssub.s32 %s9, 1
    %s15 = ssub.s32 %s9, 2
    %s22 = sadd.s32 1, %s17
    %p23 = scmp.ge.s32.totalorder %s22, 1
    %s24 = scalar_select %p23, 0, %s22
    %s25 = sadd.s32 1, %s16
    %s26 = scalar_select %p23, %s25, %s16
    %p27 = scmp.ge.s32.totalorder %s26, 2
    %s28 = scalar_select %p27, 0, %s26
    %s30 = sadd.s32 %s29, 1
    %p33 = scmp.eq.s32.totalorder %s9, 1
    %p34 = scmp.ne.s32.totalorder %s29, %s31
    %p35 = scmp.eq.s32.totalorder %s9, 0
    %p36 = por %p34, %p35
    %p37 = scmp.ne.s32.totalorder %s29, %s31
    %p38 = scmp.eq.s32.totalorder %s14, 1
    %p39 = por %p37, %p38
    %p40 = scmp.ne.s32.totalorder %s31, %s32
    %p41 = scmp.eq.s32.totalorder %s14, 0
    %p42 = por %p40, %p41
    %p43 = scmp.ne.s32.totalorder %s31, %s32
    %p44 = scmp.eq.s32.totalorder %s15, 1
    %p45 = por %p43, %p44
    %p47 = scmp.ne.s32.totalorder %s32, %s46
    %p48 = scmp.eq.s32.totalorder %s15, 0
    %p49 = por %p47, %p48
    %s51 = sadd.s32 %s50, 1
    %p54 = scmp.eq.s32.totalorder %s9, 1
    %p55 = scmp.ne.s32.totalorder %s50, %s52
    %p56 = scmp.eq.s32.totalorder %s9, 0
    %p57 = por %p55, %p56
    %p58 = scmp.ne.s32.totalorder %s50, %s52
    %p59 = scmp.eq.s32.totalorder %s14, 1
    %p60 = por %p58, %p59
    %p61 = scmp.ne.s32.totalorder %s52, %s53
    %p62 = scmp.eq.s32.totalorder %s14, 0
    %p63 = por %p61, %p62
    %p64 = scmp.ne.s32.totalorder %s52, %s53
    %p65 = scmp.eq.s32.totalorder %s15, 1
    %p66 = por %p64, %p65
    %p68 = scmp.ne.s32.totalorder %s53, %s67
    %p69 = scmp.eq.s32.totalorder %s15, 0
    %p70 = por %p68, %p69
    %s71 = ssub.s32 %s16, %s28
    %s72 = ssub.s32 %s17, %s24
    %s73 = sor.u32 %s71, %s72
    %p74 = scmp.eq.s32.totalorder %s73, 0
    %s76 = sadd.s32 %s75, 1
    %s77 = scalar_select %p74, %s75, %s76
    %p80 = pneg %p74
    %p81 = scmp.eq.s32.totalorder %s9, 1
    %p82 = por %p80, %p81
    %p83 = scmp.ne.s32.totalorder %s75, %s78
    %p84 = scmp.eq.s32.totalorder %s9, 0
    %p85 = por %p83, %p84
    %p86 = scmp.ne.s32.totalorder %s75, %s78
    %p87 = scmp.eq.s32.totalorder %s14, 1
    %p88 = por %p86, %p87
    %p89 = scmp.ne.s32.totalorder %s78, %s79
    %p90 = scmp.eq.s32.totalorder %s14, 0
    %p91 = por %p89, %p90
    %p92 = scmp.ne.s32.totalorder %s78, %s79
    %p93 = scmp.eq.s32.totalorder %s15, 1
    %p94 = por %p92, %p93
    %p96 = scmp.ne.s32.totalorder %s79, %s95
    %p97 = scmp.eq.s32.totalorder %s15, 0
    %p98 = por %p96, %p97
    %p99 = scmp.le.s32.totalorder 1, %s9
    %p100 = scmp.lt.s32.totalorder %s9, 3
    %p101 = pnand %p99, %p100
    %p102 = pneg %p101
    // Predicated region
    $region9: #{repvgg_block.3} parent=5 // pred_check
      _
    $region10: #{repvgg_block.3} parent=5 // pred_check_branch
      %104 = sbr.rel (%p101) target = $region12
    $region11: #{repvgg_block.3} parent=5 // pred_region
      %s105 = ssub.s32 %s9, 1
      // Predicated region
      $region13: #{repvgg_block.3} parent=11 // pred_check
        %p106 = pneg %p42
      $region14: #{repvgg_block.3} parent=11 // pred_check_branch
        %108 = sbr.rel (%p106) target = $region16
      $region15: #{repvgg_block.3} parent=11 // pred_region
        _
      $region16: #{repvgg_block.3} parent=11 // pred_fallthru
        _
      // Predicated region
      $region17: #{repvgg_block.3} parent=11 // pred_check
        %p109 = pneg %p63
      $region18: #{repvgg_block.3} parent=11 // pred_check_branch
        %111 = sbr.rel (%p109) target = $region20
      $region19: #{repvgg_block.3} parent=11 // pred_region
        _
      $region20: #{repvgg_block.3} parent=11 // pred_fallthru
        _
    $region12: #{repvgg_block.3} parent=5 // pred_fallthru
      _
    %p112 = scmp.lt.s32.totalorder %s9, 2
    // Predicated region
    $region21: #{repvgg_block.3} parent=5 // pred_check
      %p113 = pneg %p112
    $region22: #{repvgg_block.3} parent=5 // pred_check_branch
      %115 = sbr.rel (%p113) target = $region24
    $region23: #{repvgg_block.3} parent=5 // pred_region
      _
    $region24: #{repvgg_block.3} parent=5 // pred_fallthru
      _
    %p116 = scmp.le.s32.totalorder 1, %s9
    %p117 = scmp.lt.s32.totalorder %s9, 3
    %p118 = pnand %p116, %p117
    %p119 = pneg %p118
    // Predicated region
    $region25: #{repvgg_block.3} parent=5 // pred_check
      _
    $region26: #{repvgg_block.3} parent=5 // pred_check_branch
      %121 = sbr.rel (%p118) target = $region28
    $region27: #{repvgg_block.3} parent=5 // pred_region
      %s122 = ssub.s32 %s9, 1
      %p123 = pneg %p42
      %p124 = pneg %p39
      %p125 = pneg %p63
      %p126 = pneg %p60
      %p127 = pneg %p91
      %p128 = pneg %p88
      %s129 = smul.u32 16, %s19
      %p130 = scmp.lt.s32.totalorder %s18, 1
      %s131 = scalar_select %p130, %s18, 1
      %p132 = scmp.lt.s32.totalorder %s129, 15
      %s133 = scalar_select %p132, %s129, 15
      %s134 = smul.addr %s133, 2
      %s135 = smul.addr %s131, 32
      %s136 = sadd.s32 %s134, %s135
      %s137 = smul.addr %s136, 8
      %s138 = scalar_lea.vmem %s3, %s137
      %s139 = smul.u32 16, %s19
      %p140 = scmp.lt.s32.totalorder %s18, 1
      %s141 = scalar_select %p140, %s18, 1
      %p142 = scmp.lt.s32.totalorder %s139, 15
      %s143 = scalar_select %p142, %s139, 15
      %s144 = smul.addr %s143, 2
      %s145 = smul.addr %s141, 32
      %s146 = sadd.s32 %s144, %s145
      %s147 = smul.addr %s146, 8
      %s148 = scalar_lea.vmem %s3, %s147
      %s149 = smul.u32 16, %s19
      %s150 = smul.u32 %s19, 16
      %s151 = smul.u32 %s150, 3
      %s152 = smul.u32 %s18, 54
      %s153 = sadd.s32 %s151, %s152
      %s154 = smul.addr %s153, 4
      %s155 = scalar_lea.vmem %s0, %s154
      // Predicated region
      $region29: #{repvgg_block.3} parent=27 // pred_check
        _
      $region30: #{repvgg_block.3} parent=27 // pred_check_branch
        %157 = sbr.rel (0) target = $region32
      $region31: #{repvgg_block.3} parent=27 // pred_region
        loop: start=0, step=1, limit=1
        $region33: #{repvgg_block.3} parent=31 // loop_pre_header
          _
        $region34: #{repvgg_block.3} parent=31 // loop_header
          %s159 = sphi 0, %s163
          %p160 = scmp.ge.s32.totalorder %s159, 1
          %s164 = sphi %s155, %s155
          %s165 = sphi [#allocation2], [#allocation2]
        $region35: #{repvgg_block.3} parent=31 // loop_header_branch
          %162 = sbr.rel (%p160) target = $region39
        $region36: #{repvgg_block.3} parent=31 // loop_body
          %v166 = vld [vmem:[%s164] sm:$0xff]
          %167 = vst [vmem:[%s165] sm:$0xff] %v166
          %v168 = vld [vmem:[%s164 + $0x8] sm:$0xff]
          %169 = vst [vmem:[%s165 + $0x8] sm:$0xff] %v168
          %v170 = vld [vmem:[%s164 + $0x10] sm:$0xff]
          %171 = vst [vmem:[%s165 + $0x10] sm:$0xff] %v170
          %v172 = vld [vmem:[%s164 + $0x18] sm:$0xff]
          %173 = vst [vmem:[%s165 + $0x18] sm:$0xff] %v172
          %v174 = vld [vmem:[%s164 + $0x20] sm:$0xff]
          %175 = vst [vmem:[%s165 + $0x20] sm:$0xff] %v174
          %v176 = vld [vmem:[%s164 + $0x28] sm:$0xff]
          %177 = vst [vmem:[%s165 + $0x28] sm:$0xff] %v176
          %v178 = vld [vmem:[%s164 + $0x30] sm:$0xff]
          %179 = vst [vmem:[%s165 + $0x30] sm:$0xff] %v178
          %v180 = vld [vmem:[%s164 + $0x38] sm:$0xff]
          %181 = vst [vmem:[%s165 + $0x38] sm:$0xff] %v180
          %v182 = vld [vmem:[%s164 + $0x40] sm:$0xff]
          %183 = vst [vmem:[%s165 + $0x40] sm:$0xff] %v182
          %v184 = vld [vmem:[%s164 + $0x48] sm:$0xff]
          %185 = vst [vmem:[%s165 + $0x48] sm:$0xff] %v184
          %v186 = vld [vmem:[%s164 + $0x50] sm:$0xff]
          %187 = vst [vmem:[%s165 + $0x50] sm:$0xff] %v186
          %v188 = vld [vmem:[%s164 + $0x58] sm:$0xff]
          %189 = vst [vmem:[%s165 + $0x58] sm:$0xff] %v188
          %v190 = vld [vmem:[%s164 + $0x60] sm:$0xff]
          %191 = vst [vmem:[%s165 + $0x60] sm:$0xff] %v190
          %v192 = vld [vmem:[%s164 + $0x68] sm:$0xff]
          %193 = vst [vmem:[%s165 + $0x68] sm:$0xff] %v192
          %v194 = vld [vmem:[%s164 + $0x70] sm:$0xff]
          %195 = vst [vmem:[%s165 + $0x70] sm:$0xff] %v194
          %v196 = vld [vmem:[%s164 + $0x78] sm:$0xff]
          %197 = vst [vmem:[%s165 + $0x78] sm:$0xff] %v196
          %v198 = vld [vmem:[%s164 + $0x80] sm:$0xff]
          %199 = vst [vmem:[%s165 + $0x80] sm:$0xff] %v198
          %v200 = vld [vmem:[%s164 + $0x88] sm:$0xff]
          %201 = vst [vmem:[%s165 + $0x88] sm:$0xff] %v200
          %v202 = vld [vmem:[%s164 + $0x90] sm:$0xff]
          %203 = vst [vmem:[%s165 + $0x90] sm:$0xff] %v202
          %v204 = vld [vmem:[%s164 + $0x98] sm:$0xff]
          %205 = vst [vmem:[%s165 + $0x98] sm:$0xff] %v204
          %v206 = vld [vmem:[%s164 + $0xa0] sm:$0xff]
          %207 = vst [vmem:[%s165 + $0xa0] sm:$0xff] %v206
          %v208 = vld [vmem:[%s164 + $0xa8] sm:$0xff]
          %209 = vst [vmem:[%s165 + $0xa8] sm:$0xff] %v208
          %v210 = vld [vmem:[%s164 + $0xb0] sm:$0xff]
          %211 = vst [vmem:[%s165 + $0xb0] sm:$0xff] %v210
          %v212 = vld [vmem:[%s164 + $0xb8] sm:$0xff]
          %213 = vst [vmem:[%s165 + $0xb8] sm:$0xff] %v212
          %v214 = vld [vmem:[%s164 + $0xc0] sm:$0xff]
          %215 = vst [vmem:[%s165 + $0xc0] sm:$0xff] %v214
          %v216 = vld [vmem:[%s164 + $0xc8] sm:$0xff]
          %217 = vst [vmem:[%s165 + $0xc8] sm:$0xff] %v216
          %v218 = vld [vmem:[%s164 + $0xd0] sm:$0xff]
          %219 = vst [vmem:[%s165 + $0xd0] sm:$0xff] %v218
        $region37: #{repvgg_block.3} parent=31 // loop_footer
          %s163 = sadd.s32 1, %s159
        $region38: #{repvgg_block.3} parent=31 // loop_footer_branch
          %158 = sbr.rel target = $region34
        $region39: #{repvgg_block.3} parent=31 // loop_exit
          _
      $region32: #{repvgg_block.3} parent=27 // pred_fallthru
        _
      // Predicated region
      $region40: #{repvgg_block.3} parent=27 // pred_check
        _
      $region41: #{repvgg_block.3} parent=27 // pred_check_branch
        %221 = sbr.rel target = $region43
      $region42: #{repvgg_block.3} parent=27 // pred_region
        _
      $region43: #{repvgg_block.3} parent=27 // pred_fallthru
        _
      // Predicated region
      $region44: #{repvgg_block.3} parent=27 // pred_check
        _
      $region45: #{repvgg_block.3} parent=27 // pred_check_branch
        %224 = sbr.rel (0) target = $region47
      $region46: #{repvgg_block.3} parent=27 // pred_region
        %225 = vsyncadd [#allocation3], 3456
      $region47: #{repvgg_block.3} parent=27 // pred_fallthru
        _
      %s226 = smul.u32 4, 1
      %s227 = smul.u32 %s226, 18
      %s228 = smul.u32 %s227, 3
      %s229 = smul.u32 %s228, 1
      %s230 = sshll.u32 %s229, 4
      %231 = dma.done [#allocation3], %s230
      %v232 = vld [vmem:[#allocation2] sm:$0xf]
      %v233 = vld [vmem:[#allocation2 + $0x4] sm:$0xf]
      %v234 = vld [vmem:[#allocation2 + $0xc] sm:$0xf]
      %v235 = vld [vmem:[#allocation2 + $0x10] sm:$0xf]
      %v236 = vld [vmem:[#allocation2 + $0x18] sm:$0xf]
      %v237 = vld [vmem:[#allocation2 + $0x1c] sm:$0xf]
      %v238 = vld [vmem:[#allocation2 + $0x24] sm:$0xf]
      %v239 = vld [vmem:[#allocation2 + $0x28] sm:$0xf]
      %v240 = vld [vmem:[#allocation2 + $0x30] sm:$0xf]
      %v241 = vld [vmem:[#allocation2 + $0x34] sm:$0xf]
      %v242 = vld [vmem:[#allocation2 + $0x3c] sm:$0xf]
      %v243 = vld [vmem:[#allocation2 + $0x40] sm:$0xf]
      %v244 = vld [vmem:[#allocation2 + $0x48] sm:$0xf]
      %v245 = vld [vmem:[#allocation2 + $0x4c] sm:$0xf]
      %v246 = vld [vmem:[#allocation2 + $0x54] sm:$0xf]
      %v247 = vld [vmem:[#allocation2 + $0x58] sm:$0xf]
      %v248 = vld [vmem:[#allocation2 + $0x60] sm:$0xf]
      %v249 = vld [vmem:[#allocation2 + $0x64] sm:$0xf]
      %v250 = vld [vmem:[#allocation2 + $0x6c] sm:$0xf]
      %v251 = vld [vmem:[#allocation2 + $0x70] sm:$0xf]
      %v252 = vld [vmem:[#allocation2 + $0x78] sm:$0xf]
      %v253 = vld [vmem:[#allocation2 + $0x7c] sm:$0xf]
      %v254 = vld [vmem:[#allocation2 + $0x84] sm:$0xf]
      %v255 = vld [vmem:[#allocation2 + $0x88] sm:$0xf]
      %v256 = vld [vmem:[#allocation2 + $0x90] sm:$0xf]
      %v257 = vld [vmem:[#allocation2 + $0x94] sm:$0xf]
      %v258 = vld [vmem:[#allocation2 + $0x9c] sm:$0xf]
      %v259 = vld [vmem:[#allocation2 + $0xa0] sm:$0xf]
      %v260 = vld [vmem:[#allocation2 + $0xa8] sm:$0xf]
      %v261 = vld [vmem:[#allocation2 + $0xac] sm:$0xf]
      %v262 = vld [vmem:[#allocation2 + $0xb4] sm:$0xf]
      %v263 = vld [vmem:[#allocation2 + $0xb8] sm:$0xf]
      %v264 = vld [vmem:[#allocation2 + $0x8] sm:$0x1]
      %v265 = vld [vmem:[#allocation2 + $0x14] sm:$0x1]
      %v266 = vld [vmem:[#allocation2 + $0x20] sm:$0x1]
      %v267 = vld [vmem:[#allocation2 + $0x2c] sm:$0x1]
      %v268 = vld [vmem:[#allocation2 + $0x38] sm:$0x1]
      %v269 = vld [vmem:[#allocation2 + $0x44] sm:$0x1]
      %v270 = vld [vmem:[#allocation2 + $0x50] sm:$0x1]
      %v271 = vld [vmem:[#allocation2 + $0x5c] sm:$0x1]
      %v272 = vld [vmem:[#allocation2 + $0x68] sm:$0x1]
      %v273 = vld [vmem:[#allocation2 + $0x74] sm:$0x1]
      %v274 = vld [vmem:[#allocation2 + $0x80] sm:$0x1]
      %v275 = vld [vmem:[#allocation2 + $0x8c] sm:$0x1]
      %v276 = vld [vmem:[#allocation2 + $0x98] sm:$0x1]
      %v277 = vld [vmem:[#allocation2 + $0xa4] sm:$0x1]
      %v278 = vld [vmem:[#allocation2 + $0xb0] sm:$0x1]
      %v279 = vld [vmem:[#allocation2 + $0xbc] sm:$0x1]
      %v280 = vld [vmem:[#allocation2] sm:$0xe]
      %v281 = vld [vmem:[#allocation2 + $0xc] sm:$0xe]
      %v282 = vld [vmem:[#allocation2 + $0x18] sm:$0xe]
      %v283 = vld [vmem:[#allocation2 + $0x24] sm:$0xe]
      %v284 = vld [vmem:[#allocation2 + $0x30] sm:$0xe]
      %v285 = vld [vmem:[#allocation2 + $0x3c] sm:$0xe]
      %v286 = vld [vmem:[#allocation2 + $0x48] sm:$0xe]
      %v287 = vld [vmem:[#allocation2 + $0x54] sm:$0xe]
      %v288 = vld [vmem:[#allocation2 + $0x60] sm:$0xe]
      %v289 = vld [vmem:[#allocation2 + $0x6c] sm:$0xe]
      %v290 = vld [vmem:[#allocation2 + $0x78] sm:$0xe]
      %v291 = vld [vmem:[#allocation2 + $0x84] sm:$0xe]
      %v292 = vld [vmem:[#allocation2 + $0x90] sm:$0xe]
      %v293 = vld [vmem:[#allocation2 + $0x9c] sm:$0xe]
      %v294 = vld [vmem:[#allocation2 + $0xa8] sm:$0xe]
      %v295 = vld [vmem:[#allocation2 + $0xb4] sm:$0xe]
      %s296 = scalar_lea.vmem [#allocation2], 12
      %v297 = vld [vmem:[%s296] sm:$0xf]
      %v298 = vld [vmem:[%s296 + $0x4] sm:$0xf]
      %v299 = vld [vmem:[%s296 + $0xc] sm:$0xf]
      %v300 = vld [vmem:[%s296 + $0x10] sm:$0xf]
      %v301 = vld [vmem:[%s296 + $0x18] sm:$0xf]
      %v302 = vld [vmem:[%s296 + $0x1c] sm:$0xf]
      %v303 = vld [vmem:[%s296 + $0x24] sm:$0xf]
      %v304 = vld [vmem:[%s296 + $0x28] sm:$0xf]
      %v305 = vld [vmem:[%s296 + $0x30] sm:$0xf]
      %v306 = vld [vmem:[%s296 + $0x34] sm:$0xf]
      %v307 = vld [vmem:[%s296 + $0x3c] sm:$0xf]
      %v308 = vld [vmem:[%s296 + $0x40] sm:$0xf]
      %v309 = vld [vmem:[%s296 + $0x48] sm:$0xf]
      %v310 = vld [vmem:[%s296 + $0x4c] sm:$0xf]
      %v311 = vld [vmem:[%s296 + $0x54] sm:$0xf]
      %v312 = vld [vmem:[%s296 + $0x58] sm:$0xf]
      %v313 = vld [vmem:[%s296 + $0x60] sm:$0xf]
      %v314 = vld [vmem:[%s296 + $0x64] sm:$0xf]
      %v315 = vld [vmem:[%s296 + $0x6c] sm:$0xf]
      %v316 = vld [vmem:[%s296 + $0x70] sm:$0xf]
      %v317 = vld [vmem:[%s296 + $0x78] sm:$0xf]
      %v318 = vld [vmem:[%s296 + $0x7c] sm:$0xf]
      %v319 = vld [vmem:[%s296 + $0x84] sm:$0xf]
      %v320 = vld [vmem:[%s296 + $0x88] sm:$0xf]
      %v321 = vld [vmem:[%s296 + $0x90] sm:$0xf]
      %v322 = vld [vmem:[%s296 + $0x94] sm:$0xf]
      %v323 = vld [vmem:[%s296 + $0x9c] sm:$0xf]
      %v324 = vld [vmem:[%s296 + $0xa0] sm:$0xf]
      %v325 = vld [vmem:[%s296 + $0xa8] sm:$0xf]
      %v326 = vld [vmem:[%s296 + $0xac] sm:$0xf]
      %v327 = vld [vmem:[%s296 + $0xb4] sm:$0xf]
      %v328 = vld [vmem:[%s296 + $0xb8] sm:$0xf]
      %v329 = vld [vmem:[%s296 + $0x8] sm:$0x1]
      %v330 = vld [vmem:[%s296 + $0x14] sm:$0x1]
      %v331 = vld [vmem:[%s296 + $0x20] sm:$0x1]
      %v332 = vld [vmem:[%s296 + $0x2c] sm:$0x1]
      %v333 = vld [vmem:[%s296 + $0x38] sm:$0x1]
      %v334 = vld [vmem:[%s296 + $0x44] sm:$0x1]
      %v335 = vld [vmem:[%s296 + $0x50] sm:$0x1]
      %v336 = vld [vmem:[%s296 + $0x5c] sm:$0x1]
      %v337 = vld [vmem:[%s296 + $0x68] sm:$0x1]
      %v338 = vld [vmem:[%s296 + $0x74] sm:$0x1]
      %v339 = vld [vmem:[%s296 + $0x80] sm:$0x1]
      %v340 = vld [vmem:[%s296 + $0x8c] sm:$0x1]
      %v341 = vld [vmem:[%s296 + $0x98] sm:$0x1]
      %v342 = vld [vmem:[%s296 + $0xa4] sm:$0x1]
      %v343 = vld [vmem:[%s296 + $0xb0] sm:$0x1]
      %v344 = vld [vmem:[%s296 + $0xbc] sm:$0x1]
      %v345 = vld [vmem:[%s296] sm:$0xe]
      %v346 = vld [vmem:[%s296 + $0xc] sm:$0xe]
      %v347 = vld [vmem:[%s296 + $0x18] sm:$0xe]
      %v348 = vld [vmem:[%s296 + $0x24] sm:$0xe]
      %v349 = vld [vmem:[%s296 + $0x30] sm:$0xe]
      %v350 = vld [vmem:[%s296 + $0x3c] sm:$0xe]
      %v351 = vld [vmem:[%s296 + $0x48] sm:$0xe]
      %v352 = vld [vmem:[%s296 + $0x54] sm:$0xe]
      %v353 = vld [vmem:[%s296 + $0x60] sm:$0xe]
      %v354 = vld [vmem:[%s296 + $0x6c] sm:$0xe]
      %v355 = vld [vmem:[%s296 + $0x78] sm:$0xe]
      %v356 = vld [vmem:[%s296 + $0x84] sm:$0xe]
      %v357 = vld [vmem:[%s296 + $0x90] sm:$0xe]
      %v358 = vld [vmem:[%s296 + $0x9c] sm:$0xe]
      %v359 = vld [vmem:[%s296 + $0xa8] sm:$0xe]
      %v360 = vld [vmem:[%s296 + $0xb4] sm:$0xe]
      %s361 = scalar_lea.vmem [#allocation2], 24
      %v362 = vld [vmem:[%s361] sm:$0xf]
      %v363 = vld [vmem:[%s361 + $0x4] sm:$0xf]
      %v364 = vld [vmem:[%s361 + $0xc] sm:$0xf]
      %v365 = vld [vmem:[%s361 + $0x10] sm:$0xf]
      %v366 = vld [vmem:[%s361 + $0x18] sm:$0xf]
      %v367 = vld [vmem:[%s361 + $0x1c] sm:$0xf]
      %v368 = vld [vmem:[%s361 + $0x24] sm:$0xf]
      %v369 = vld [vmem:[%s361 + $0x28] sm:$0xf]
      %v370 = vld [vmem:[%s361 + $0x30] sm:$0xf]
      %v371 = vld [vmem:[%s361 + $0x34] sm:$0xf]
      %v372 = vld [vmem:[%s361 + $0x3c] sm:$0xf]
      %v373 = vld [vmem:[%s361 + $0x40] sm:$0xf]
      %v374 = vld [vmem:[%s361 + $0x48] sm:$0xf]
      %v375 = vld [vmem:[%s361 + $0x4c] sm:$0xf]
      %v376 = vld [vmem:[%s361 + $0x54] sm:$0xf]
      %v377 = vld [vmem:[%s361 + $0x58] sm:$0xf]
      %v378 = vld [vmem:[%s361 + $0x60] sm:$0xf]
      %v379 = vld [vmem:[%s361 + $0x64] sm:$0xf]
      %v380 = vld [vmem:[%s361 + $0x6c] sm:$0xf]
      %v381 = vld [vmem:[%s361 + $0x70] sm:$0xf]
      %v382 = vld [vmem:[%s361 + $0x78] sm:$0xf]
      %v383 = vld [vmem:[%s361 + $0x7c] sm:$0xf]
      %v384 = vld [vmem:[%s361 + $0x84] sm:$0xf]
      %v385 = vld [vmem:[%s361 + $0x88] sm:$0xf]
      %v386 = vld [vmem:[%s361 + $0x90] sm:$0xf]
      %v387 = vld [vmem:[%s361 + $0x94] sm:$0xf]
      %v388 = vld [vmem:[%s361 + $0x9c] sm:$0xf]
      %v389 = vld [vmem:[%s361 + $0xa0] sm:$0xf]
      %v390 = vld [vmem:[%s361 + $0xa8] sm:$0xf]
      %v391 = vld [vmem:[%s361 + $0xac] sm:$0xf]
      %v392 = vld [vmem:[%s361 + $0xb4] sm:$0xf]
      %v393 = vld [vmem:[%s361 + $0xb8] sm:$0xf]
      %v394 = vld [vmem:[%s361 + $0x8] sm:$0x1]
      %v395 = vld [vmem:[%s361 + $0x14] sm:$0x1]
      %v396 = vld [vmem:[%s361 + $0x20] sm:$0x1]
      %v397 = vld [vmem:[%s361 + $0x2c] sm:$0x1]
      %v398 = vld [vmem:[%s361 + $0x38] sm:$0x1]
      %v399 = vld [vmem:[%s361 + $0x44] sm:$0x1]
      %v400 = vld [vmem:[%s361 + $0x50] sm:$0x1]
      %v401 = vld [vmem:[%s361 + $0x5c] sm:$0x1]
      %v402 = vld [vmem:[%s361 + $0x68] sm:$0x1]
      %v403 = vld [vmem:[%s361 + $0x74] sm:$0x1]
      %v404 = vld [vmem:[%s361 + $0x80] sm:$0x1]
      %v405 = vld [vmem:[%s361 + $0x8c] sm:$0x1]
      %v406 = vld [vmem:[%s361 + $0x98] sm:$0x1]
      %v407 = vld [vmem:[%s361 + $0xa4] sm:$0x1]
      %v408 = vld [vmem:[%s361 + $0xb0] sm:$0x1]
      %v409 = vld [vmem:[%s361 + $0xbc] sm:$0x1]
      %v410 = vld [vmem:[%s361] sm:$0xe]
      %v411 = vld [vmem:[%s361 + $0xc] sm:$0xe]
      %v412 = vld [vmem:[%s361 + $0x18] sm:$0xe]
      %v413 = vld [vmem:[%s361 + $0x24] sm:$0xe]
      %v414 = vld [vmem:[%s361 + $0x30] sm:$0xe]
      %v415 = vld [vmem:[%s361 + $0x3c] sm:$0xe]
      %v416 = vld [vmem:[%s361 + $0x48] sm:$0xe]
      %v417 = vld [vmem:[%s361 + $0x54] sm:$0xe]
      %v418 = vld [vmem:[%s361 + $0x60] sm:$0xe]
      %v419 = vld [vmem:[%s361 + $0x6c] sm:$0xe]
      %v420 = vld [vmem:[%s361 + $0x78] sm:$0xe]
      %v421 = vld [vmem:[%s361 + $0x84] sm:$0xe]
      %v422 = vld [vmem:[%s361 + $0x90] sm:$0xe]
      %v423 = vld [vmem:[%s361 + $0x9c] sm:$0xe]
      %v424 = vld [vmem:[%s361 + $0xa8] sm:$0xe]
      %v425 = vld [vmem:[%s361 + $0xb4] sm:$0xe]
      %v458 = vunpack.c.l.b16 %v232
      %v459 = vunpack.c.l.b16 %v233
      %v460 = vunpack.c.l.b16 %v234
      %v461 = vunpack.c.l.b16 %v235
      %v462 = vunpack.c.l.b16 %v236
      %v463 = vunpack.c.l.b16 %v237
      %v464 = vunpack.c.l.b16 %v238
      %v465 = vunpack.c.l.b16 %v239
      %v466 = vunpack.c.l.b16 %v240
      %v467 = vunpack.c.l.b16 %v241
      %v468 = vunpack.c.l.b16 %v242
      %v469 = vunpack.c.l.b16 %v243
      %v470 = vunpack.c.l.b16 %v244
      %v471 = vunpack.c.l.b16 %v245
      %v472 = vunpack.c.l.b16 %v246
      %v473 = vunpack.c.l.b16 %v247
      %v474 = vunpack.c.l.b16 %v248
      %v475 = vunpack.c.l.b16 %v249
      %v476 = vunpack.c.l.b16 %v250
      %v477 = vunpack.c.l.b16 %v251
      %v478 = vunpack.c.l.b16 %v252
      %v479 = vunpack.c.l.b16 %v253
      %v480 = vunpack.c.l.b16 %v254
      %v481 = vunpack.c.l.b16 %v255
      %v482 = vunpack.c.l.b16 %v256
      %v483 = vunpack.c.l.b16 %v257
      %v484 = vunpack.c.l.b16 %v258
      %v485 = vunpack.c.l.b16 %v259
      %v486 = vunpack.c.l.b16 %v260
      %v487 = vunpack.c.l.b16 %v261
      %v488 = vunpack.c.l.b16 %v262
      %v489 = vunpack.c.l.b16 %v263
      %v490 = vpack.c.b16 %v459, %v458
      %v491 = vpack.c.b16 %v461, %v460
      %v492 = vpack.c.b16 %v463, %v462
      %v493 = vpack.c.b16 %v465, %v464
      %v494 = vpack.c.b16 %v467, %v466
      %v495 = vpack.c.b16 %v469, %v468
      %v496 = vpack.c.b16 %v471, %v470
      %v497 = vpack.c.b16 %v473, %v472
      %v498 = vpack.c.b16 %v475, %v474
      %v499 = vpack.c.b16 %v477, %v476
      %v500 = vpack.c.b16 %v479, %v478
      %v501 = vpack.c.b16 %v481, %v480
      %v502 = vpack.c.b16 %v483, %v482
      %v503 = vpack.c.b16 %v485, %v484
      %v504 = vpack.c.b16 %v487, %v486
      %v505 = vpack.c.b16 %v489, %v488
      %v538 = vunpack.c.l.b16 %v264
      %v539 = vunpack.c.l.b16 %v265
      %v540 = vunpack.c.l.b16 %v266
      %v541 = vunpack.c.l.b16 %v267
      %v542 = vunpack.c.l.b16 %v268
      %v543 = vunpack.c.l.b16 %v269
      %v544 = vunpack.c.l.b16 %v270
      %v545 = vunpack.c.l.b16 %v271
      %v546 = vunpack.c.l.b16 %v272
      %v547 = vunpack.c.l.b16 %v273
      %v548 = vunpack.c.l.b16 %v274
      %v549 = vunpack.c.l.b16 %v275
      %v550 = vunpack.c.l.b16 %v276
      %v551 = vunpack.c.l.b16 %v277
      %v552 = vunpack.c.l.b16 %v278
      %v553 = vunpack.c.l.b16 %v279
      %v554 = vpack.c.b16 %v538, %v538
      %v555 = vpack.c.b16 %v539, %v539
      %v556 = vpack.c.b16 %v540, %v540
      %v557 = vpack.c.b16 %v541, %v541
      %v558 = vpack.c.b16 %v542, %v542
      %v559 = vpack.c.b16 %v543, %v543
      %v560 = vpack.c.b16 %v544, %v544
      %v561 = vpack.c.b16 %v545, %v545
      %v562 = vpack.c.b16 %v546, %v546
      %v563 = vpack.c.b16 %v547, %v547
      %v564 = vpack.c.b16 %v548, %v548
      %v565 = vpack.c.b16 %v549, %v549
      %v566 = vpack.c.b16 %v550, %v550
      %v567 = vpack.c.b16 %v551, %v551
      %v568 = vpack.c.b16 %v552, %v552
      %v569 = vpack.c.b16 %v553, %v553
      %vm570 = vsmask.f32 7424
      %v572 = vshrl.u32 %v490, 16
      %v574 = vshll.u32 %v490, 16
      %v576 = vrot.slane %v574, 1
      %v577 = vor.u32 %v572, %v576
      %v579 = vshll.u32 %v554, 16
      %v581 = vrot.slane %v579, 1
      %v582 = vsel %vm570, %v577, %v581
      %v584 = vshrl.u32 %v491, 16
      %v586 = vshll.u32 %v491, 16
      %v588 = vrot.slane %v586, 1
      %v589 = vor.u32 %v584, %v588
      %v591 = vshll.u32 %v555, 16
      %v593 = vrot.slane %v591, 1
      %v594 = vsel %vm570, %v589, %v593
      %v596 = vshrl.u32 %v492, 16
      %v598 = vshll.u32 %v492, 16
      %v600 = vrot.slane %v598, 1
      %v601 = vor.u32 %v596, %v600
      %v603 = vshll.u32 %v556, 16
      %v605 = vrot.slane %v603, 1
      %v606 = vsel %vm570, %v601, %v605
      %v608 = vshrl.u32 %v493, 16
      %v610 = vshll.u32 %v493, 16
      %v612 = vrot.slane %v610, 1
      %v613 = vor.u32 %v608, %v612
      %v615 = vshll.u32 %v557, 16
      %v617 = vrot.slane %v615, 1
      %v618 = vsel %vm570, %v613, %v617
      %v620 = vshrl.u32 %v494, 16
      %v622 = vshll.u32 %v494, 16
      %v624 = vrot.slane %v622, 1
      %v625 = vor.u32 %v620, %v624
      %v627 = vshll.u32 %v558, 16
      %v629 = vrot.slane %v627, 1
      %v630 = vsel %vm570, %v625, %v629
      %v632 = vshrl.u32 %v495, 16
      %v634 = vshll.u32 %v495, 16
      %v636 = vrot.slane %v634, 1
      %v637 = vor.u32 %v632, %v636
      %v639 = vshll.u32 %v559, 16
      %v641 = vrot.slane %v639, 1
      %v642 = vsel %vm570, %v637, %v641
      %v644 = vshrl.u32 %v496, 16
      %v646 = vshll.u32 %v496, 16
      %v648 = vrot.slane %v646, 1
      %v649 = vor.u32 %v644, %v648
      %v651 = vshll.u32 %v560, 16
      %v653 = vrot.slane %v651, 1
      %v654 = vsel %vm570, %v649, %v653
      %v656 = vshrl.u32 %v497, 16
      %v658 = vshll.u32 %v497, 16
      %v660 = vrot.slane %v658, 1
      %v661 = vor.u32 %v656, %v660
      %v663 = vshll.u32 %v561, 16
      %v665 = vrot.slane %v663, 1
      %v666 = vsel %vm570, %v661, %v665
      %v668 = vshrl.u32 %v498, 16
      %v670 = vshll.u32 %v498, 16
      %v672 = vrot.slane %v670, 1
      %v673 = vor.u32 %v668, %v672
      %v675 = vshll.u32 %v562, 16
      %v677 = vrot.slane %v675, 1
      %v678 = vsel %vm570, %v673, %v677
      %v680 = vshrl.u32 %v499, 16
      %v682 = vshll.u32 %v499, 16
      %v684 = vrot.slane %v682, 1
      %v685 = vor.u32 %v680, %v684
      %v687 = vshll.u32 %v563, 16
      %v689 = vrot.slane %v687, 1
      %v690 = vsel %vm570, %v685, %v689
      %v692 = vshrl.u32 %v500, 16
      %v694 = vshll.u32 %v500, 16
      %v696 = vrot.slane %v694, 1
      %v697 = vor.u32 %v692, %v696
      %v699 = vshll.u32 %v564, 16
      %v701 = vrot.slane %v699, 1
      %v702 = vsel %vm570, %v697, %v701
      %v704 = vshrl.u32 %v501, 16
      %v706 = vshll.u32 %v501, 16
      %v708 = vrot.slane %v706, 1
      %v709 = vor.u32 %v704, %v708
      %v711 = vshll.u32 %v565, 16
      %v713 = vrot.slane %v711, 1
      %v714 = vsel %vm570, %v709, %v713
      %v716 = vshrl.u32 %v502, 16
      %v718 = vshll.u32 %v502, 16
      %v720 = vrot.slane %v718, 1
      %v721 = vor.u32 %v716, %v720
      %v723 = vshll.u32 %v566, 16
      %v725 = vrot.slane %v723, 1
      %v726 = vsel %vm570, %v721, %v725
      %v728 = vshrl.u32 %v503, 16
      %v730 = vshll.u32 %v503, 16
      %v732 = vrot.slane %v730, 1
      %v733 = vor.u32 %v728, %v732
      %v735 = vshll.u32 %v567, 16
      %v737 = vrot.slane %v735, 1
      %v738 = vsel %vm570, %v733, %v737
      %v740 = vshrl.u32 %v504, 16
      %v742 = vshll.u32 %v504, 16
      %v744 = vrot.slane %v742, 1
      %v745 = vor.u32 %v740, %v744
      %v747 = vshll.u32 %v568, 16
      %v749 = vrot.slane %v747, 1
      %v750 = vsel %vm570, %v745, %v749
      %v752 = vshrl.u32 %v505, 16
      %v754 = vshll.u32 %v505, 16
      %v756 = vrot.slane %v754, 1
      %v757 = vor.u32 %v752, %v756
      %v759 = vshll.u32 %v569, 16
      %v761 = vrot.slane %v759, 1
      %v762 = vsel %vm570, %v757, %v761
      %v795 = vunpack.c.l.b16 %v280
      %v796 = vunpack.c.l.b16 %v281
      %v797 = vunpack.c.l.b16 %v282
      %v798 = vunpack.c.l.b16 %v283
      %v799 = vunpack.c.l.b16 %v284
      %v800 = vunpack.c.l.b16 %v285
      %v801 = vunpack.c.l.b16 %v286
      %v802 = vunpack.c.l.b16 %v287
      %v803 = vunpack.c.l.b16 %v288
      %v804 = vunpack.c.l.b16 %v289
      %v805 = vunpack.c.l.b16 %v290
      %v806 = vunpack.c.l.b16 %v291
      %v807 = vunpack.c.l.b16 %v292
      %v808 = vunpack.c.l.b16 %v293
      %v809 = vunpack.c.l.b16 %v294
      %v810 = vunpack.c.l.b16 %v295
      %v811 = vpack.c.b16 %v459, %v795
      %v812 = vpack.c.b16 %v461, %v796
      %v813 = vpack.c.b16 %v463, %v797
      %v814 = vpack.c.b16 %v465, %v798
      %v815 = vpack.c.b16 %v467, %v799
      %v816 = vpack.c.b16 %v469, %v800
      %v817 = vpack.c.b16 %v471, %v801
      %v818 = vpack.c.b16 %v473, %v802
      %v819 = vpack.c.b16 %v475, %v803
      %v820 = vpack.c.b16 %v477, %v804
      %v821 = vpack.c.b16 %v479, %v805
      %v822 = vpack.c.b16 %v481, %v806
      %v823 = vpack.c.b16 %v483, %v807
      %v824 = vpack.c.b16 %v485, %v808
      %v825 = vpack.c.b16 %v487, %v809
      %v826 = vpack.c.b16 %v489, %v810
      %vm827 = vcmask 1046528
      %v828 = vrot.slane %v811, 1
      %v829 = vrot.slane %v554, 1
      %v830 = vsel %vm827, %v828, %v829
      %v831 = vrot.slane %v812, 1
      %v832 = vrot.slane %v555, 1
      %v833 = vsel %vm827, %v831, %v832
      %v834 = vrot.slane %v813, 1
      %v835 = vrot.slane %v556, 1
      %v836 = vsel %vm827, %v834, %v835
      %v837 = vrot.slane %v814, 1
      %v838 = vrot.slane %v557, 1
      %v839 = vsel %vm827, %v837, %v838
      %v840 = vrot.slane %v815, 1
      %v841 = vrot.slane %v558, 1
      %v842 = vsel %vm827, %v840, %v841
      %v843 = vrot.slane %v816, 1
      %v844 = vrot.slane %v559, 1
      %v845 = vsel %vm827, %v843, %v844
      %v846 = vrot.slane %v817, 1
      %v847 = vrot.slane %v560, 1
      %v848 = vsel %vm827, %v846, %v847
      %v849 = vrot.slane %v818, 1
      %v850 = vrot.slane %v561, 1
      %v851 = vsel %vm827, %v849, %v850
      %v852 = vrot.slane %v819, 1
      %v853 = vrot.slane %v562, 1
      %v854 = vsel %vm827, %v852, %v853
      %v855 = vrot.slane %v820, 1
      %v856 = vrot.slane %v563, 1
      %v857 = vsel %vm827, %v855, %v856
      %v858 = vrot.slane %v821, 1
      %v859 = vrot.slane %v564, 1
      %v860 = vsel %vm827, %v858, %v859
      %v861 = vrot.slane %v822, 1
      %v862 = vrot.slane %v565, 1
      %v863 = vsel %vm827, %v861, %v862
      %v864 = vrot.slane %v823, 1
      %v865 = vrot.slane %v566, 1
      %v866 = vsel %vm827, %v864, %v865
      %v867 = vrot.slane %v824, 1
      %v868 = vrot.slane %v567, 1
      %v869 = vsel %vm827, %v867, %v868
      %v870 = vrot.slane %v825, 1
      %v871 = vrot.slane %v568, 1
      %v872 = vsel %vm827, %v870, %v871
      %v873 = vrot.slane %v826, 1
      %v874 = vrot.slane %v569, 1
      %v875 = vsel %vm827, %v873, %v874
      %v924 = vunpack.c.l.b16 %v297
      %v925 = vunpack.c.l.b16 %v298
      %v926 = vunpack.c.l.b16 %v299
      %v927 = vunpack.c.l.b16 %v300
      %v928 = vunpack.c.l.b16 %v301
      %v929 = vunpack.c.l.b16 %v302
      %v930 = vunpack.c.l.b16 %v303
      %v931 = vunpack.c.l.b16 %v304
      %v932 = vunpack.c.l.b16 %v305
      %v933 = vunpack.c.l.b16 %v306
      %v934 = vunpack.c.l.b16 %v307
      %v935 = vunpack.c.l.b16 %v308
      %v936 = vunpack.c.l.b16 %v309
      %v937 = vunpack.c.l.b16 %v310
      %v938 = vunpack.c.l.b16 %v311
      %v939 = vunpack.c.l.b16 %v312
      %v940 = vunpack.c.l.b16 %v313
      %v941 = vunpack.c.l.b16 %v314
      %v942 = vunpack.c.l.b16 %v315
      %v943 = vunpack.c.l.b16 %v316
      %v944 = vunpack.c.l.b16 %v317
      %v945 = vunpack.c.l.b16 %v318
      %v946 = vunpack.c.l.b16 %v319
      %v947 = vunpack.c.l.b16 %v320
      %v948 = vunpack.c.l.b16 %v321
      %v949 = vunpack.c.l.b16 %v322
      %v950 = vunpack.c.l.b16 %v323
      %v951 = vunpack.c.l.b16 %v324
      %v952 = vunpack.c.l.b16 %v325
      %v953 = vunpack.c.l.b16 %v326
      %v954 = vunpack.c.l.b16 %v327
      %v955 = vunpack.c.l.b16 %v328
      %v956 = vpack.c.b16 %v925, %v924
      %v957 = vpack.c.b16 %v927, %v926
      %v958 = vpack.c.b16 %v929, %v928
      %v959 = vpack.c.b16 %v931, %v930
      %v960 = vpack.c.b16 %v933, %v932
      %v961 = vpack.c.b16 %v935, %v934
      %v962 = vpack.c.b16 %v937, %v936
      %v963 = vpack.c.b16 %v939, %v938
      %v964 = vpack.c.b16 %v941, %v940
      %v965 = vpack.c.b16 %v943, %v942
      %v966 = vpack.c.b16 %v945, %v944
      %v967 = vpack.c.b16 %v947, %v946
      %v968 = vpack.c.b16 %v949, %v948
      %v969 = vpack.c.b16 %v951, %v950
      %v970 = vpack.c.b16 %v953, %v952
      %v971 = vpack.c.b16 %v955, %v954
      %v1004 = vunpack.c.l.b16 %v329
      %v1005 = vunpack.c.l.b16 %v330
      %v1006 = vunpack.c.l.b16 %v331
      %v1007 = vunpack.c.l.b16 %v332
      %v1008 = vunpack.c.l.b16 %v333
      %v1009 = vunpack.c.l.b16 %v334
      %v1010 = vunpack.c.l.b16 %v335
      %v1011 = vunpack.c.l.b16 %v336
      %v1012 = vunpack.c.l.b16 %v337
      %v1013 = vunpack.c.l.b16 %v338
      %v1014 = vunpack.c.l.b16 %v339
      %v1015 = vunpack.c.l.b16 %v340
      %v1016 = vunpack.c.l.b16 %v341
      %v1017 = vunpack.c.l.b16 %v342
      %v1018 = vunpack.c.l.b16 %v343
      %v1019 = vunpack.c.l.b16 %v344
      %v1020 = vpack.c.b16 %v1004, %v1004
      %v1021 = vpack.c.b16 %v1005, %v1005
      %v1022 = vpack.c.b16 %v1006, %v1006
      %v1023 = vpack.c.b16 %v1007, %v1007
      %v1024 = vpack.c.b16 %v1008, %v1008
      %v1025 = vpack.c.b16 %v1009, %v1009
      %v1026 = vpack.c.b16 %v1010, %v1010
      %v1027 = vpack.c.b16 %v1011, %v1011
      %v1028 = vpack.c.b16 %v1012, %v1012
      %v1029 = vpack.c.b16 %v1013, %v1013
      %v1030 = vpack.c.b16 %v1014, %v1014
      %v1031 = vpack.c.b16 %v1015, %v1015
      %v1032 = vpack.c.b16 %v1016, %v1016
      %v1033 = vpack.c.b16 %v1017, %v1017
      %v1034 = vpack.c.b16 %v1018, %v1018
      %v1035 = vpack.c.b16 %v1019, %v1019
      %v1037 = vshrl.u32 %v956, 16
      %v1039 = vshll.u32 %v956, 16
      %v1041 = vrot.slane %v1039, 1
      %v1042 = vor.u32 %v1037, %v1041
      %v1044 = vshll.u32 %v1020, 16
      %v1046 = vrot.slane %v1044, 1
      %v1047 = vsel %vm570, %v1042, %v1046
      %v1049 = vshrl.u32 %v957, 16
      %v1051 = vshll.u32 %v957, 16
      %v1053 = vrot.slane %v1051, 1
      %v1054 = vor.u32 %v1049, %v1053
      %v1056 = vshll.u32 %v1021, 16
      %v1058 = vrot.slane %v1056, 1
      %v1059 = vsel %vm570, %v1054, %v1058
      %v1061 = vshrl.u32 %v958, 16
      %v1063 = vshll.u32 %v958, 16
      %v1065 = vrot.slane %v1063, 1
      %v1066 = vor.u32 %v1061, %v1065
      %v1068 = vshll.u32 %v1022, 16
      %v1070 = vrot.slane %v1068, 1
      %v1071 = vsel %vm570, %v1066, %v1070
      %v1073 = vshrl.u32 %v959, 16
      %v1075 = vshll.u32 %v959, 16
      %v1077 = vrot.slane %v1075, 1
      %v1078 = vor.u32 %v1073, %v1077
      %v1080 = vshll.u32 %v1023, 16
      %v1082 = vrot.slane %v1080, 1
      %v1083 = vsel %vm570, %v1078, %v1082
      %v1085 = vshrl.u32 %v960, 16
      %v1087 = vshll.u32 %v960, 16
      %v1089 = vrot.slane %v1087, 1
      %v1090 = vor.u32 %v1085, %v1089
      %v1092 = vshll.u32 %v1024, 16
      %v1094 = vrot.slane %v1092, 1
      %v1095 = vsel %vm570, %v1090, %v1094
      %v1097 = vshrl.u32 %v961, 16
      %v1099 = vshll.u32 %v961, 16
      %v1101 = vrot.slane %v1099, 1
      %v1102 = vor.u32 %v1097, %v1101
      %v1104 = vshll.u32 %v1025, 16
      %v1106 = vrot.slane %v1104, 1
      %v1107 = vsel %vm570, %v1102, %v1106
      %v1109 = vshrl.u32 %v962, 16
      %v1111 = vshll.u32 %v962, 16
      %v1113 = vrot.slane %v1111, 1
      %v1114 = vor.u32 %v1109, %v1113
      %v1116 = vshll.u32 %v1026, 16
      %v1118 = vrot.slane %v1116, 1
      %v1119 = vsel %vm570, %v1114, %v1118
      %v1121 = vshrl.u32 %v963, 16
      %v1123 = vshll.u32 %v963, 16
      %v1125 = vrot.slane %v1123, 1
      %v1126 = vor.u32 %v1121, %v1125
      %v1128 = vshll.u32 %v1027, 16
      %v1130 = vrot.slane %v1128, 1
      %v1131 = vsel %vm570, %v1126, %v1130
      %v1133 = vshrl.u32 %v964, 16
      %v1135 = vshll.u32 %v964, 16
      %v1137 = vrot.slane %v1135, 1
      %v1138 = vor.u32 %v1133, %v1137
      %v1140 = vshll.u32 %v1028, 16
      %v1142 = vrot.slane %v1140, 1
      %v1143 = vsel %vm570, %v1138, %v1142
      %v1145 = vshrl.u32 %v965, 16
      %v1147 = vshll.u32 %v965, 16
      %v1149 = vrot.slane %v1147, 1
      %v1150 = vor.u32 %v1145, %v1149
      %v1152 = vshll.u32 %v1029, 16
      %v1154 = vrot.slane %v1152, 1
      %v1155 = vsel %vm570, %v1150, %v1154
      %v1157 = vshrl.u32 %v966, 16
      %v1159 = vshll.u32 %v966, 16
      %v1161 = vrot.slane %v1159, 1
      %v1162 = vor.u32 %v1157, %v1161
      %v1164 = vshll.u32 %v1030, 16
      %v1166 = vrot.slane %v1164, 1
      %v1167 = vsel %vm570, %v1162, %v1166
      %v1169 = vshrl.u32 %v967, 16
      %v1171 = vshll.u32 %v967, 16
      %v1173 = vrot.slane %v1171, 1
      %v1174 = vor.u32 %v1169, %v1173
      %v1176 = vshll.u32 %v1031, 16
      %v1178 = vrot.slane %v1176, 1
      %v1179 = vsel %vm570, %v1174, %v1178
      %v1181 = vshrl.u32 %v968, 16
      %v1183 = vshll.u32 %v968, 16
      %v1185 = vrot.slane %v1183, 1
      %v1186 = vor.u32 %v1181, %v1185
      %v1188 = vshll.u32 %v1032, 16
      %v1190 = vrot.slane %v1188, 1
      %v1191 = vsel %vm570, %v1186, %v1190
      %v1193 = vshrl.u32 %v969, 16
      %v1195 = vshll.u32 %v969, 16
      %v1197 = vrot.slane %v1195, 1
      %v1198 = vor.u32 %v1193, %v1197
      %v1200 = vshll.u32 %v1033, 16
      %v1202 = vrot.slane %v1200, 1
      %v1203 = vsel %vm570, %v1198, %v1202
      %v1205 = vshrl.u32 %v970, 16
      %v1207 = vshll.u32 %v970, 16
      %v1209 = vrot.slane %v1207, 1
      %v1210 = vor.u32 %v1205, %v1209
      %v1212 = vshll.u32 %v1034, 16
      %v1214 = vrot.slane %v1212, 1
      %v1215 = vsel %vm570, %v1210, %v1214
      %v1217 = vshrl.u32 %v971, 16
      %v1219 = vshll.u32 %v971, 16
      %v1221 = vrot.slane %v1219, 1
      %v1222 = vor.u32 %v1217, %v1221
      %v1224 = vshll.u32 %v1035, 16
      %v1226 = vrot.slane %v1224, 1
      %v1227 = vsel %vm570, %v1222, %v1226
      %v1260 = vunpack.c.l.b16 %v345
      %v1261 = vunpack.c.l.b16 %v346
      %v1262 = vunpack.c.l.b16 %v347
      %v1263 = vunpack.c.l.b16 %v348
      %v1264 = vunpack.c.l.b16 %v349
      %v1265 = vunpack.c.l.b16 %v350
      %v1266 = vunpack.c.l.b16 %v351
      %v1267 = vunpack.c.l.b16 %v352
      %v1268 = vunpack.c.l.b16 %v353
      %v1269 = vunpack.c.l.b16 %v354
      %v1270 = vunpack.c.l.b16 %v355
      %v1271 = vunpack.c.l.b16 %v356
      %v1272 = vunpack.c.l.b16 %v357
      %v1273 = vunpack.c.l.b16 %v358
      %v1274 = vunpack.c.l.b16 %v359
      %v1275 = vunpack.c.l.b16 %v360
      %v1276 = vpack.c.b16 %v925, %v1260
      %v1277 = vpack.c.b16 %v927, %v1261
      %v1278 = vpack.c.b16 %v929, %v1262
      %v1279 = vpack.c.b16 %v931, %v1263
      %v1280 = vpack.c.b16 %v933, %v1264
      %v1281 = vpack.c.b16 %v935, %v1265
      %v1282 = vpack.c.b16 %v937, %v1266
      %v1283 = vpack.c.b16 %v939, %v1267
      %v1284 = vpack.c.b16 %v941, %v1268
      %v1285 = vpack.c.b16 %v943, %v1269
      %v1286 = vpack.c.b16 %v945, %v1270
      %v1287 = vpack.c.b16 %v947, %v1271
      %v1288 = vpack.c.b16 %v949, %v1272
      %v1289 = vpack.c.b16 %v951, %v1273
      %v1290 = vpack.c.b16 %v953, %v1274
      %v1291 = vpack.c.b16 %v955, %v1275
      %v1292 = vrot.slane %v1276, 1
      %v1293 = vrot.slane %v1020, 1
      %v1294 = vsel %vm827, %v1292, %v1293
      %v1295 = vrot.slane %v1277, 1
      %v1296 = vrot.slane %v1021, 1
      %v1297 = vsel %vm827, %v1295, %v1296
      %v1298 = vrot.slane %v1278, 1
      %v1299 = vrot.slane %v1022, 1
      %v1300 = vsel %vm827, %v1298, %v1299
      %v1301 = vrot.slane %v1279, 1
      %v1302 = vrot.slane %v1023, 1
      %v1303 = vsel %vm827, %v1301, %v1302
      %v1304 = vrot.slane %v1280, 1
      %v1305 = vrot.slane %v1024, 1
      %v1306 = vsel %vm827, %v1304, %v1305
      %v1307 = vrot.slane %v1281, 1
      %v1308 = vrot.slane %v1025, 1
      %v1309 = vsel %vm827, %v1307, %v1308
      %v1310 = vrot.slane %v1282, 1
      %v1311 = vrot.slane %v1026, 1
      %v1312 = vsel %vm827, %v1310, %v1311
      %v1313 = vrot.slane %v1283, 1
      %v1314 = vrot.slane %v1027, 1
      %v1315 = vsel %vm827, %v1313, %v1314
      %v1316 = vrot.slane %v1284, 1
      %v1317 = vrot.slane %v1028, 1
      %v1318 = vsel %vm827, %v1316, %v1317
      %v1319 = vrot.slane %v1285, 1
      %v1320 = vrot.slane %v1029, 1
      %v1321 = vsel %vm827, %v1319, %v1320
      %v1322 = vrot.slane %v1286, 1
      %v1323 = vrot.slane %v1030, 1
      %v1324 = vsel %vm827, %v1322, %v1323
      %v1325 = vrot.slane %v1287, 1
      %v1326 = vrot.slane %v1031, 1
      %v1327 = vsel %vm827, %v1325, %v1326
      %v1328 = vrot.slane %v1288, 1
      %v1329 = vrot.slane %v1032, 1
      %v1330 = vsel %vm827, %v1328, %v1329
      %v1331 = vrot.slane %v1289, 1
      %v1332 = vrot.slane %v1033, 1
      %v1333 = vsel %vm827, %v1331, %v1332
      %v1334 = vrot.slane %v1290, 1
      %v1335 = vrot.slane %v1034, 1
      %v1336 = vsel %vm827, %v1334, %v1335
      %v1337 = vrot.slane %v1291, 1
      %v1338 = vrot.slane %v1035, 1
      %v1339 = vsel %vm827, %v1337, %v1338
      %v1388 = vunpack.c.l.b16 %v362
      %v1389 = vunpack.c.l.b16 %v363
      %v1390 = vunpack.c.l.b16 %v364
      %v1391 = vunpack.c.l.b16 %v365
      %v1392 = vunpack.c.l.b16 %v366
      %v1393 = vunpack.c.l.b16 %v367
      %v1394 = vunpack.c.l.b16 %v368
      %v1395 = vunpack.c.l.b16 %v369
      %v1396 = vunpack.c.l.b16 %v370
      %v1397 = vunpack.c.l.b16 %v371
      %v1398 = vunpack.c.l.b16 %v372
      %v1399 = vunpack.c.l.b16 %v373
      %v1400 = vunpack.c.l.b16 %v374
      %v1401 = vunpack.c.l.b16 %v375
      %v1402 = vunpack.c.l.b16 %v376
      %v1403 = vunpack.c.l.b16 %v377
      %v1404 = vunpack.c.l.b16 %v378
      %v1405 = vunpack.c.l.b16 %v379
      %v1406 = vunpack.c.l.b16 %v380
      %v1407 = vunpack.c.l.b16 %v381
      %v1408 = vunpack.c.l.b16 %v382
      %v1409 = vunpack.c.l.b16 %v383
      %v1410 = vunpack.c.l.b16 %v384
      %v1411 = vunpack.c.l.b16 %v385
      %v1412 = vunpack.c.l.b16 %v386
      %v1413 = vunpack.c.l.b16 %v387
      %v1414 = vunpack.c.l.b16 %v388
      %v1415 = vunpack.c.l.b16 %v389
      %v1416 = vunpack.c.l.b16 %v390
      %v1417 = vunpack.c.l.b16 %v391
      %v1418 = vunpack.c.l.b16 %v392
      %v1419 = vunpack.c.l.b16 %v393
      %v1420 = vpack.c.b16 %v1389, %v1388
      %v1421 = vpack.c.b16 %v1391, %v1390
      %v1422 = vpack.c.b16 %v1393, %v1392
      %v1423 = vpack.c.b16 %v1395, %v1394
      %v1424 = vpack.c.b16 %v1397, %v1396
      %v1425 = vpack.c.b16 %v1399, %v1398
      %v1426 = vpack.c.b16 %v1401, %v1400
      %v1427 = vpack.c.b16 %v1403, %v1402
      %v1428 = vpack.c.b16 %v1405, %v1404
      %v1429 = vpack.c.b16 %v1407, %v1406
      %v1430 = vpack.c.b16 %v1409, %v1408
      %v1431 = vpack.c.b16 %v1411, %v1410
      %v1432 = vpack.c.b16 %v1413, %v1412
      %v1433 = vpack.c.b16 %v1415, %v1414
      %v1434 = vpack.c.b16 %v1417, %v1416
      %v1435 = vpack.c.b16 %v1419, %v1418
      %v1468 = vunpack.c.l.b16 %v394
      %v1469 = vunpack.c.l.b16 %v395
      %v1470 = vunpack.c.l.b16 %v396
      %v1471 = vunpack.c.l.b16 %v397
      %v1472 = vunpack.c.l.b16 %v398
      %v1473 = vunpack.c.l.b16 %v399
      %v1474 = vunpack.c.l.b16 %v400
      %v1475 = vunpack.c.l.b16 %v401
      %v1476 = vunpack.c.l.b16 %v402
      %v1477 = vunpack.c.l.b16 %v403
      %v1478 = vunpack.c.l.b16 %v404
      %v1479 = vunpack.c.l.b16 %v405
      %v1480 = vunpack.c.l.b16 %v406
      %v1481 = vunpack.c.l.b16 %v407
      %v1482 = vunpack.c.l.b16 %v408
      %v1483 = vunpack.c.l.b16 %v409
      %v1484 = vpack.c.b16 %v1468, %v1468
      %v1485 = vpack.c.b16 %v1469, %v1469
      %v1486 = vpack.c.b16 %v1470, %v1470
      %v1487 = vpack.c.b16 %v1471, %v1471
      %v1488 = vpack.c.b16 %v1472, %v1472
      %v1489 = vpack.c.b16 %v1473, %v1473
      %v1490 = vpack.c.b16 %v1474, %v1474
      %v1491 = vpack.c.b16 %v1475, %v1475
      %v1492 = vpack.c.b16 %v1476, %v1476
      %v1493 = vpack.c.b16 %v1477, %v1477
      %v1494 = vpack.c.b16 %v1478, %v1478
      %v1495 = vpack.c.b16 %v1479, %v1479
      %v1496 = vpack.c.b16 %v1480, %v1480
      %v1497 = vpack.c.b16 %v1481, %v1481
      %v1498 = vpack.c.b16 %v1482, %v1482
      %v1499 = vpack.c.b16 %v1483, %v1483
      %v1501 = vshrl.u32 %v1420, 16
      %v1503 = vshll.u32 %v1420, 16
      %v1505 = vrot.slane %v1503, 1
      %v1506 = vor.u32 %v1501, %v1505
      %v1508 = vshll.u32 %v1484, 16
      %v1510 = vrot.slane %v1508, 1
      %v1511 = vsel %vm570, %v1506, %v1510
      %v1513 = vshrl.u32 %v1421, 16
      %v1515 = vshll.u32 %v1421, 16
      %v1517 = vrot.slane %v1515, 1
      %v1518 = vor.u32 %v1513, %v1517
      %v1520 = vshll.u32 %v1485, 16
      %v1522 = vrot.slane %v1520, 1
      %v1523 = vsel %vm570, %v1518, %v1522
      %v1525 = vshrl.u32 %v1422, 16
      %v1527 = vshll.u32 %v1422, 16
      %v1529 = vrot.slane %v1527, 1
      %v1530 = vor.u32 %v1525, %v1529
      %v1532 = vshll.u32 %v1486, 16
      %v1534 = vrot.slane %v1532, 1
      %v1535 = vsel %vm570, %v1530, %v1534
      %v1537 = vshrl.u32 %v1423, 16
      %v1539 = vshll.u32 %v1423, 16
      %v1541 = vrot.slane %v1539, 1
      %v1542 = vor.u32 %v1537, %v1541
      %v1544 = vshll.u32 %v1487, 16
      %v1546 = vrot.slane %v1544, 1
      %v1547 = vsel %vm570, %v1542, %v1546
      %v1549 = vshrl.u32 %v1424, 16
      %v1551 = vshll.u32 %v1424, 16
      %v1553 = vrot.slane %v1551, 1
      %v1554 = vor.u32 %v1549, %v1553
      %v1556 = vshll.u32 %v1488, 16
      %v1558 = vrot.slane %v1556, 1
      %v1559 = vsel %vm570, %v1554, %v1558
      %v1561 = vshrl.u32 %v1425, 16
      %v1563 = vshll.u32 %v1425, 16
      %v1565 = vrot.slane %v1563, 1
      %v1566 = vor.u32 %v1561, %v1565
      %v1568 = vshll.u32 %v1489, 16
      %v1570 = vrot.slane %v1568, 1
      %v1571 = vsel %vm570, %v1566, %v1570
      %v1573 = vshrl.u32 %v1426, 16
      %v1575 = vshll.u32 %v1426, 16
      %v1577 = vrot.slane %v1575, 1
      %v1578 = vor.u32 %v1573, %v1577
      %v1580 = vshll.u32 %v1490, 16
      %v1582 = vrot.slane %v1580, 1
      %v1583 = vsel %vm570, %v1578, %v1582
      %v1585 = vshrl.u32 %v1427, 16
      %v1587 = vshll.u32 %v1427, 16
      %v1589 = vrot.slane %v1587, 1
      %v1590 = vor.u32 %v1585, %v1589
      %v1592 = vshll.u32 %v1491, 16
      %v1594 = vrot.slane %v1592, 1
      %v1595 = vsel %vm570, %v1590, %v1594
      %v1597 = vshrl.u32 %v1428, 16
      %v1599 = vshll.u32 %v1428, 16
      %v1601 = vrot.slane %v1599, 1
      %v1602 = vor.u32 %v1597, %v1601
      %v1604 = vshll.u32 %v1492, 16
      %v1606 = vrot.slane %v1604, 1
      %v1607 = vsel %vm570, %v1602, %v1606
      %v1609 = vshrl.u32 %v1429, 16
      %v1611 = vshll.u32 %v1429, 16
      %v1613 = vrot.slane %v1611, 1
      %v1614 = vor.u32 %v1609, %v1613
      %v1616 = vshll.u32 %v1493, 16
      %v1618 = vrot.slane %v1616, 1
      %v1619 = vsel %vm570, %v1614, %v1618
      %v1621 = vshrl.u32 %v1430, 16
      %v1623 = vshll.u32 %v1430, 16
      %v1625 = vrot.slane %v1623, 1
      %v1626 = vor.u32 %v1621, %v1625
      %v1628 = vshll.u32 %v1494, 16
      %v1630 = vrot.slane %v1628, 1
      %v1631 = vsel %vm570, %v1626, %v1630
      %v1633 = vshrl.u32 %v1431, 16
      %v1635 = vshll.u32 %v1431, 16
      %v1637 = vrot.slane %v1635, 1
      %v1638 = vor.u32 %v1633, %v1637
      %v1640 = vshll.u32 %v1495, 16
      %v1642 = vrot.slane %v1640, 1
      %v1643 = vsel %vm570, %v1638, %v1642
      %v1645 = vshrl.u32 %v1432, 16
      %v1647 = vshll.u32 %v1432, 16
      %v1649 = vrot.slane %v1647, 1
      %v1650 = vor.u32 %v1645, %v1649
      %v1652 = vshll.u32 %v1496, 16
      %v1654 = vrot.slane %v1652, 1
      %v1655 = vsel %vm570, %v1650, %v1654
      %v1657 = vshrl.u32 %v1433, 16
      %v1659 = vshll.u32 %v1433, 16
      %v1661 = vrot.slane %v1659, 1
      %v1662 = vor.u32 %v1657, %v1661
      %v1664 = vshll.u32 %v1497, 16
      %v1666 = vrot.slane %v1664, 1
      %v1667 = vsel %vm570, %v1662, %v1666
      %v1669 = vshrl.u32 %v1434, 16
      %v1671 = vshll.u32 %v1434, 16
      %v1673 = vrot.slane %v1671, 1
      %v1674 = vor.u32 %v1669, %v1673
      %v1676 = vshll.u32 %v1498, 16
      %v1678 = vrot.slane %v1676, 1
      %v1679 = vsel %vm570, %v1674, %v1678
      %v1681 = vshrl.u32 %v1435, 16
      %v1683 = vshll.u32 %v1435, 16
      %v1685 = vrot.slane %v1683, 1
      %v1686 = vor.u32 %v1681, %v1685
      %v1688 = vshll.u32 %v1499, 16
      %v1690 = vrot.slane %v1688, 1
      %v1691 = vsel %vm570, %v1686, %v1690
      %v1724 = vunpack.c.l.b16 %v410
      %v1725 = vunpack.c.l.b16 %v411
      %v1726 = vunpack.c.l.b16 %v412
      %v1727 = vunpack.c.l.b16 %v413
      %v1728 = vunpack.c.l.b16 %v414
      %v1729 = vunpack.c.l.b16 %v415
      %v1730 = vunpack.c.l.b16 %v416
      %v1731 = vunpack.c.l.b16 %v417
      %v1732 = vunpack.c.l.b16 %v418
      %v1733 = vunpack.c.l.b16 %v419
      %v1734 = vunpack.c.l.b16 %v420
      %v1735 = vunpack.c.l.b16 %v421
      %v1736 = vunpack.c.l.b16 %v422
      %v1737 = vunpack.c.l.b16 %v423
      %v1738 = vunpack.c.l.b16 %v424
      %v1739 = vunpack.c.l.b16 %v425
      %v1740 = vpack.c.b16 %v1389, %v1724
      %v1741 = vpack.c.b16 %v1391, %v1725
      %v1742 = vpack.c.b16 %v1393, %v1726
      %v1743 = vpack.c.b16 %v1395, %v1727
      %v1744 = vpack.c.b16 %v1397, %v1728
      %v1745 = vpack.c.b16 %v1399, %v1729
      %v1746 = vpack.c.b16 %v1401, %v1730
      %v1747 = vpack.c.b16 %v1403, %v1731
      %v1748 = vpack.c.b16 %v1405, %v1732
      %v1749 = vpack.c.b16 %v1407, %v1733
      %v1750 = vpack.c.b16 %v1409, %v1734
      %v1751 = vpack.c.b16 %v1411, %v1735
      %v1752 = vpack.c.b16 %v1413, %v1736
      %v1753 = vpack.c.b16 %v1415, %v1737
      %v1754 = vpack.c.b16 %v1417, %v1738
      %v1755 = vpack.c.b16 %v1419, %v1739
      %v1756 = vrot.slane %v1740, 1
      %v1757 = vrot.slane %v1484, 1
      %v1758 = vsel %vm827, %v1756, %v1757
      %v1759 = vrot.slane %v1741, 1
      %v1760 = vrot.slane %v1485, 1
      %v1761 = vsel %vm827, %v1759, %v1760
      %v1762 = vrot.slane %v1742, 1
      %v1763 = vrot.slane %v1486, 1
      %v1764 = vsel %vm827, %v1762, %v1763
      %v1765 = vrot.slane %v1743, 1
      %v1766 = vrot.slane %v1487, 1
      %v1767 = vsel %vm827, %v1765, %v1766
      %v1768 = vrot.slane %v1744, 1
      %v1769 = vrot.slane %v1488, 1
      %v1770 = vsel %vm827, %v1768, %v1769
      %v1771 = vrot.slane %v1745, 1
      %v1772 = vrot.slane %v1489, 1
      %v1773 = vsel %vm827, %v1771, %v1772
      %v1774 = vrot.slane %v1746, 1
      %v1775 = vrot.slane %v1490, 1
      %v1776 = vsel %vm827, %v1774, %v1775
      %v1777 = vrot.slane %v1747, 1
      %v1778 = vrot.slane %v1491, 1
      %v1779 = vsel %vm827, %v1777, %v1778
      %v1780 = vrot.slane %v1748, 1
      %v1781 = vrot.slane %v1492, 1
      %v1782 = vsel %vm827, %v1780, %v1781
      %v1783 = vrot.slane %v1749, 1
      %v1784 = vrot.slane %v1493, 1
      %v1785 = vsel %vm827, %v1783, %v1784
      %v1786 = vrot.slane %v1750, 1
      %v1787 = vrot.slane %v1494, 1
      %v1788 = vsel %vm827, %v1786, %v1787
      %v1789 = vrot.slane %v1751, 1
      %v1790 = vrot.slane %v1495, 1
      %v1791 = vsel %vm827, %v1789, %v1790
      %v1792 = vrot.slane %v1752, 1
      %v1793 = vrot.slane %v1496, 1
      %v1794 = vsel %vm827, %v1792, %v1793
      %v1795 = vrot.slane %v1753, 1
      %v1796 = vrot.slane %v1497, 1
      %v1797 = vsel %vm827, %v1795, %v1796
      %v1798 = vrot.slane %v1754, 1
      %v1799 = vrot.slane %v1498, 1
      %v1800 = vsel %vm827, %v1798, %v1799
      %v1801 = vrot.slane %v1755, 1
      %v1802 = vrot.slane %v1499, 1
      %v1803 = vsel %vm827, %v1801, %v1802
      %v1820 = vld [vmem:[%s1] sm:$0xf]
      %v1821 = vld [vmem:[%s1 + $0x4] sm:$0xf]
      %v1822 = vld [vmem:[%s1 + $0x8] sm:$0xf]
      %v1823 = vld [vmem:[%s1 + $0xc] sm:$0xf]
      %v1824 = vld [vmem:[%s1 + $0x10] sm:$0xf]
      %v1825 = vld [vmem:[%s1 + $0x14] sm:$0xf]
      %v1826 = vld [vmem:[%s1 + $0x18] sm:$0xf]
      %v1827 = vld [vmem:[%s1 + $0x1c] sm:$0xf]
      %v1828 = vld [vmem:[%s1 + $0x20] sm:$0xf]
      %v1829 = vld [vmem:[%s1 + $0x24] sm:$0xf]
      %v1830 = vld [vmem:[%s1 + $0x28] sm:$0xf]
      %v1831 = vld [vmem:[%s1 + $0x2c] sm:$0xf]
      %v1832 = vld [vmem:[%s1 + $0x30] sm:$0xf]
      %v1833 = vld [vmem:[%s1 + $0x34] sm:$0xf]
      %v1834 = vld [vmem:[%s1 + $0x38] sm:$0xf]
      %v1835 = vld [vmem:[%s1 + $0x3c] sm:$0xf]
      %v1836 = vld [vmem:[%s1 + $0x40] sm:$0xf]
      %v1837 = vld [vmem:[%s1 + $0x44] sm:$0xf]
      %v1838 = vld [vmem:[%s1 + $0x48] sm:$0xf]
      %v1839 = vld [vmem:[%s1 + $0x4c] sm:$0xf]
      %v1840 = vld [vmem:[%s1 + $0x50] sm:$0xf]
      %v1841 = vld [vmem:[%s1 + $0x54] sm:$0xf]
      %v1842 = vld [vmem:[%s1 + $0x58] sm:$0xf]
      %v1843 = vld [vmem:[%s1 + $0x5c] sm:$0xf]
      %v1844 = vld [vmem:[%s1 + $0x60] sm:$0xf]
      %v1845 = vld [vmem:[%s1 + $0x64] sm:$0xf]
      %v1846 = vld [vmem:[%s1 + $0x68] sm:$0xf]
      %v1847 = vld [vmem:[%s1 + $0x6c] sm:$0xf]
      %v1848 = vld [vmem:[%s1 + $0x70] sm:$0xf]
      %v1849 = vld [vmem:[%s1 + $0x74] sm:$0xf]
      %v1850 = vld [vmem:[%s1 + $0x78] sm:$0xf]
      %v1851 = vld [vmem:[%s1 + $0x7c] sm:$0xf]
      %v1852 = vld [vmem:[%s1 + $0x80] sm:$0xf]
      %v1853 = vld [vmem:[%s1 + $0x84] sm:$0xf]
      %v1854 = vld [vmem:[%s1 + $0x88] sm:$0xf]
      %v1855 = vld [vmem:[%s1 + $0x8c] sm:$0xf]
      %v1856 = vld [vmem:[%s1 + $0x90] sm:$0xf]
      %v1857 = vld [vmem:[%s1 + $0x94] sm:$0xf]
      %v1858 = vld [vmem:[%s1 + $0x98] sm:$0xf]
      %v1859 = vld [vmem:[%s1 + $0x9c] sm:$0xf]
      %v1860 = vld [vmem:[%s1 + $0xa0] sm:$0xf]
      %v1861 = vld [vmem:[%s1 + $0xa4] sm:$0xf]
      %v1862 = vld [vmem:[%s1 + $0xa8] sm:$0xf]
      %v1863 = vld [vmem:[%s1 + $0xac] sm:$0xf]
      %v1864 = vld [vmem:[%s1 + $0xb0] sm:$0xf]
      %v1865 = vld [vmem:[%s1 + $0xb4] sm:$0xf]
      %v1866 = vld [vmem:[%s1 + $0xb8] sm:$0xf]
      %v1867 = vld [vmem:[%s1 + $0xbc] sm:$0xf]
      %v1868 = vld [vmem:[%s1 + $0xc0] sm:$0xf]
      %v1869 = vld [vmem:[%s1 + $0xc4] sm:$0xf]
      %v1870 = vld [vmem:[%s1 + $0xc8] sm:$0xf]
      %v1871 = vld [vmem:[%s1 + $0xcc] sm:$0xf]
      %v1872 = vld [vmem:[%s1 + $0xd0] sm:$0xf]
      %v1873 = vld [vmem:[%s1 + $0xd4] sm:$0xf]
      %v1874 = vld [vmem:[%s1 + $0xd8] sm:$0xf]
      %v1875 = vld [vmem:[%s1 + $0xdc] sm:$0xf]
      %v1876 = vld [vmem:[%s1 + $0xe0] sm:$0xf]
      %v1877 = vld [vmem:[%s1 + $0xe4] sm:$0xf]
      %v1878 = vld [vmem:[%s1 + $0xe8] sm:$0xf]
      %v1879 = vld [vmem:[%s1 + $0xec] sm:$0xf]
      %v1880 = vld [vmem:[%s1 + $0xf0] sm:$0xf]
      %v1881 = vld [vmem:[%s1 + $0xf4] sm:$0xf]
      %v1882 = vld [vmem:[%s1 + $0xf8] sm:$0xf]
      %v1883 = vld [vmem:[%s1 + $0xfc] sm:$0xf]
      %v1884 = vld [vmem:[%s1 + $0x100] sm:$0xf]
      %v1885 = vld [vmem:[%s1 + $0x104] sm:$0xf]
      %v1886 = vld [vmem:[%s1 + $0x108] sm:$0xf]
      %v1887 = vld [vmem:[%s1 + $0x10c] sm:$0xf]
      %v1888 = vld [vmem:[%s1 + $0x110] sm:$0xf]
      %v1889 = vld [vmem:[%s1 + $0x114] sm:$0xf]
      %v1890 = vld [vmem:[%s1 + $0x118] sm:$0xf]
      %v1891 = vld [vmem:[%s1 + $0x11c] sm:$0xf]
      %v1892 = vld [vmem:[%s1 + $0x120] sm:$0xf]
      %v1893 = vld [vmem:[%s1 + $0x124] sm:$0xf]
      %v1894 = vld [vmem:[%s1 + $0x128] sm:$0xf]
      %v1895 = vld [vmem:[%s1 + $0x12c] sm:$0xf]
      %v1896 = vld [vmem:[%s1 + $0x130] sm:$0xf]
      %v1897 = vld [vmem:[%s1 + $0x134] sm:$0xf]
      %v1898 = vld [vmem:[%s1 + $0x138] sm:$0xf]
      %v1899 = vld [vmem:[%s1 + $0x13c] sm:$0xf]
      %v1900 = vld [vmem:[%s1 + $0x140] sm:$0xf]
      %v1901 = vld [vmem:[%s1 + $0x144] sm:$0xf]
      %v1902 = vld [vmem:[%s1 + $0x148] sm:$0xf]
      %v1903 = vld [vmem:[%s1 + $0x14c] sm:$0xf]
      %v1904 = vld [vmem:[%s1 + $0x150] sm:$0xf]
      %v1905 = vld [vmem:[%s1 + $0x154] sm:$0xf]
      %v1906 = vld [vmem:[%s1 + $0x158] sm:$0xf]
      %v1907 = vld [vmem:[%s1 + $0x15c] sm:$0xf]
      %v1908 = vld [vmem:[%s1 + $0x160] sm:$0xf]
      %v1909 = vld [vmem:[%s1 + $0x164] sm:$0xf]
      %v1910 = vld [vmem:[%s1 + $0x168] sm:$0xf]
      %v1911 = vld [vmem:[%s1 + $0x16c] sm:$0xf]
      %v1912 = vld [vmem:[%s1 + $0x170] sm:$0xf]
      %v1913 = vld [vmem:[%s1 + $0x174] sm:$0xf]
      %v1914 = vld [vmem:[%s1 + $0x178] sm:$0xf]
      %v1915 = vld [vmem:[%s1 + $0x17c] sm:$0xf]
      %v1916 = vld [vmem:[%s1 + $0x180] sm:$0xf]
      %v1917 = vld [vmem:[%s1 + $0x184] sm:$0xf]
      %v1918 = vld [vmem:[%s1 + $0x188] sm:$0xf]
      %v1919 = vld [vmem:[%s1 + $0x18c] sm:$0xf]
      %v1920 = vld [vmem:[%s1 + $0x190] sm:$0xf]
      %v1921 = vld [vmem:[%s1 + $0x194] sm:$0xf]
      %v1922 = vld [vmem:[%s1 + $0x198] sm:$0xf]
      %v1923 = vld [vmem:[%s1 + $0x19c] sm:$0xf]
      %v1924 = vld [vmem:[%s1 + $0x1a0] sm:$0xf]
      %v1925 = vld [vmem:[%s1 + $0x1a4] sm:$0xf]
      %v1926 = vld [vmem:[%s1 + $0x1a8] sm:$0xf]
      %v1927 = vld [vmem:[%s1 + $0x1ac] sm:$0xf]
      %v1928 = vld [vmem:[%s1 + $0x1b0] sm:$0xf]
      %v1929 = vld [vmem:[%s1 + $0x1b4] sm:$0xf]
      %v1930 = vld [vmem:[%s1 + $0x1b8] sm:$0xf]
      %v1931 = vld [vmem:[%s1 + $0x1bc] sm:$0xf]
      %v1932 = vld [vmem:[%s1 + $0x1c0] sm:$0xf]
      %v1933 = vld [vmem:[%s1 + $0x1c4] sm:$0xf]
      %v1934 = vld [vmem:[%s1 + $0x1c8] sm:$0xf]
      %v1935 = vld [vmem:[%s1 + $0x1cc] sm:$0xf]
      %v1936 = vld [vmem:[%s1 + $0x1d0] sm:$0xf]
      %v1937 = vld [vmem:[%s1 + $0x1d4] sm:$0xf]
      %v1938 = vld [vmem:[%s1 + $0x1d8] sm:$0xf]
      %v1939 = vld [vmem:[%s1 + $0x1dc] sm:$0xf]
      %v1940 = vld [vmem:[%s1 + $0x1e0] sm:$0xf]
      %v1941 = vld [vmem:[%s1 + $0x1e4] sm:$0xf]
      %v1942 = vld [vmem:[%s1 + $0x1e8] sm:$0xf]
      %v1943 = vld [vmem:[%s1 + $0x1ec] sm:$0xf]
      %v1944 = vld [vmem:[%s1 + $0x1f0] sm:$0xf]
      %v1945 = vld [vmem:[%s1 + $0x1f4] sm:$0xf]
      %v1946 = vld [vmem:[%s1 + $0x1f8] sm:$0xf]
      %v1947 = vld [vmem:[%s1 + $0x1fc] sm:$0xf]
      %v1948 = vld [vmem:[%s1 + $0x200] sm:$0xf]
      %v1949 = vld [vmem:[%s1 + $0x204] sm:$0xf]
      %v1950 = vld [vmem:[%s1 + $0x208] sm:$0xf]
      %v1951 = vld [vmem:[%s1 + $0x20c] sm:$0xf]
      %v1952 = vld [vmem:[%s1 + $0x210] sm:$0xf]
      %v1953 = vld [vmem:[%s1 + $0x214] sm:$0xf]
      %v1954 = vld [vmem:[%s1 + $0x218] sm:$0xf]
      %v1955 = vld [vmem:[%s1 + $0x21c] sm:$0xf]
      %v1956 = vld [vmem:[%s1 + $0x220] sm:$0xf]
      %v1957 = vld [vmem:[%s1 + $0x224] sm:$0xf]
      %v1958 = vld [vmem:[%s1 + $0x228] sm:$0xf]
      %v1959 = vld [vmem:[%s1 + $0x22c] sm:$0xf]
      %v1960 = vld [vmem:[%s1 + $0x230] sm:$0xf]
      %v1961 = vld [vmem:[%s1 + $0x234] sm:$0xf]
      %v1962 = vld [vmem:[%s1 + $0x238] sm:$0xf]
      %v1963 = vld [vmem:[%s1 + $0x23c] sm:$0xf]
      %v1964 = vld [vmem:[%s2] sm:$0x1]
      %v1966 = vperm.slane %v1964, 0
      %v2112 = vunpack.c.l.b16 %v1820
      %v2113 = vunpack.c.l.b16 %v1821
      %v2114 = vunpack.c.l.b16 %v1822
      %v2115 = vunpack.c.l.b16 %v1823
      %v2116 = vunpack.c.l.b16 %v1824
      %v2117 = vunpack.c.l.b16 %v1825
      %v2118 = vunpack.c.l.b16 %v1826
      %v2119 = vunpack.c.l.b16 %v1827
      %v2120 = vunpack.c.l.b16 %v1828
      %v2121 = vunpack.c.l.b16 %v1829
      %v2122 = vunpack.c.l.b16 %v1830
      %v2123 = vunpack.c.l.b16 %v1831
      %v2124 = vunpack.c.l.b16 %v1832
      %v2125 = vunpack.c.l.b16 %v1833
      %v2126 = vunpack.c.l.b16 %v1834
      %v2127 = vunpack.c.l.b16 %v1835
      %v2128 = vunpack.c.l.b16 %v1836
      %v2129 = vunpack.c.l.b16 %v1837
      %v2130 = vunpack.c.l.b16 %v1838
      %v2131 = vunpack.c.l.b16 %v1839
      %v2132 = vunpack.c.l.b16 %v1840
      %v2133 = vunpack.c.l.b16 %v1841
      %v2134 = vunpack.c.l.b16 %v1842
      %v2135 = vunpack.c.l.b16 %v1843
      %v2136 = vunpack.c.l.b16 %v1844
      %v2137 = vunpack.c.l.b16 %v1845
      %v2138 = vunpack.c.l.b16 %v1846
      %v2139 = vunpack.c.l.b16 %v1847
      %v2140 = vunpack.c.l.b16 %v1848
      %v2141 = vunpack.c.l.b16 %v1849
      %v2142 = vunpack.c.l.b16 %v1850
      %v2143 = vunpack.c.l.b16 %v1851
      %v2144 = vunpack.c.l.b16 %v1852
      %v2145 = vunpack.c.l.b16 %v1853
      %v2146 = vunpack.c.l.b16 %v1854
      %v2147 = vunpack.c.l.b16 %v1855
      %v2148 = vunpack.c.l.b16 %v1856
      %v2149 = vunpack.c.l.b16 %v1857
      %v2150 = vunpack.c.l.b16 %v1858
      %v2151 = vunpack.c.l.b16 %v1859
      %v2152 = vunpack.c.l.b16 %v1860
      %v2153 = vunpack.c.l.b16 %v1861
      %v2154 = vunpack.c.l.b16 %v1862
      %v2155 = vunpack.c.l.b16 %v1863
      %v2156 = vunpack.c.l.b16 %v1864
      %v2157 = vunpack.c.l.b16 %v1865
      %v2158 = vunpack.c.l.b16 %v1866
      %v2159 = vunpack.c.l.b16 %v1867
      %v2160 = vunpack.c.l.b16 %v1868
      %v2161 = vunpack.c.l.b16 %v1869
      %v2162 = vunpack.c.l.b16 %v1870
      %v2163 = vunpack.c.l.b16 %v1871
      %v2164 = vunpack.c.l.b16 %v1872
      %v2165 = vunpack.c.l.b16 %v1873
      %v2166 = vunpack.c.l.b16 %v1874
      %v2167 = vunpack.c.l.b16 %v1875
      %v2168 = vunpack.c.l.b16 %v1876
      %v2169 = vunpack.c.l.b16 %v1877
      %v2170 = vunpack.c.l.b16 %v1878
      %v2171 = vunpack.c.l.b16 %v1879
      %v2172 = vunpack.c.l.b16 %v1880
      %v2173 = vunpack.c.l.b16 %v1881
      %v2174 = vunpack.c.l.b16 %v1882
      %v2175 = vunpack.c.l.b16 %v1883
      %v2176 = vunpack.c.l.b16 %v1884
      %v2177 = vunpack.c.l.b16 %v1885
      %v2178 = vunpack.c.l.b16 %v1886
      %v2179 = vunpack.c.l.b16 %v1887
      %v2180 = vunpack.c.l.b16 %v1888
      %v2181 = vunpack.c.l.b16 %v1889
      %v2182 = vunpack.c.l.b16 %v1890
      %v2183 = vunpack.c.l.b16 %v1891
      %v2184 = vunpack.c.l.b16 %v1892
      %v2185 = vunpack.c.l.b16 %v1893
      %v2186 = vunpack.c.l.b16 %v1894
      %v2187 = vunpack.c.l.b16 %v1895
      %v2188 = vunpack.c.l.b16 %v1896
      %v2189 = vunpack.c.l.b16 %v1897
      %v2190 = vunpack.c.l.b16 %v1898
      %v2191 = vunpack.c.l.b16 %v1899
      %v2192 = vunpack.c.l.b16 %v1900
      %v2193 = vunpack.c.l.b16 %v1901
      %v2194 = vunpack.c.l.b16 %v1902
      %v2195 = vunpack.c.l.b16 %v1903
      %v2196 = vunpack.c.l.b16 %v1904
      %v2197 = vunpack.c.l.b16 %v1905
      %v2198 = vunpack.c.l.b16 %v1906
      %v2199 = vunpack.c.l.b16 %v1907
      %v2200 = vunpack.c.l.b16 %v1908
      %v2201 = vunpack.c.l.b16 %v1909
      %v2202 = vunpack.c.l.b16 %v1910
      %v2203 = vunpack.c.l.b16 %v1911
      %v2204 = vunpack.c.l.b16 %v1912
      %v2205 = vunpack.c.l.b16 %v1913
      %v2206 = vunpack.c.l.b16 %v1914
      %v2207 = vunpack.c.l.b16 %v1915
      %v2208 = vunpack.c.l.b16 %v1916
      %v2209 = vunpack.c.l.b16 %v1917
      %v2210 = vunpack.c.l.b16 %v1918
      %v2211 = vunpack.c.l.b16 %v1919
      %v2212 = vunpack.c.l.b16 %v1920
      %v2213 = vunpack.c.l.b16 %v1921
      %v2214 = vunpack.c.l.b16 %v1922
      %v2215 = vunpack.c.l.b16 %v1923
      %v2216 = vunpack.c.l.b16 %v1924
      %v2217 = vunpack.c.l.b16 %v1925
      %v2218 = vunpack.c.l.b16 %v1926
      %v2219 = vunpack.c.l.b16 %v1927
      %v2220 = vunpack.c.l.b16 %v1928
      %v2221 = vunpack.c.l.b16 %v1929
      %v2222 = vunpack.c.l.b16 %v1930
      %v2223 = vunpack.c.l.b16 %v1931
      %v2224 = vunpack.c.l.b16 %v1932
      %v2225 = vunpack.c.l.b16 %v1933
      %v2226 = vunpack.c.l.b16 %v1934
      %v2227 = vunpack.c.l.b16 %v1935
      %v2228 = vunpack.c.l.b16 %v1936
      %v2229 = vunpack.c.l.b16 %v1937
      %v2230 = vunpack.c.l.b16 %v1938
      %v2231 = vunpack.c.l.b16 %v1939
      %v2232 = vunpack.c.l.b16 %v1940
      %v2233 = vunpack.c.l.b16 %v1941
      %v2234 = vunpack.c.l.b16 %v1942
      %v2235 = vunpack.c.l.b16 %v1943
      %v2236 = vunpack.c.l.b16 %v1944
      %v2237 = vunpack.c.l.b16 %v1945
      %v2238 = vunpack.c.l.b16 %v1946
      %v2239 = vunpack.c.l.b16 %v1947
      %v2240 = vunpack.c.l.b16 %v1948
      %v2241 = vunpack.c.l.b16 %v1949
      %v2242 = vunpack.c.l.b16 %v1950
      %v2243 = vunpack.c.l.b16 %v1951
      %v2244 = vunpack.c.l.b16 %v1952
      %v2245 = vunpack.c.l.b16 %v1953
      %v2246 = vunpack.c.l.b16 %v1954
      %v2247 = vunpack.c.l.b16 %v1955
      %v2248 = vunpack.c.l.b16 %v1956
      %v2249 = vunpack.c.l.b16 %v1957
      %v2250 = vunpack.c.l.b16 %v1958
      %v2251 = vunpack.c.l.b16 %v1959
      %v2252 = vunpack.c.l.b16 %v1960
      %v2253 = vunpack.c.l.b16 %v1961
      %v2254 = vunpack.c.l.b16 %v1962
      %v2255 = vunpack.c.l.b16 %v1963
      %v2256 = vpack.c.b16 %v2113, %v2112
      %v2257 = vpack.c.b16 %v2115, %v2114
      %v2258 = vpack.c.b16 %v2117, %v2116
      %v2259 = vpack.c.b16 %v2119, %v2118
      %v2260 = vpack.c.b16 %v2121, %v2120
      %v2261 = vpack.c.b16 %v2123, %v2122
      %v2262 = vpack.c.b16 %v2125, %v2124
      %v2263 = vpack.c.b16 %v2127, %v2126
      %v2264 = vpack.c.b16 %v2129, %v2128
      %v2265 = vpack.c.b16 %v2131, %v2130
      %v2266 = vpack.c.b16 %v2133, %v2132
      %v2267 = vpack.c.b16 %v2135, %v2134
      %v2268 = vpack.c.b16 %v2137, %v2136
      %v2269 = vpack.c.b16 %v2139, %v2138
      %v2270 = vpack.c.b16 %v2141, %v2140
      %v2271 = vpack.c.b16 %v2143, %v2142
      %v2272 = vpack.c.b16 %v2145, %v2144
      %v2273 = vpack.c.b16 %v2147, %v2146
      %v2274 = vpack.c.b16 %v2149, %v2148
      %v2275 = vpack.c.b16 %v2151, %v2150
      %v2276 = vpack.c.b16 %v2153, %v2152
      %v2277 = vpack.c.b16 %v2155, %v2154
      %v2278 = vpack.c.b16 %v2157, %v2156
      %v2279 = vpack.c.b16 %v2159, %v2158
      %v2280 = vpack.c.b16 %v2161, %v2160
      %v2281 = vpack.c.b16 %v2163, %v2162
      %v2282 = vpack.c.b16 %v2165, %v2164
      %v2283 = vpack.c.b16 %v2167, %v2166
      %v2284 = vpack.c.b16 %v2169, %v2168
      %v2285 = vpack.c.b16 %v2171, %v2170
      %v2286 = vpack.c.b16 %v2173, %v2172
      %v2287 = vpack.c.b16 %v2175, %v2174
      %v2288 = vpack.c.b16 %v2177, %v2176
      %v2289 = vpack.c.b16 %v2179, %v2178
      %v2290 = vpack.c.b16 %v2181, %v2180
      %v2291 = vpack.c.b16 %v2183, %v2182
      %v2292 = vpack.c.b16 %v2185, %v2184
      %v2293 = vpack.c.b16 %v2187, %v2186
      %v2294 = vpack.c.b16 %v2189, %v2188
      %v2295 = vpack.c.b16 %v2191, %v2190
      %v2296 = vpack.c.b16 %v2193, %v2192
      %v2297 = vpack.c.b16 %v2195, %v2194
      %v2298 = vpack.c.b16 %v2197, %v2196
      %v2299 = vpack.c.b16 %v2199, %v2198
      %v2300 = vpack.c.b16 %v2201, %v2200
      %v2301 = vpack.c.b16 %v2203, %v2202
      %v2302 = vpack.c.b16 %v2205, %v2204
      %v2303 = vpack.c.b16 %v2207, %v2206
      %v2304 = vpack.c.b16 %v2209, %v2208
      %v2305 = vpack.c.b16 %v2211, %v2210
      %v2306 = vpack.c.b16 %v2213, %v2212
      %v2307 = vpack.c.b16 %v2215, %v2214
      %v2308 = vpack.c.b16 %v2217, %v2216
      %v2309 = vpack.c.b16 %v2219, %v2218
      %v2310 = vpack.c.b16 %v2221, %v2220
      %v2311 = vpack.c.b16 %v2223, %v2222
      %v2312 = vpack.c.b16 %v2225, %v2224
      %v2313 = vpack.c.b16 %v2227, %v2226
      %v2314 = vpack.c.b16 %v2229, %v2228
      %v2315 = vpack.c.b16 %v2231, %v2230
      %v2316 = vpack.c.b16 %v2233, %v2232
      %v2317 = vpack.c.b16 %v2235, %v2234
      %v2318 = vpack.c.b16 %v2237, %v2236
      %v2319 = vpack.c.b16 %v2239, %v2238
      %v2320 = vpack.c.b16 %v2241, %v2240
      %v2321 = vpack.c.b16 %v2243, %v2242
      %v2322 = vpack.c.b16 %v2245, %v2244
      %v2323 = vpack.c.b16 %v2247, %v2246
      %v2324 = vpack.c.b16 %v2249, %v2248
      %v2325 = vpack.c.b16 %v2251, %v2250
      %v2326 = vpack.c.b16 %v2253, %v2252
      %v2327 = vpack.c.b16 %v2255, %v2254
      %2400 = vmatpush.bf16.msra.mxu0 %v2263
      %2401 = vmatpush.bf16.msra.mxu0 %v2262
      %2402 = vmatpush.bf16.msra.mxu0 %v2261
      %2403 = vmatpush.bf16.msra.mxu0 %v2260
      %2404 = vmatpush.bf16.msra.mxu0 %v2259
      %2405 = vmatpush.bf16.msra.mxu0 %v2258
      %2406 = vmatpush.bf16.msra.mxu0 %v2257
      %2407 = vmatpush.bf16.msra.mxu0 %v2256
      %2408 = vmatmul.bf16.gmra.mxu0 %v490
      %v2409 = vpop.f32.mrf.mxu0
      %v2410 = vadd.f32 %v1966, %v2409
      %v2411 = vpop.f32.mrf.mxu0
      %v2412 = vadd.f32 %v1966, %v2411
      %2413 = vmatmul.bf16.gmra.mxu0 %v491
      %v2414 = vpop.f32.mrf.mxu0
      %v2415 = vadd.f32 %v1966, %v2414
      %v2416 = vpop.f32.mrf.mxu0
      %v2417 = vadd.f32 %v1966, %v2416
      %2418 = vmatmul.bf16.gmra.mxu0 %v492
      %v2419 = vpop.f32.mrf.mxu0
      %v2420 = vadd.f32 %v1966, %v2419
      %v2421 = vpop.f32.mrf.mxu0
      %v2422 = vadd.f32 %v1966, %v2421
      %2423 = vmatmul.bf16.gmra.mxu0 %v493
      %v2424 = vpop.f32.mrf.mxu0
      %v2425 = vadd.f32 %v1966, %v2424
      %v2426 = vpop.f32.mrf.mxu0
      %v2427 = vadd.f32 %v1966, %v2426
      %2428 = vmatmul.bf16.gmra.mxu0 %v494
      %v2429 = vpop.f32.mrf.mxu0
      %v2430 = vadd.f32 %v1966, %v2429
      %v2431 = vpop.f32.mrf.mxu0
      %v2432 = vadd.f32 %v1966, %v2431
      %2433 = vmatmul.bf16.gmra.mxu0 %v495
      %v2434 = vpop.f32.mrf.mxu0
      %v2435 = vadd.f32 %v1966, %v2434
      %v2436 = vpop.f32.mrf.mxu0
      %v2437 = vadd.f32 %v1966, %v2436
      %2438 = vmatmul.bf16.gmra.mxu0 %v496
      %v2439 = vpop.f32.mrf.mxu0
      %v2440 = vadd.f32 %v1966, %v2439
      %v2441 = vpop.f32.mrf.mxu0
      %v2442 = vadd.f32 %v1966, %v2441
      %2443 = vmatmul.bf16.gmra.mxu0 %v497
      %v2444 = vpop.f32.mrf.mxu0
      %v2445 = vadd.f32 %v1966, %v2444
      %v2446 = vpop.f32.mrf.mxu0
      %v2447 = vadd.f32 %v1966, %v2446
      %2448 = vmatmul.bf16.gmra.mxu0 %v498
      %v2449 = vpop.f32.mrf.mxu0
      %v2450 = vadd.f32 %v1966, %v2449
      %v2451 = vpop.f32.mrf.mxu0
      %v2452 = vadd.f32 %v1966, %v2451
      %2453 = vmatmul.bf16.gmra.mxu0 %v499
      %v2454 = vpop.f32.mrf.mxu0
      %v2455 = vadd.f32 %v1966, %v2454
      %v2456 = vpop.f32.mrf.mxu0
      %v2457 = vadd.f32 %v1966, %v2456
      %2458 = vmatmul.bf16.gmra.mxu0 %v500
      %v2459 = vpop.f32.mrf.mxu0
      %v2460 = vadd.f32 %v1966, %v2459
      %v2461 = vpop.f32.mrf.mxu0
      %v2462 = vadd.f32 %v1966, %v2461
      %2463 = vmatmul.bf16.gmra.mxu0 %v501
      %v2464 = vpop.f32.mrf.mxu0
      %v2465 = vadd.f32 %v1966, %v2464
      %v2466 = vpop.f32.mrf.mxu0
      %v2467 = vadd.f32 %v1966, %v2466
      %2468 = vmatmul.bf16.gmra.mxu0 %v502
      %v2469 = vpop.f32.mrf.mxu0
      %v2470 = vadd.f32 %v1966, %v2469
      %v2471 = vpop.f32.mrf.mxu0
      %v2472 = vadd.f32 %v1966, %v2471
      %2473 = vmatmul.bf16.gmra.mxu0 %v503
      %v2474 = vpop.f32.mrf.mxu0
      %v2475 = vadd.f32 %v1966, %v2474
      %v2476 = vpop.f32.mrf.mxu0
      %v2477 = vadd.f32 %v1966, %v2476
      %2478 = vmatmul.bf16.gmra.mxu0 %v504
      %v2479 = vpop.f32.mrf.mxu0
      %v2480 = vadd.f32 %v1966, %v2479
      %v2481 = vpop.f32.mrf.mxu0
      %v2482 = vadd.f32 %v1966, %v2481
      %2483 = vmatmul.bf16.gmra.mxu0 %v505
      %v2484 = vpop.f32.mrf.mxu0
      %v2485 = vadd.f32 %v1966, %v2484
      %v2486 = vpop.f32.mrf.mxu0
      %v2487 = vadd.f32 %v1966, %v2486
      %2488 = vdwg.mxu0
      %2489 = vmatpush.bf16.msra.mxu0 %v2271
      %2490 = vmatpush.bf16.msra.mxu0 %v2270
      %2491 = vmatpush.bf16.msra.mxu0 %v2269
      %2492 = vmatpush.bf16.msra.mxu0 %v2268
      %2493 = vmatpush.bf16.msra.mxu0 %v2267
      %2494 = vmatpush.bf16.msra.mxu0 %v2266
      %2495 = vmatpush.bf16.msra.mxu0 %v2265
      %2496 = vmatpush.bf16.msra.mxu0 %v2264
      %2497 = vmatmul.bf16.gmra.mxu0 %v582
      %v2498 = vpop.f32.mrf.mxu0
      %v2499 = vadd.f32 %v2410, %v2498
      %v2500 = vpop.f32.mrf.mxu0
      %v2501 = vadd.f32 %v2412, %v2500
      %2502 = vmatmul.bf16.gmra.mxu0 %v594
      %v2503 = vpop.f32.mrf.mxu0
      %v2504 = vadd.f32 %v2415, %v2503
      %v2505 = vpop.f32.mrf.mxu0
      %v2506 = vadd.f32 %v2417, %v2505
      %2507 = vmatmul.bf16.gmra.mxu0 %v606
      %v2508 = vpop.f32.mrf.mxu0
      %v2509 = vadd.f32 %v2420, %v2508
      %v2510 = vpop.f32.mrf.mxu0
      %v2511 = vadd.f32 %v2422, %v2510
      %2512 = vmatmul.bf16.gmra.mxu0 %v618
      %v2513 = vpop.f32.mrf.mxu0
      %v2514 = vadd.f32 %v2425, %v2513
      %v2515 = vpop.f32.mrf.mxu0
      %v2516 = vadd.f32 %v2427, %v2515
      %2517 = vmatmul.bf16.gmra.mxu0 %v630
      %v2518 = vpop.f32.mrf.mxu0
      %v2519 = vadd.f32 %v2430, %v2518
      %v2520 = vpop.f32.mrf.mxu0
      %v2521 = vadd.f32 %v2432, %v2520
      %2522 = vmatmul.bf16.gmra.mxu0 %v642
      %v2523 = vpop.f32.mrf.mxu0
      %v2524 = vadd.f32 %v2435, %v2523
      %v2525 = vpop.f32.mrf.mxu0
      %v2526 = vadd.f32 %v2437, %v2525
      %2527 = vmatmul.bf16.gmra.mxu0 %v654
      %v2528 = vpop.f32.mrf.mxu0
      %v2529 = vadd.f32 %v2440, %v2528
      %v2530 = vpop.f32.mrf.mxu0
      %v2531 = vadd.f32 %v2442, %v2530
      %2532 = vmatmul.bf16.gmra.mxu0 %v666
      %v2533 = vpop.f32.mrf.mxu0
      %v2534 = vadd.f32 %v2445, %v2533
      %v2535 = vpop.f32.mrf.mxu0
      %v2536 = vadd.f32 %v2447, %v2535
      %2537 = vmatmul.bf16.gmra.mxu0 %v678
      %v2538 = vpop.f32.mrf.mxu0
      %v2539 = vadd.f32 %v2450, %v2538
      %v2540 = vpop.f32.mrf.mxu0
      %v2541 = vadd.f32 %v2452, %v2540
      %2542 = vmatmul.bf16.gmra.mxu0 %v690
      %v2543 = vpop.f32.mrf.mxu0
      %v2544 = vadd.f32 %v2455, %v2543
      %v2545 = vpop.f32.mrf.mxu0
      %v2546 = vadd.f32 %v2457, %v2545
      %2547 = vmatmul.bf16.gmra.mxu0 %v702
      %v2548 = vpop.f32.mrf.mxu0
      %v2549 = vadd.f32 %v2460, %v2548
      %v2550 = vpop.f32.mrf.mxu0
      %v2551 = vadd.f32 %v2462, %v2550
      %2552 = vmatmul.bf16.gmra.mxu0 %v714
      %v2553 = vpop.f32.mrf.mxu0
      %v2554 = vadd.f32 %v2465, %v2553
      %v2555 = vpop.f32.mrf.mxu0
      %v2556 = vadd.f32 %v2467, %v2555
      %2557 = vmatmul.bf16.gmra.mxu0 %v726
      %v2558 = vpop.f32.mrf.mxu0
      %v2559 = vadd.f32 %v2470, %v2558
      %v2560 = vpop.f32.mrf.mxu0
      %v2561 = vadd.f32 %v2472, %v2560
      %2562 = vmatmul.bf16.gmra.mxu0 %v738
      %v2563 = vpop.f32.mrf.mxu0
      %v2564 = vadd.f32 %v2475, %v2563
      %v2565 = vpop.f32.mrf.mxu0
      %v2566 = vadd.f32 %v2477, %v2565
      %2567 = vmatmul.bf16.gmra.mxu0 %v750
      %v2568 = vpop.f32.mrf.mxu0
      %v2569 = vadd.f32 %v2480, %v2568
      %v2570 = vpop.f32.mrf.mxu0
      %v2571 = vadd.f32 %v2482, %v2570
      %2572 = vmatmul.bf16.gmra.mxu0 %v762
      %v2573 = vpop.f32.mrf.mxu0
      %v2574 = vadd.f32 %v2485, %v2573
      %v2575 = vpop.f32.mrf.mxu0
      %v2576 = vadd.f32 %v2487, %v2575
      %2577 = vdwg.mxu0
      %2578 = vmatpush.bf16.msra.mxu0 %v2279
      %2579 = vmatpush.bf16.msra.mxu0 %v2278
      %2580 = vmatpush.bf16.msra.mxu0 %v2277
      %2581 = vmatpush.bf16.msra.mxu0 %v2276
      %2582 = vmatpush.bf16.msra.mxu0 %v2275
      %2583 = vmatpush.bf16.msra.mxu0 %v2274
      %2584 = vmatpush.bf16.msra.mxu0 %v2273
      %2585 = vmatpush.bf16.msra.mxu0 %v2272
      %2586 = vmatmul.bf16.gmra.mxu0 %v830
      %v2587 = vpop.f32.mrf.mxu0
      %v2588 = vadd.f32 %v2499, %v2587
      %v2589 = vpop.f32.mrf.mxu0
      %v2590 = vadd.f32 %v2501, %v2589
      %2591 = vmatmul.bf16.gmra.mxu0 %v833
      %v2592 = vpop.f32.mrf.mxu0
      %v2593 = vadd.f32 %v2504, %v2592
      %v2594 = vpop.f32.mrf.mxu0
      %v2595 = vadd.f32 %v2506, %v2594
      %2596 = vmatmul.bf16.gmra.mxu0 %v836
      %v2597 = vpop.f32.mrf.mxu0
      %v2598 = vadd.f32 %v2509, %v2597
      %v2599 = vpop.f32.mrf.mxu0
      %v2600 = vadd.f32 %v2511, %v2599
      %2601 = vmatmul.bf16.gmra.mxu0 %v839
      %v2602 = vpop.f32.mrf.mxu0
      %v2603 = vadd.f32 %v2514, %v2602
      %v2604 = vpop.f32.mrf.mxu0
      %v2605 = vadd.f32 %v2516, %v2604
      %2606 = vmatmul.bf16.gmra.mxu0 %v842
      %v2607 = vpop.f32.mrf.mxu0
      %v2608 = vadd.f32 %v2519, %v2607
      %v2609 = vpop.f32.mrf.mxu0
      %v2610 = vadd.f32 %v2521, %v2609
      %2611 = vmatmul.bf16.gmra.mxu0 %v845
      %v2612 = vpop.f32.mrf.mxu0
      %v2613 = vadd.f32 %v2524, %v2612
      %v2614 = vpop.f32.mrf.mxu0
      %v2615 = vadd.f32 %v2526, %v2614
      %2616 = vmatmul.bf16.gmra.mxu0 %v848
      %v2617 = vpop.f32.mrf.mxu0
      %v2618 = vadd.f32 %v2529, %v2617
      %v2619 = vpop.f32.mrf.mxu0
      %v2620 = vadd.f32 %v2531, %v2619
      %2621 = vmatmul.bf16.gmra.mxu0 %v851
      %v2622 = vpop.f32.mrf.mxu0
      %v2623 = vadd.f32 %v2534, %v2622
      %v2624 = vpop.f32.mrf.mxu0
      %v2625 = vadd.f32 %v2536, %v2624
      %2626 = vmatmul.bf16.gmra.mxu0 %v854
      %v2627 = vpop.f32.mrf.mxu0
      %v2628 = vadd.f32 %v2539, %v2627
      %v2629 = vpop.f32.mrf.mxu0
      %v2630 = vadd.f32 %v2541, %v2629
      %2631 = vmatmul.bf16.gmra.mxu0 %v857
      %v2632 = vpop.f32.mrf.mxu0
      %v2633 = vadd.f32 %v2544, %v2632
      %v2634 = vpop.f32.mrf.mxu0
      %v2635 = vadd.f32 %v2546, %v2634
      %2636 = vmatmul.bf16.gmra.mxu0 %v860
      %v2637 = vpop.f32.mrf.mxu0
      %v2638 = vadd.f32 %v2549, %v2637
      %v2639 = vpop.f32.mrf.mxu0
      %v2640 = vadd.f32 %v2551, %v2639
      %2641 = vmatmul.bf16.gmra.mxu0 %v863
      %v2642 = vpop.f32.mrf.mxu0
      %v2643 = vadd.f32 %v2554, %v2642
      %v2644 = vpop.f32.mrf.mxu0
      %v2645 = vadd.f32 %v2556, %v2644
      %2646 = vmatmul.bf16.gmra.mxu0 %v866
      %v2647 = vpop.f32.mrf.mxu0
      %v2648 = vadd.f32 %v2559, %v2647
      %v2649 = vpop.f32.mrf.mxu0
      %v2650 = vadd.f32 %v2561, %v2649
      %2651 = vmatmul.bf16.gmra.mxu0 %v869
      %v2652 = vpop.f32.mrf.mxu0
      %v2653 = vadd.f32 %v2564, %v2652
      %v2654 = vpop.f32.mrf.mxu0
      %v2655 = vadd.f32 %v2566, %v2654
      %2656 = vmatmul.bf16.gmra.mxu0 %v872
      %v2657 = vpop.f32.mrf.mxu0
      %v2658 = vadd.f32 %v2569, %v2657
      %v2659 = vpop.f32.mrf.mxu0
      %v2660 = vadd.f32 %v2571, %v2659
      %2661 = vmatmul.bf16.gmra.mxu0 %v875
      %v2662 = vpop.f32.mrf.mxu0
      %v2663 = vadd.f32 %v2574, %v2662
      %v2664 = vpop.f32.mrf.mxu0
      %v2665 = vadd.f32 %v2576, %v2664
      %2666 = vdwg.mxu0
      %2667 = vmatpush.bf16.msra.mxu0 %v2287
      %2668 = vmatpush.bf16.msra.mxu0 %v2286
      %2669 = vmatpush.bf16.msra.mxu0 %v2285
      %2670 = vmatpush.bf16.msra.mxu0 %v2284
      %2671 = vmatpush.bf16.msra.mxu0 %v2283
      %2672 = vmatpush.bf16.msra.mxu0 %v2282
      %2673 = vmatpush.bf16.msra.mxu0 %v2281
      %2674 = vmatpush.bf16.msra.mxu0 %v2280
      %2675 = vmatmul.bf16.gmra.mxu0 %v956
      %v2676 = vpop.f32.mrf.mxu0
      %v2677 = vadd.f32 %v2588, %v2676
      %v2678 = vpop.f32.mrf.mxu0
      %v2679 = vadd.f32 %v2590, %v2678
      %2680 = vmatmul.bf16.gmra.mxu0 %v957
      %v2681 = vpop.f32.mrf.mxu0
      %v2682 = vadd.f32 %v2593, %v2681
      %v2683 = vpop.f32.mrf.mxu0
      %v2684 = vadd.f32 %v2595, %v2683
      %2685 = vmatmul.bf16.gmra.mxu0 %v958
      %v2686 = vpop.f32.mrf.mxu0
      %v2687 = vadd.f32 %v2598, %v2686
      %v2688 = vpop.f32.mrf.mxu0
      %v2689 = vadd.f32 %v2600, %v2688
      %2690 = vmatmul.bf16.gmra.mxu0 %v959
      %v2691 = vpop.f32.mrf.mxu0
      %v2692 = vadd.f32 %v2603, %v2691
      %v2693 = vpop.f32.mrf.mxu0
      %v2694 = vadd.f32 %v2605, %v2693
      %2695 = vmatmul.bf16.gmra.mxu0 %v960
      %v2696 = vpop.f32.mrf.mxu0
      %v2697 = vadd.f32 %v2608, %v2696
      %v2698 = vpop.f32.mrf.mxu0
      %v2699 = vadd.f32 %v2610, %v2698
      %2700 = vmatmul.bf16.gmra.mxu0 %v961
      %v2701 = vpop.f32.mrf.mxu0
      %v2702 = vadd.f32 %v2613, %v2701
      %v2703 = vpop.f32.mrf.mxu0
      %v2704 = vadd.f32 %v2615, %v2703
      %2705 = vmatmul.bf16.gmra.mxu0 %v962
      %v2706 = vpop.f32.mrf.mxu0
      %v2707 = vadd.f32 %v2618, %v2706
      %v2708 = vpop.f32.mrf.mxu0
      %v2709 = vadd.f32 %v2620, %v2708
      %2710 = vmatmul.bf16.gmra.mxu0 %v963
      %v2711 = vpop.f32.mrf.mxu0
      %v2712 = vadd.f32 %v2623, %v2711
      %v2713 = vpop.f32.mrf.mxu0
      %v2714 = vadd.f32 %v2625, %v2713
      %2715 = vmatmul.bf16.gmra.mxu0 %v964
      %v2716 = vpop.f32.mrf.mxu0
      %v2717 = vadd.f32 %v2628, %v2716
      %v2718 = vpop.f32.mrf.mxu0
      %v2719 = vadd.f32 %v2630, %v2718
      %2720 = vmatmul.bf16.gmra.mxu0 %v965
      %v2721 = vpop.f32.mrf.mxu0
      %v2722 = vadd.f32 %v2633, %v2721
      %v2723 = vpop.f32.mrf.mxu0
      %v2724 = vadd.f32 %v2635, %v2723
      %2725 = vmatmul.bf16.gmra.mxu0 %v966
      %v2726 = vpop.f32.mrf.mxu0
      %v2727 = vadd.f32 %v2638, %v2726
      %v2728 = vpop.f32.mrf.mxu0
      %v2729 = vadd.f32 %v2640, %v2728
      %2730 = vmatmul.bf16.gmra.mxu0 %v967
      %v2731 = vpop.f32.mrf.mxu0
      %v2732 = vadd.f32 %v2643, %v2731
      %v2733 = vpop.f32.mrf.mxu0
      %v2734 = vadd.f32 %v2645, %v2733
      %2735 = vmatmul.bf16.gmra.mxu0 %v968
      %v2736 = vpop.f32.mrf.mxu0
      %v2737 = vadd.f32 %v2648, %v2736
      %v2738 = vpop.f32.mrf.mxu0
      %v2739 = vadd.f32 %v2650, %v2738
      %2740 = vmatmul.bf16.gmra.mxu0 %v969
      %v2741 = vpop.f32.mrf.mxu0
      %v2742 = vadd.f32 %v2653, %v2741
      %v2743 = vpop.f32.mrf.mxu0
      %v2744 = vadd.f32 %v2655, %v2743
      %2745 = vmatmul.bf16.gmra.mxu0 %v970
      %v2746 = vpop.f32.mrf.mxu0
      %v2747 = vadd.f32 %v2658, %v2746
      %v2748 = vpop.f32.mrf.mxu0
      %v2749 = vadd.f32 %v2660, %v2748
      %2750 = vmatmul.bf16.gmra.mxu0 %v971
      %v2751 = vpop.f32.mrf.mxu0
      %v2752 = vadd.f32 %v2663, %v2751
      %v2753 = vpop.f32.mrf.mxu0
      %v2754 = vadd.f32 %v2665, %v2753
      %2755 = vdwg.mxu0
      %2756 = vmatpush.bf16.msra.mxu0 %v2295
      %2757 = vmatpush.bf16.msra.mxu0 %v2294
      %2758 = vmatpush.bf16.msra.mxu0 %v2293
      %2759 = vmatpush.bf16.msra.mxu0 %v2292
      %2760 = vmatpush.bf16.msra.mxu0 %v2291
      %2761 = vmatpush.bf16.msra.mxu0 %v2290
      %2762 = vmatpush.bf16.msra.mxu0 %v2289
      %2763 = vmatpush.bf16.msra.mxu0 %v2288
      %2764 = vmatmul.bf16.gmra.mxu0 %v1047
      %v2765 = vpop.f32.mrf.mxu0
      %v2766 = vadd.f32 %v2677, %v2765
      %v2767 = vpop.f32.mrf.mxu0
      %v2768 = vadd.f32 %v2679, %v2767
      %2769 = vmatmul.bf16.gmra.mxu0 %v1059
      %v2770 = vpop.f32.mrf.mxu0
      %v2771 = vadd.f32 %v2682, %v2770
      %v2772 = vpop.f32.mrf.mxu0
      %v2773 = vadd.f32 %v2684, %v2772
      %2774 = vmatmul.bf16.gmra.mxu0 %v1071
      %v2775 = vpop.f32.mrf.mxu0
      %v2776 = vadd.f32 %v2687, %v2775
      %v2777 = vpop.f32.mrf.mxu0
      %v2778 = vadd.f32 %v2689, %v2777
      %2779 = vmatmul.bf16.gmra.mxu0 %v1083
      %v2780 = vpop.f32.mrf.mxu0
      %v2781 = vadd.f32 %v2692, %v2780
      %v2782 = vpop.f32.mrf.mxu0
      %v2783 = vadd.f32 %v2694, %v2782
      %2784 = vmatmul.bf16.gmra.mxu0 %v1095
      %v2785 = vpop.f32.mrf.mxu0
      %v2786 = vadd.f32 %v2697, %v2785
      %v2787 = vpop.f32.mrf.mxu0
      %v2788 = vadd.f32 %v2699, %v2787
      %2789 = vmatmul.bf16.gmra.mxu0 %v1107
      %v2790 = vpop.f32.mrf.mxu0
      %v2791 = vadd.f32 %v2702, %v2790
      %v2792 = vpop.f32.mrf.mxu0
      %v2793 = vadd.f32 %v2704, %v2792
      %2794 = vmatmul.bf16.gmra.mxu0 %v1119
      %v2795 = vpop.f32.mrf.mxu0
      %v2796 = vadd.f32 %v2707, %v2795
      %v2797 = vpop.f32.mrf.mxu0
      %v2798 = vadd.f32 %v2709, %v2797
      %2799 = vmatmul.bf16.gmra.mxu0 %v1131
      %v2800 = vpop.f32.mrf.mxu0
      %v2801 = vadd.f32 %v2712, %v2800
      %v2802 = vpop.f32.mrf.mxu0
      %v2803 = vadd.f32 %v2714, %v2802
      %2804 = vmatmul.bf16.gmra.mxu0 %v1143
      %v2805 = vpop.f32.mrf.mxu0
      %v2806 = vadd.f32 %v2717, %v2805
      %v2807 = vpop.f32.mrf.mxu0
      %v2808 = vadd.f32 %v2719, %v2807
      %2809 = vmatmul.bf16.gmra.mxu0 %v1155
      %v2810 = vpop.f32.mrf.mxu0
      %v2811 = vadd.f32 %v2722, %v2810
      %v2812 = vpop.f32.mrf.mxu0
      %v2813 = vadd.f32 %v2724, %v2812
      %2814 = vmatmul.bf16.gmra.mxu0 %v1167
      %v2815 = vpop.f32.mrf.mxu0
      %v2816 = vadd.f32 %v2727, %v2815
      %v2817 = vpop.f32.mrf.mxu0
      %v2818 = vadd.f32 %v2729, %v2817
      %2819 = vmatmul.bf16.gmra.mxu0 %v1179
      %v2820 = vpop.f32.mrf.mxu0
      %v2821 = vadd.f32 %v2732, %v2820
      %v2822 = vpop.f32.mrf.mxu0
      %v2823 = vadd.f32 %v2734, %v2822
      %2824 = vmatmul.bf16.gmra.mxu0 %v1191
      %v2825 = vpop.f32.mrf.mxu0
      %v2826 = vadd.f32 %v2737, %v2825
      %v2827 = vpop.f32.mrf.mxu0
      %v2828 = vadd.f32 %v2739, %v2827
      %2829 = vmatmul.bf16.gmra.mxu0 %v1203
      %v2830 = vpop.f32.mrf.mxu0
      %v2831 = vadd.f32 %v2742, %v2830
      %v2832 = vpop.f32.mrf.mxu0
      %v2833 = vadd.f32 %v2744, %v2832
      %2834 = vmatmul.bf16.gmra.mxu0 %v1215
      %v2835 = vpop.f32.mrf.mxu0
      %v2836 = vadd.f32 %v2747, %v2835
      %v2837 = vpop.f32.mrf.mxu0
      %v2838 = vadd.f32 %v2749, %v2837
      %2839 = vmatmul.bf16.gmra.mxu0 %v1227
      %v2840 = vpop.f32.mrf.mxu0
      %v2841 = vadd.f32 %v2752, %v2840
      %v2842 = vpop.f32.mrf.mxu0
      %v2843 = vadd.f32 %v2754, %v2842
      %2844 = vdwg.mxu0
      %2845 = vmatpush.bf16.msra.mxu0 %v2303
      %2846 = vmatpush.bf16.msra.mxu0 %v2302
      %2847 = vmatpush.bf16.msra.mxu0 %v2301
      %2848 = vmatpush.bf16.msra.mxu0 %v2300
      %2849 = vmatpush.bf16.msra.mxu0 %v2299
      %2850 = vmatpush.bf16.msra.mxu0 %v2298
      %2851 = vmatpush.bf16.msra.mxu0 %v2297
      %2852 = vmatpush.bf16.msra.mxu0 %v2296
      %2853 = vmatmul.bf16.gmra.mxu0 %v1294
      %v2854 = vpop.f32.mrf.mxu0
      %v2855 = vadd.f32 %v2766, %v2854
      %v2856 = vpop.f32.mrf.mxu0
      %v2857 = vadd.f32 %v2768, %v2856
      %2858 = vmatmul.bf16.gmra.mxu0 %v1297
      %v2859 = vpop.f32.mrf.mxu0
      %v2860 = vadd.f32 %v2771, %v2859
      %v2861 = vpop.f32.mrf.mxu0
      %v2862 = vadd.f32 %v2773, %v2861
      %2863 = vmatmul.bf16.gmra.mxu0 %v1300
      %v2864 = vpop.f32.mrf.mxu0
      %v2865 = vadd.f32 %v2776, %v2864
      %v2866 = vpop.f32.mrf.mxu0
      %v2867 = vadd.f32 %v2778, %v2866
      %2868 = vmatmul.bf16.gmra.mxu0 %v1303
      %v2869 = vpop.f32.mrf.mxu0
      %v2870 = vadd.f32 %v2781, %v2869
      %v2871 = vpop.f32.mrf.mxu0
      %v2872 = vadd.f32 %v2783, %v2871
      %2873 = vmatmul.bf16.gmra.mxu0 %v1306
      %v2874 = vpop.f32.mrf.mxu0
      %v2875 = vadd.f32 %v2786, %v2874
      %v2876 = vpop.f32.mrf.mxu0
      %v2877 = vadd.f32 %v2788, %v2876
      %2878 = vmatmul.bf16.gmra.mxu0 %v1309
      %v2879 = vpop.f32.mrf.mxu0
      %v2880 = vadd.f32 %v2791, %v2879
      %v2881 = vpop.f32.mrf.mxu0
      %v2882 = vadd.f32 %v2793, %v2881
      %2883 = vmatmul.bf16.gmra.mxu0 %v1312
      %v2884 = vpop.f32.mrf.mxu0
      %v2885 = vadd.f32 %v2796, %v2884
      %v2886 = vpop.f32.mrf.mxu0
      %v2887 = vadd.f32 %v2798, %v2886
      %2888 = vmatmul.bf16.gmra.mxu0 %v1315
      %v2889 = vpop.f32.mrf.mxu0
      %v2890 = vadd.f32 %v2801, %v2889
      %v2891 = vpop.f32.mrf.mxu0
      %v2892 = vadd.f32 %v2803, %v2891
      %2893 = vmatmul.bf16.gmra.mxu0 %v1318
      %v2894 = vpop.f32.mrf.mxu0
      %v2895 = vadd.f32 %v2806, %v2894
      %v2896 = vpop.f32.mrf.mxu0
      %v2897 = vadd.f32 %v2808, %v2896
      %2898 = vmatmul.bf16.gmra.mxu0 %v1321
      %v2899 = vpop.f32.mrf.mxu0
      %v2900 = vadd.f32 %v2811, %v2899
      %v2901 = vpop.f32.mrf.mxu0
      %v2902 = vadd.f32 %v2813, %v2901
      %2903 = vmatmul.bf16.gmra.mxu0 %v1324
      %v2904 = vpop.f32.mrf.mxu0
      %v2905 = vadd.f32 %v2816, %v2904
      %v2906 = vpop.f32.mrf.mxu0
      %v2907 = vadd.f32 %v2818, %v2906
      %2908 = vmatmul.bf16.gmra.mxu0 %v1327
      %v2909 = vpop.f32.mrf.mxu0
      %v2910 = vadd.f32 %v2821, %v2909
      %v2911 = vpop.f32.mrf.mxu0
      %v2912 = vadd.f32 %v2823, %v2911
      %2913 = vmatmul.bf16.gmra.mxu0 %v1330
      %v2914 = vpop.f32.mrf.mxu0
      %v2915 = vadd.f32 %v2826, %v2914
      %v2916 = vpop.f32.mrf.mxu0
      %v2917 = vadd.f32 %v2828, %v2916
      %2918 = vmatmul.bf16.gmra.mxu0 %v1333
      %v2919 = vpop.f32.mrf.mxu0
      %v2920 = vadd.f32 %v2831, %v2919
      %v2921 = vpop.f32.mrf.mxu0
      %v2922 = vadd.f32 %v2833, %v2921
      %2923 = vmatmul.bf16.gmra.mxu0 %v1336
      %v2924 = vpop.f32.mrf.mxu0
      %v2925 = vadd.f32 %v2836, %v2924
      %v2926 = vpop.f32.mrf.mxu0
      %v2927 = vadd.f32 %v2838, %v2926
      %2928 = vmatmul.bf16.gmra.mxu0 %v1339
      %v2929 = vpop.f32.mrf.mxu0
      %v2930 = vadd.f32 %v2841, %v2929
      %v2931 = vpop.f32.mrf.mxu0
      %v2932 = vadd.f32 %v2843, %v2931
      %2933 = vdwg.mxu0
      %2934 = vmatpush.bf16.msra.mxu0 %v2311
      %2935 = vmatpush.bf16.msra.mxu0 %v2310
      %2936 = vmatpush.bf16.msra.mxu0 %v2309
      %2937 = vmatpush.bf16.msra.mxu0 %v2308
      %2938 = vmatpush.bf16.msra.mxu0 %v2307
      %2939 = vmatpush.bf16.msra.mxu0 %v2306
      %2940 = vmatpush.bf16.msra.mxu0 %v2305
      %2941 = vmatpush.bf16.msra.mxu0 %v2304
      %2942 = vmatmul.bf16.gmra.mxu0 %v1420
      %v2943 = vpop.f32.mrf.mxu0
      %v2944 = vadd.f32 %v2855, %v2943
      %v2945 = vpop.f32.mrf.mxu0
      %v2946 = vadd.f32 %v2857, %v2945
      %2947 = vmatmul.bf16.gmra.mxu0 %v1421
      %v2948 = vpop.f32.mrf.mxu0
      %v2949 = vadd.f32 %v2860, %v2948
      %v2950 = vpop.f32.mrf.mxu0
      %v2951 = vadd.f32 %v2862, %v2950
      %2952 = vmatmul.bf16.gmra.mxu0 %v1422
      %v2953 = vpop.f32.mrf.mxu0
      %v2954 = vadd.f32 %v2865, %v2953
      %v2955 = vpop.f32.mrf.mxu0
      %v2956 = vadd.f32 %v2867, %v2955
      %2957 = vmatmul.bf16.gmra.mxu0 %v1423
      %v2958 = vpop.f32.mrf.mxu0
      %v2959 = vadd.f32 %v2870, %v2958
      %v2960 = vpop.f32.mrf.mxu0
      %v2961 = vadd.f32 %v2872, %v2960
      %2962 = vmatmul.bf16.gmra.mxu0 %v1424
      %v2963 = vpop.f32.mrf.mxu0
      %v2964 = vadd.f32 %v2875, %v2963
      %v2965 = vpop.f32.mrf.mxu0
      %v2966 = vadd.f32 %v2877, %v2965
      %2967 = vmatmul.bf16.gmra.mxu0 %v1425
      %v2968 = vpop.f32.mrf.mxu0
      %v2969 = vadd.f32 %v2880, %v2968
      %v2970 = vpop.f32.mrf.mxu0
      %v2971 = vadd.f32 %v2882, %v2970
      %2972 = vmatmul.bf16.gmra.mxu0 %v1426
      %v2973 = vpop.f32.mrf.mxu0
      %v2974 = vadd.f32 %v2885, %v2973
      %v2975 = vpop.f32.mrf.mxu0
      %v2976 = vadd.f32 %v2887, %v2975
      %2977 = vmatmul.bf16.gmra.mxu0 %v1427
      %v2978 = vpop.f32.mrf.mxu0
      %v2979 = vadd.f32 %v2890, %v2978
      %v2980 = vpop.f32.mrf.mxu0
      %v2981 = vadd.f32 %v2892, %v2980
      %2982 = vmatmul.bf16.gmra.mxu0 %v1428
      %v2983 = vpop.f32.mrf.mxu0
      %v2984 = vadd.f32 %v2895, %v2983
      %v2985 = vpop.f32.mrf.mxu0
      %v2986 = vadd.f32 %v2897, %v2985
      %2987 = vmatmul.bf16.gmra.mxu0 %v1429
      %v2988 = vpop.f32.mrf.mxu0
      %v2989 = vadd.f32 %v2900, %v2988
      %v2990 = vpop.f32.mrf.mxu0
      %v2991 = vadd.f32 %v2902, %v2990
      %2992 = vmatmul.bf16.gmra.mxu0 %v1430
      %v2993 = vpop.f32.mrf.mxu0
      %v2994 = vadd.f32 %v2905, %v2993
      %v2995 = vpop.f32.mrf.mxu0
      %v2996 = vadd.f32 %v2907, %v2995
      %2997 = vmatmul.bf16.gmra.mxu0 %v1431
      %v2998 = vpop.f32.mrf.mxu0
      %v2999 = vadd.f32 %v2910, %v2998
      %v3000 = vpop.f32.mrf.mxu0
      %v3001 = vadd.f32 %v2912, %v3000
      %3002 = vmatmul.bf16.gmra.mxu0 %v1432
      %v3003 = vpop.f32.mrf.mxu0
      %v3004 = vadd.f32 %v2915, %v3003
      %v3005 = vpop.f32.mrf.mxu0
      %v3006 = vadd.f32 %v2917, %v3005
      %3007 = vmatmul.bf16.gmra.mxu0 %v1433
      %v3008 = vpop.f32.mrf.mxu0
      %v3009 = vadd.f32 %v2920, %v3008
      %v3010 = vpop.f32.mrf.mxu0
      %v3011 = vadd.f32 %v2922, %v3010
      %3012 = vmatmul.bf16.gmra.mxu0 %v1434
      %v3013 = vpop.f32.mrf.mxu0
      %v3014 = vadd.f32 %v2925, %v3013
      %v3015 = vpop.f32.mrf.mxu0
      %v3016 = vadd.f32 %v2927, %v3015
      %3017 = vmatmul.bf16.gmra.mxu0 %v1435
      %v3018 = vpop.f32.mrf.mxu0
      %v3019 = vadd.f32 %v2930, %v3018
      %v3020 = vpop.f32.mrf.mxu0
      %v3021 = vadd.f32 %v2932, %v3020
      %3022 = vdwg.mxu0
      %3023 = vmatpush.bf16.msra.mxu0 %v2319
      %3024 = vmatpush.bf16.msra.mxu0 %v2318
      %3025 = vmatpush.bf16.msra.mxu0 %v2317
      %3026 = vmatpush.bf16.msra.mxu0 %v2316
      %3027 = vmatpush.bf16.msra.mxu0 %v2315
      %3028 = vmatpush.bf16.msra.mxu0 %v2314
      %3029 = vmatpush.bf16.msra.mxu0 %v2313
      %3030 = vmatpush.bf16.msra.mxu0 %v2312
      %3031 = vmatmul.bf16.gmra.mxu0 %v1511
      %v3032 = vpop.f32.mrf.mxu0
      %v3033 = vadd.f32 %v2944, %v3032
      %v3034 = vpop.f32.mrf.mxu0
      %v3035 = vadd.f32 %v2946, %v3034
      %3036 = vmatmul.bf16.gmra.mxu0 %v1523
      %v3037 = vpop.f32.mrf.mxu0
      %v3038 = vadd.f32 %v2949, %v3037
      %v3039 = vpop.f32.mrf.mxu0
      %v3040 = vadd.f32 %v2951, %v3039
      %3041 = vmatmul.bf16.gmra.mxu0 %v1535
      %v3042 = vpop.f32.mrf.mxu0
      %v3043 = vadd.f32 %v2954, %v3042
      %v3044 = vpop.f32.mrf.mxu0
      %v3045 = vadd.f32 %v2956, %v3044
      %3046 = vmatmul.bf16.gmra.mxu0 %v1547
      %v3047 = vpop.f32.mrf.mxu0
      %v3048 = vadd.f32 %v2959, %v3047
      %v3049 = vpop.f32.mrf.mxu0
      %v3050 = vadd.f32 %v2961, %v3049
      %3051 = vmatmul.bf16.gmra.mxu0 %v1559
      %v3052 = vpop.f32.mrf.mxu0
      %v3053 = vadd.f32 %v2964, %v3052
      %v3054 = vpop.f32.mrf.mxu0
      %v3055 = vadd.f32 %v2966, %v3054
      %3056 = vmatmul.bf16.gmra.mxu0 %v1571
      %v3057 = vpop.f32.mrf.mxu0
      %v3058 = vadd.f32 %v2969, %v3057
      %v3059 = vpop.f32.mrf.mxu0
      %v3060 = vadd.f32 %v2971, %v3059
      %3061 = vmatmul.bf16.gmra.mxu0 %v1583
      %v3062 = vpop.f32.mrf.mxu0
      %v3063 = vadd.f32 %v2974, %v3062
      %v3064 = vpop.f32.mrf.mxu0
      %v3065 = vadd.f32 %v2976, %v3064
      %3066 = vmatmul.bf16.gmra.mxu0 %v1595
      %v3067 = vpop.f32.mrf.mxu0
      %v3068 = vadd.f32 %v2979, %v3067
      %v3069 = vpop.f32.mrf.mxu0
      %v3070 = vadd.f32 %v2981, %v3069
      %3071 = vmatmul.bf16.gmra.mxu0 %v1607
      %v3072 = vpop.f32.mrf.mxu0
      %v3073 = vadd.f32 %v2984, %v3072
      %v3074 = vpop.f32.mrf.mxu0
      %v3075 = vadd.f32 %v2986, %v3074
      %3076 = vmatmul.bf16.gmra.mxu0 %v1619
      %v3077 = vpop.f32.mrf.mxu0
      %v3078 = vadd.f32 %v2989, %v3077
      %v3079 = vpop.f32.mrf.mxu0
      %v3080 = vadd.f32 %v2991, %v3079
      %3081 = vmatmul.bf16.gmra.mxu0 %v1631
      %v3082 = vpop.f32.mrf.mxu0
      %v3083 = vadd.f32 %v2994, %v3082
      %v3084 = vpop.f32.mrf.mxu0
      %v3085 = vadd.f32 %v2996, %v3084
      %3086 = vmatmul.bf16.gmra.mxu0 %v1643
      %v3087 = vpop.f32.mrf.mxu0
      %v3088 = vadd.f32 %v2999, %v3087
      %v3089 = vpop.f32.mrf.mxu0
      %v3090 = vadd.f32 %v3001, %v3089
      %3091 = vmatmul.bf16.gmra.mxu0 %v1655
      %v3092 = vpop.f32.mrf.mxu0
      %v3093 = vadd.f32 %v3004, %v3092
      %v3094 = vpop.f32.mrf.mxu0
      %v3095 = vadd.f32 %v3006, %v3094
      %3096 = vmatmul.bf16.gmra.mxu0 %v1667
      %v3097 = vpop.f32.mrf.mxu0
      %v3098 = vadd.f32 %v3009, %v3097
      %v3099 = vpop.f32.mrf.mxu0
      %v3100 = vadd.f32 %v3011, %v3099
      %3101 = vmatmul.bf16.gmra.mxu0 %v1679
      %v3102 = vpop.f32.mrf.mxu0
      %v3103 = vadd.f32 %v3014, %v3102
      %v3104 = vpop.f32.mrf.mxu0
      %v3105 = vadd.f32 %v3016, %v3104
      %3106 = vmatmul.bf16.gmra.mxu0 %v1691
      %v3107 = vpop.f32.mrf.mxu0
      %v3108 = vadd.f32 %v3019, %v3107
      %v3109 = vpop.f32.mrf.mxu0
      %v3110 = vadd.f32 %v3021, %v3109
      %3111 = vdwg.mxu0
      %3112 = vmatpush.bf16.msra.mxu0 %v2327
      %3113 = vmatpush.bf16.msra.mxu0 %v2326
      %3114 = vmatpush.bf16.msra.mxu0 %v2325
      %3115 = vmatpush.bf16.msra.mxu0 %v2324
      %3116 = vmatpush.bf16.msra.mxu0 %v2323
      %3117 = vmatpush.bf16.msra.mxu0 %v2322
      %3118 = vmatpush.bf16.msra.mxu0 %v2321
      %3119 = vmatpush.bf16.msra.mxu0 %v2320
      %3120 = vmatmul.bf16.gmra.mxu0 %v1758
      %v3121 = vpop.f32.mrf.mxu0
      %v3122 = vadd.f32 %v3033, %v3121
      %v3123 = vpop.f32.mrf.mxu0
      %v3124 = vadd.f32 %v3035, %v3123
      %3125 = vmatmul.bf16.gmra.mxu0 %v1761
      %v3126 = vpop.f32.mrf.mxu0
      %v3127 = vadd.f32 %v3038, %v3126
      %v3128 = vpop.f32.mrf.mxu0
      %v3129 = vadd.f32 %v3040, %v3128
      %3130 = vmatmul.bf16.gmra.mxu0 %v1764
      %v3131 = vpop.f32.mrf.mxu0
      %v3132 = vadd.f32 %v3043, %v3131
      %v3133 = vpop.f32.mrf.mxu0
      %v3134 = vadd.f32 %v3045, %v3133
      %3135 = vmatmul.bf16.gmra.mxu0 %v1767
      %v3136 = vpop.f32.mrf.mxu0
      %v3137 = vadd.f32 %v3048, %v3136
      %v3138 = vpop.f32.mrf.mxu0
      %v3139 = vadd.f32 %v3050, %v3138
      %3140 = vmatmul.bf16.gmra.mxu0 %v1770
      %v3141 = vpop.f32.mrf.mxu0
      %v3142 = vadd.f32 %v3053, %v3141
      %v3143 = vpop.f32.mrf.mxu0
      %v3144 = vadd.f32 %v3055, %v3143
      %3145 = vmatmul.bf16.gmra.mxu0 %v1773
      %v3146 = vpop.f32.mrf.mxu0
      %v3147 = vadd.f32 %v3058, %v3146
      %v3148 = vpop.f32.mrf.mxu0
      %v3149 = vadd.f32 %v3060, %v3148
      %3150 = vmatmul.bf16.gmra.mxu0 %v1776
      %v3151 = vpop.f32.mrf.mxu0
      %v3152 = vadd.f32 %v3063, %v3151
      %v3153 = vpop.f32.mrf.mxu0
      %v3154 = vadd.f32 %v3065, %v3153
      %3155 = vmatmul.bf16.gmra.mxu0 %v1779
      %v3156 = vpop.f32.mrf.mxu0
      %v3157 = vadd.f32 %v3068, %v3156
      %v3158 = vpop.f32.mrf.mxu0
      %v3159 = vadd.f32 %v3070, %v3158
      %3160 = vmatmul.bf16.gmra.mxu0 %v1782
      %v3161 = vpop.f32.mrf.mxu0
      %v3162 = vadd.f32 %v3073, %v3161
      %v3163 = vpop.f32.mrf.mxu0
      %v3164 = vadd.f32 %v3075, %v3163
      %3165 = vmatmul.bf16.gmra.mxu0 %v1785
      %v3166 = vpop.f32.mrf.mxu0
      %v3167 = vadd.f32 %v3078, %v3166
      %v3168 = vpop.f32.mrf.mxu0
      %v3169 = vadd.f32 %v3080, %v3168
      %3170 = vmatmul.bf16.gmra.mxu0 %v1788
      %v3171 = vpop.f32.mrf.mxu0
      %v3172 = vadd.f32 %v3083, %v3171
      %v3173 = vpop.f32.mrf.mxu0
      %v3174 = vadd.f32 %v3085, %v3173
      %3175 = vmatmul.bf16.gmra.mxu0 %v1791
      %v3176 = vpop.f32.mrf.mxu0
      %v3177 = vadd.f32 %v3088, %v3176
      %v3178 = vpop.f32.mrf.mxu0
      %v3179 = vadd.f32 %v3090, %v3178
      %3180 = vmatmul.bf16.gmra.mxu0 %v1794
      %v3181 = vpop.f32.mrf.mxu0
      %v3182 = vadd.f32 %v3093, %v3181
      %v3183 = vpop.f32.mrf.mxu0
      %v3184 = vadd.f32 %v3095, %v3183
      %3185 = vmatmul.bf16.gmra.mxu0 %v1797
      %v3186 = vpop.f32.mrf.mxu0
      %v3187 = vadd.f32 %v3098, %v3186
      %v3188 = vpop.f32.mrf.mxu0
      %v3189 = vadd.f32 %v3100, %v3188
      %3190 = vmatmul.bf16.gmra.mxu0 %v1800
      %v3191 = vpop.f32.mrf.mxu0
      %v3192 = vadd.f32 %v3103, %v3191
      %v3193 = vpop.f32.mrf.mxu0
      %v3194 = vadd.f32 %v3105, %v3193
      %3195 = vmatmul.bf16.gmra.mxu0 %v1803
      %v3196 = vpop.f32.mrf.mxu0
      %v3197 = vadd.f32 %v3108, %v3196
      %v3198 = vpop.f32.mrf.mxu0
      %v3199 = vadd.f32 %v3110, %v3198
      %3200 = vdwg.mxu0
      %v3201 = vmax.f32 %v3122, 0.0
      %v3202 = vmax.f32 %v3124, 0.0
      %v3203 = vmax.f32 %v3127, 0.0
      %v3204 = vmax.f32 %v3129, 0.0
      %v3205 = vmax.f32 %v3132, 0.0
      %v3206 = vmax.f32 %v3134, 0.0
      %v3207 = vmax.f32 %v3137, 0.0
      %v3208 = vmax.f32 %v3139, 0.0
      %v3209 = vmax.f32 %v3142, 0.0
      %v3210 = vmax.f32 %v3144, 0.0
      %v3211 = vmax.f32 %v3147, 0.0
      %v3212 = vmax.f32 %v3149, 0.0
      %v3213 = vmax.f32 %v3152, 0.0
      %v3214 = vmax.f32 %v3154, 0.0
      %v3215 = vmax.f32 %v3157, 0.0
      %v3216 = vmax.f32 %v3159, 0.0
      %v3217 = vmax.f32 %v3162, 0.0
      %v3218 = vmax.f32 %v3164, 0.0
      %v3219 = vmax.f32 %v3167, 0.0
      %v3220 = vmax.f32 %v3169, 0.0
      %v3221 = vmax.f32 %v3172, 0.0
      %v3222 = vmax.f32 %v3174, 0.0
      %v3223 = vmax.f32 %v3177, 0.0
      %v3224 = vmax.f32 %v3179, 0.0
      %v3225 = vmax.f32 %v3182, 0.0
      %v3226 = vmax.f32 %v3184, 0.0
      %v3227 = vmax.f32 %v3187, 0.0
      %v3228 = vmax.f32 %v3189, 0.0
      %v3229 = vmax.f32 %v3192, 0.0
      %v3230 = vmax.f32 %v3194, 0.0
      %v3231 = vmax.f32 %v3197, 0.0
      %v3232 = vmax.f32 %v3199, 0.0
      %3233 = vst [vmem:[%s148] sm:$0xff] %v3201
      %3234 = vst [vmem:[%s148 + $0x8] sm:$0xff] %v3202
      %3235 = vst [vmem:[%s148 + $0x10] sm:$0xff] %v3203
      %3236 = vst [vmem:[%s148 + $0x18] sm:$0xff] %v3204
      %3237 = vst [vmem:[%s148 + $0x20] sm:$0xff] %v3205
      %3238 = vst [vmem:[%s148 + $0x28] sm:$0xff] %v3206
      %3239 = vst [vmem:[%s148 + $0x30] sm:$0xff] %v3207
      %3240 = vst [vmem:[%s148 + $0x38] sm:$0xff] %v3208
      %3241 = vst [vmem:[%s148 + $0x40] sm:$0xff] %v3209
      %3242 = vst [vmem:[%s148 + $0x48] sm:$0xff] %v3210
      %3243 = vst [vmem:[%s148 + $0x50] sm:$0xff] %v3211
      %3244 = vst [vmem:[%s148 + $0x58] sm:$0xff] %v3212
      %3245 = vst [vmem:[%s148 + $0x60] sm:$0xff] %v3213
      %3246 = vst [vmem:[%s148 + $0x68] sm:$0xff] %v3214
      %3247 = vst [vmem:[%s148 + $0x70] sm:$0xff] %v3215
      %3248 = vst [vmem:[%s148 + $0x78] sm:$0xff] %v3216
      %3249 = vst [vmem:[%s148 + $0x80] sm:$0xff] %v3217
      %3250 = vst [vmem:[%s148 + $0x88] sm:$0xff] %v3218
      %3251 = vst [vmem:[%s148 + $0x90] sm:$0xff] %v3219
      %3252 = vst [vmem:[%s148 + $0x98] sm:$0xff] %v3220
      %3253 = vst [vmem:[%s148 + $0xa0] sm:$0xff] %v3221
      %3254 = vst [vmem:[%s148 + $0xa8] sm:$0xff] %v3222
      %3255 = vst [vmem:[%s148 + $0xb0] sm:$0xff] %v3223
      %3256 = vst [vmem:[%s148 + $0xb8] sm:$0xff] %v3224
      %3257 = vst [vmem:[%s148 + $0xc0] sm:$0xff] %v3225
      %3258 = vst [vmem:[%s148 + $0xc8] sm:$0xff] %v3226
      %3259 = vst [vmem:[%s148 + $0xd0] sm:$0xff] %v3227
      %3260 = vst [vmem:[%s148 + $0xd8] sm:$0xff] %v3228
      %3261 = vst [vmem:[%s148 + $0xe0] sm:$0xff] %v3229
      %3262 = vst [vmem:[%s148 + $0xe8] sm:$0xff] %v3230
      %3263 = vst [vmem:[%s148 + $0xf0] sm:$0xff] %v3231
      %3264 = vst [vmem:[%s148 + $0xf8] sm:$0xff] %v3232
      %s3265 = smul.u32 16, %s19
      %p3266 = scmp.lt.s32.totalorder %s18, 1
      %s3267 = scalar_select %p3266, %s18, 1
      %p3268 = scmp.lt.s32.totalorder %s3265, 15
      %s3269 = scalar_select %p3268, %s3265, 15
      %s3270 = smul.addr %s3269, 2
      %s3271 = smul.addr %s3267, 32
      %s3272 = sadd.s32 %s3270, %s3271
      %s3273 = smul.addr %s3272, 8
      %s3274 = scalar_lea.vmem %s3, %s3273
      // Predicated region
      $region48: #{repvgg_block.3} parent=27 // pred_check
        %p3275 = pneg %p88
      $region49: #{repvgg_block.3} parent=27 // pred_check_branch
        %3277 = sbr.rel (%p3275) target = $region51
      $region50: #{repvgg_block.3} parent=27 // pred_region
        %s3278 = smul.u32 16, %s19
      $region51: #{repvgg_block.3} parent=27 // pred_fallthru
        _
    $region28: #{repvgg_block.3} parent=5 // pred_fallthru
      _
    %p3279 = scmp.le.s32.totalorder 2, %s9
    // Predicated region
    $region52: #{repvgg_block.3} parent=5 // pred_check
      %p3280 = pneg %p3279
    $region53: #{repvgg_block.3} parent=5 // pred_check_branch
      %3282 = sbr.rel (%p3280) target = $region55
    $region54: #{repvgg_block.3} parent=5 // pred_region
      %s3283 = ssub.s32 %s9, 2
      // Predicated region
      $region56: #{repvgg_block.3} parent=54 // pred_check
        %p3284 = pneg %p94
      $region57: #{repvgg_block.3} parent=54 // pred_check_branch
        %3286 = sbr.rel (%p3284) target = $region59
      $region58: #{repvgg_block.3} parent=54 // pred_region
        %s3287 = smul.u32 16, %s21
        %p3288 = scmp.lt.s32.totalorder %s20, 1
        %s3289 = scalar_select %p3288, %s20, 1
        %p3290 = scmp.lt.s32.totalorder %s3287, 15
        %s3291 = scalar_select %p3290, %s3287, 15
        %s3292 = smul.addr %s3291, 2
        %s3293 = smul.addr %s3289, 32
        %s3294 = sadd.s32 %s3292, %s3293
        %s3295 = smul.addr %s3294, 8
        %s3296 = scalar_lea.vmem %s3, %s3295
      $region59: #{repvgg_block.3} parent=54 // pred_fallthru
        _
    $region55: #{repvgg_block.3} parent=5 // pred_fallthru
      _
  $region6: #{repvgg_block.3} parent=0 // loop_footer
    %s13 = sadd.s32 1, %s9
  $region7: #{repvgg_block.3} parent=0 // loop_footer_branch
    %8 = sbr.rel target = $region3
  $region8: #{repvgg_block.3} parent=0 // loop_exit
    _
  %3297 = vsyncmov [#allocation3]
  %s3298 = vpop.sfrf %3297
  %p3299 = scmp.eq.s32.totalorder %s3298, 0
  %p3300 = pneg %p3299
  %3302 = shalt.err (%p3300)

</llo_original>
